<compile_context>
chip_gen: v7x
topology: tpu7x:2x2x1
jax: 0.10.0
libtpu: 0.0.40
codegen_flags: <defaults>
</compile_context>

<pallas_src>
import jax
import jax.numpy as jnp
from jax.experimental import pallas as pl
from jax.experimental.pallas import tpu as pltpu

LANE = 128                        # lane-dense output width
VMEM_LIMIT = 48 * 1024 * 1024     # safe on v5e/v6e (128 MiB) and v7x (64 MiB) physical VMEM


def _round_up(x, m):
    return ((x + m - 1) // m) * m


def _pad_cols(a, mult):
    c = a.shape[-1]
    cp = _round_up(c, mult)
    if cp == c:
        return a
    pad = [(0, 0)] * (a.ndim - 1) + [(0, cp - c)]
    return jnp.pad(a, pad)


def _pick_tm(m, tm_max):
    """Row-tile size. Tiny M -> single full-extent block (always a legal block shape).
    Otherwise a multiple of 128, capped at tm_max, chosen so the grid has >= 2 steps
    (lets dimension_semantics=("parallel",) shard across both TensorCores on v7x)."""
    if m <= 256:
        return m
    return int(min(tm_max, _round_up((m + 1) // 2, 128)))


def _block_diag4(w):
    """4-way block-diagonal expansion: blocks [[w,0,0,0],[0,w,0,0],[0,0,w,0],[0,0,0,w]]."""
    k, c = w.shape
    z = jnp.zeros((k, c), w.dtype)
    rows = [jnp.concatenate([w if t == s else z for t in range(4)], axis=1)
            for s in range(4)]
    return jnp.concatenate(rows, axis=0)


# ----------------------------------------------------------------------------
# Pallas kernels
# ----------------------------------------------------------------------------
def _conv_pool_packed_kernel(p_ref, w_ref, b_ref, o_ref):
    """Layer-1 fused conv(+folded BN) + ReLU + 2x2 maxpool via one block-diag matmul.

    p_ref: (TM, 4*Kb) bf16 -- packed im2col patches, pool slots packed along K.
    w_ref: (4*Kb, 4*128) bf16 -- block-diagonal folded weights (one block per pool slot).
    b_ref: (1, 128) f32 -- folded bias (same for every pool slot).
    o_ref: (TM, 128) -- pooled output rows (lane-dense).
    """
    z = jnp.dot(p_ref[...], w_ref[...], preferred_element_type=jnp.float32)  # (TM, 512)
    m = z[:, 0:LANE]                                   # 128-lane-aligned slices are free
    for s in range(1, 4):
        m = jnp.maximum(m, z[:, s * LANE:(s + 1) * LANE])
    # max_s relu(z_s + b) == relu(max_s z_s + b): same bias per slot, ReLU monotonic.
    o_ref[...] = jnp.maximum(m + b_ref[...], 0.0).astype(o_ref.dtype)


def _conv_pool_slot_kernel(p_ref, w_ref, b_ref, o_ref):
    """Layer-2 fused conv(+folded BN) + ReLU + 2x2 maxpool; running max over 4 slots.

    p_ref: (4, TM, K) bf16 -- im2col patches, leading axis = 2x2 pool-window slot.
    w_ref: (K, 128) bf16, b_ref: (1, 128) f32, o_ref: (TM, 128).
    """
    w = w_ref[...]
    m = jnp.dot(p_ref[0], w, preferred_element_type=jnp.float32)
    for s in range(1, 4):                               # running max: <=2 live f32 tiles
        m = jnp.maximum(m, jnp.dot(p_ref[s], w, preferred_element_type=jnp.float32))
    o_ref[...] = jnp.maximum(m + b_ref[...], 0.0).astype(o_ref.dtype)


def _matmul_bias_kernel(x_ref, w_ref, b_ref, o_ref):
    acc = jnp.dot(x_ref[...], w_ref[...], preferred_element_type=jnp.float32)
    o_ref[...] = (acc + b_ref[...]).astype(o_ref.dtype)


# ----------------------------------------------------------------------------
# Pallas wrappers (grid tiled over M with overhanging last block, weights resident)
# ----------------------------------------------------------------------------
def conv_pool_packed(patches, w_blk, bias2d, out_dtype, tm=2048):
    """(M, 4*Kb) packed patches -> (M, 128) pooled conv output."""
    M, KP = patches.shape
    NP = w_blk.shape[1]
    TM = _pick_tm(M, tm)
    grid = (pl.cdiv(M, TM),)
    return pl.pallas_call(
        _conv_pool_packed_kernel,
        out_shape=jax.ShapeDtypeStruct((M, LANE), out_dtype),
        grid=grid,
        in_specs=[
            pl.BlockSpec((TM, KP), lambda m: (m, 0)),
            pl.BlockSpec((KP, NP), lambda m: (0, 0)),
            pl.BlockSpec((1, LANE), lambda m: (0, 0)),
        ],
        out_specs=pl.BlockSpec((TM, LANE), lambda m: (m, 0)),
        compiler_params=pltpu.CompilerParams(
            dimension_semantics=("parallel",), vmem_limit_bytes=VMEM_LIMIT),
        cost_estimate=pl.CostEstimate(
            flops=int(2 * M * KP * NP),
            transcendentals=0,
            bytes_accessed=int(M * KP * 2 + KP * NP * 2 + M * LANE * 2 + LANE * 4)),
    )(patches, w_blk, bias2d)


def conv_pool_slots(patches4, w, bias2d, out_dtype, tm=2048):
    """(4, M, K) patches -> (M, 128): relu(max_s(p_s @ w) + b)."""
    _, M, K = patches4.shape
    CP = w.shape[1]
    TM = _pick_tm(M, tm)
    grid = (pl.cdiv(M, TM),)
    return pl.pallas_call(
        _conv_pool_slot_kernel,
        out_shape=jax.ShapeDtypeStruct((M, CP), out_dtype),
        grid=grid,
        in_specs=[
            pl.BlockSpec((4, TM, K), lambda m: (0, m, 0)),
            pl.BlockSpec((K, CP), lambda m: (0, 0)),
            pl.BlockSpec((1, CP), lambda m: (0, 0)),
        ],
        out_specs=pl.BlockSpec((TM, CP), lambda m: (m, 0)),
        compiler_params=pltpu.CompilerParams(
            dimension_semantics=("parallel",), vmem_limit_bytes=VMEM_LIMIT),
        cost_estimate=pl.CostEstimate(
            flops=int(2 * 4 * M * K * CP),
            transcendentals=0,
            bytes_accessed=int(4 * M * K * 2 + K * CP * 2 + M * CP * 2 + CP * 4)),
    )(patches4, w, bias2d)


def matmul_bias(x, w, bias2d, out_dtype, tm=2048):
    """(M, K) @ (K, CP) + bias, tiled over M."""
    M, K = x.shape
    CP = w.shape[1]
    TM = _pick_tm(M, tm)
    grid = (pl.cdiv(M, TM),)
    return pl.pallas_call(
        _matmul_bias_kernel,
        out_shape=jax.ShapeDtypeStruct((M, CP), out_dtype),
        grid=grid,
        in_specs=[
            pl.BlockSpec((TM, K), lambda m: (m, 0)),
            pl.BlockSpec((K, CP), lambda m: (0, 0)),
            pl.BlockSpec((1, CP), lambda m: (0, 0)),
        ],
        out_specs=pl.BlockSpec((TM, CP), lambda m: (m, 0)),
        compiler_params=pltpu.CompilerParams(
            dimension_semantics=("parallel",), vmem_limit_bytes=VMEM_LIMIT),
        cost_estimate=pl.CostEstimate(
            flops=int(2 * M * K * CP),
            transcendentals=0,
            bytes_accessed=int(M * K * 2 + K * CP * 2 + M * CP * 4 + CP * 4)),
    )(x, w, bias2d)


# ----------------------------------------------------------------------------
# Plain-JAX glue: pooled im2col patch extraction, parameter prep
# ----------------------------------------------------------------------------
def im2col_pool_packed(x_nhwc, kh, kw, pad):
    """Layer-1 patch builder: pool slots packed along K.

    Returns (N*PH*PW, 4*kh*kw*C) with feature order (pool_slot=(di,dj), ki, kj, cin);
    rows ordered (n, ph, pw).
    """
    if pad:
        x_nhwc = jnp.pad(x_nhwc, ((0, 0), (pad, pad), (pad, pad), (0, 0)))
    N, H, W, C = x_nhwc.shape
    oh, ow = H - kh + 1, W - kw + 1
    assert oh % 2 == 0 and ow % 2 == 0, "maxpool2x2 expects even conv output"
    ph, pw = oh // 2, ow // 2
    cols = []
    for di in range(2):
        for dj in range(2):
            for i in range(kh):
                for j in range(kw):
                    r0, c0 = di + i, dj + j
                    cols.append(x_nhwc[:, r0:r0 + 2 * ph - 1:2,
                                       c0:c0 + 2 * pw - 1:2, :])      # (N, ph, pw, C)
    p = jnp.concatenate(cols, axis=-1)                                # (N, ph, pw, 4*kh*kw*C)
    return p.reshape(N * ph * pw, 4 * kh * kw * C), ph, pw


def im2col_pool_slots(x_nhwc, kh, kw, pad):
    """Layer-2 patch builder: pool slot as a leading size-4 axis.

    Returns (4, N*PH*PW, kh*kw*C); feature order (ki, kj, cin); rows (n, ph, pw).
    """
    if pad:
        x_nhwc = jnp.pad(x_nhwc, ((0, 0), (pad, pad), (pad, pad), (0, 0)))
    N, H, W, C = x_nhwc.shape
    oh, ow = H - kh + 1, W - kw + 1
    assert oh % 2 == 0 and ow % 2 == 0, "maxpool2x2 expects even conv output"
    ph, pw = oh // 2, ow // 2
    slots = []
    for di in range(2):
        for dj in range(2):
            cols = []
            for i in range(kh):
                for j in range(kw):
                    r0, c0 = di + i, dj + j
                    cols.append(x_nhwc[:, r0:r0 + 2 * ph - 1:2,
                                       c0:c0 + 2 * pw - 1:2, :])      # (N, ph, pw, C)
            slots.append(jnp.concatenate(cols, axis=-1).reshape(N * ph * pw, kh * kw * C))
    return jnp.stack(slots, axis=0), ph, pw


def torch_conv_weight_to_matmul(w_oihw):
    """PyTorch (Cout, Cin, KH, KW) -> (KH*KW*Cin, Cout), matching im2col feature order."""
    cout, cin, kh, kw = w_oihw.shape
    return jnp.transpose(w_oihw, (2, 3, 1, 0)).reshape(kh * kw * cin, cout)


def init_params(key):
    ks = jax.random.split(key, 16)
    p = {}
    # layer1: Conv2d(1, 16, k=5, pad=2) + BatchNorm2d(16)
    p["w1"] = 0.10 * jax.random.normal(ks[0], (16, 1, 5, 5), jnp.float32)
    p["b1"] = 0.10 * jax.random.normal(ks[1], (16,), jnp.float32)
    p["bn1_gamma"] = 1.0 + 0.1 * jax.random.normal(ks[2], (16,), jnp.float32)
    p["bn1_beta"] = 0.1 * jax.random.normal(ks[3], (16,), jnp.float32)
    p["bn1_mean"] = 0.1 * jax.random.normal(ks[4], (16,), jnp.float32)
    p["bn1_var"] = 0.5 + jax.random.uniform(ks[5], (16,), jnp.float32)
    # layer2: Conv2d(16, 32, k=5) + BatchNorm2d(32)
    p["w2"] = 0.05 * jax.random.normal(ks[6], (32, 16, 5, 5), jnp.float32)
    p["b2"] = 0.10 * jax.random.normal(ks[7], (32,), jnp.float32)
    p["bn2_gamma"] = 1.0 + 0.1 * jax.random.normal(ks[8], (32,), jnp.float32)
    p["bn2_beta"] = 0.1 * jax.random.normal(ks[9], (32,), jnp.float32)
    p["bn2_mean"] = 0.1 * jax.random.normal(ks[10], (32,), jnp.float32)
    p["bn2_var"] = 0.5 + jax.random.uniform(ks[11], (32,), jnp.float32)
    # fc1: Linear(5*5*32, 10) — PyTorch stores (out_features, in_features)
    p["fc_w"] = 0.02 * jax.random.normal(ks[12], (10, 800), jnp.float32)
    p["fc_b"] = 0.02 * jax.random.normal(ks[13], (10,), jnp.float32)
    return p


def convnet_forward(x_nchw, p, eps=1e-5):
    x = jnp.transpose(x_nchw, (0, 2, 3, 1)).astype(jnp.bfloat16)     # NCHW -> NHWC, bf16
    N = x.shape[0]

    # Fold BN (inference mode) into per-layer weights / bias; keep Cout 128-lane dense.
    s1 = p["bn1_gamma"] / jnp.sqrt(p["bn1_var"] + eps)
    w1 = torch_conv_weight_to_matmul(p["w1"]) * s1[None, :]          # (25, 16)
    b1 = (p["b1"] - p["bn1_mean"]) * s1 + p["bn1_beta"]
    w1blk = _block_diag4(_pad_cols(w1, LANE)).astype(jnp.bfloat16)   # (100, 512) block-diag
    b1p = _pad_cols(b1.reshape(1, -1), LANE).astype(jnp.float32)     # (1, 128)

    s2 = p["bn2_gamma"] / jnp.sqrt(p["bn2_var"] + eps)
    w2 = torch_conv_weight_to_matmul(p["w2"]) * s2[None, :]          # (400, 32)
    b2 = (p["b2"] - p["bn2_mean"]) * s2 + p["bn2_beta"]
    w2p = _pad_cols(w2, LANE).astype(jnp.bfloat16)                   # (400, 128)
    b2p = _pad_cols(b2.reshape(1, -1), LANE).astype(jnp.float32)

    # fc1 weights pre-permuted into NHWC flatten order (h, w, c) so the flatten below is
    # a plain reshape. torch flatten order is (c, h, w): W[(h*5+w)*32+c, o] = fc_w[o,c,h,w].
    wf = p["fc_w"].reshape(10, 32, 5, 5).transpose(2, 3, 1, 0).reshape(800, 10)
    wfp = _pad_cols(wf, LANE).astype(jnp.bfloat16)                   # (800, 128)
    bfp = _pad_cols(p["fc_b"].reshape(1, -1), LANE).astype(jnp.float32)

    # --- layer1: Conv(1->16, k5, pad2) + BN + ReLU + MaxPool2 (one fused kernel) ---
    pk, ph, pw = im2col_pool_packed(x, 5, 5, pad=2)                  # (N*196, 100)
    y = conv_pool_packed(pk, w1blk, b1p, jnp.bfloat16)               # (N*196, 128)
    y = y[:, :16].reshape(N, ph, pw, 16)                             # (N, 14, 14, 16)

    # --- layer2: Conv(16->32, k5, no pad) + BN + ReLU + MaxPool2 (one fused kernel) ---
    p4, ph, pw = im2col_pool_slots(y, 5, 5, pad=0)                   # (4, N*25, 400)
    y = conv_pool_slots(p4, w2p, b2p, jnp.bfloat16)                  # (N*25, 128)

    # --- flatten (NHWC order, matches pre-permuted fc weights) and fc1 ---
    flat = y[:, :32].reshape(N, 5 * 5 * 32)                          # (N, 800) bf16
    out = matmul_bias(flat, wfp, bfp, jnp.float32)                   # (N, 128)
    return out[:, :10]


if __name__ == "__main__":
    key = jax.random.PRNGKey(0)
    k_x, k_p = jax.random.split(key)
    # fc1 expects 5*5*32 features => 28x28 single-channel input (MNIST geometry).
    x = jax.random.normal(k_x, (2, 1, 28, 28), dtype=jnp.float32)
    params = init_params(k_p)

    fwd = jax.jit(lambda xx: convnet_forward(xx, params))
    logits = fwd(x)
    jax.block_until_ready(logits)
    assert logits.shape == (2, 10), logits.shape
    assert bool(jnp.all(jnp.isfinite(logits.astype(jnp.float32))))
    print("KERNEL_OK")
</pallas_src>

<mosaic_0001>
module attributes {stable_mosaic.version = 11 : i64} {
  func.func @_conv_pool_packed_kernel(%arg0: i32, %arg1: memref<256x100xbf16, #tpu.memory_space<vmem>>, %arg2: memref<100x512xbf16, #tpu.memory_space<vmem>>, %arg3: memref<1x128xf32, #tpu.memory_space<vmem>>, %arg4: memref<256x128xbf16, #tpu.memory_space<vmem>>) attributes {dimension_semantics = [#tpu.dimension_semantics<parallel>], iteration_bounds = array<i64: 2>, scalar_prefetch = 0 : i64, scratch_operands = 0 : i64, tpu.core_type = #tpu.core_type<tc>, window_params = [{transform_indices = @transform_0, window_bounds = array<i64: 256, 100>}, {pipeline_mode = #tpu.pipeline_mode<synchronous>, transform_indices = @transform_1, window_bounds = array<i64: 100, 512>}, {pipeline_mode = #tpu.pipeline_mode<synchronous>, transform_indices = @transform_2, window_bounds = array<i64: 1, 128>}, {transform_indices = @transform_3, window_bounds = array<i64: 256, 128>}]} {
    %c0 = arith.constant 0 : index
    %c0_0 = arith.constant 0 : index
    %0 = vector.load %arg1[%c0, %c0_0] : memref<256x100xbf16, #tpu.memory_space<vmem>>, vector<256x100xbf16>
    %c0_1 = arith.constant 0 : index
    %c0_2 = arith.constant 0 : index
    %1 = vector.load %arg2[%c0_1, %c0_2] : memref<100x512xbf16, #tpu.memory_space<vmem>>, vector<100x512xbf16>
    %cst = arith.constant dense<0.000000e+00> : vector<256x512xf32>
    %2 = tpu.matmul %0, %1, %cst {dimension_numbers = #tpu.dot_dimension_numbers<[1], [0], [0], [1], [0, 0, 1, 1], [], []>} : vector<256x100xbf16>, vector<100x512xbf16>, vector<256x512xf32> -> vector<256x512xf32>
    %3 = vector.extract_strided_slice %2 {offsets = [0, 0], sizes = [256, 128], strides = [1, 1]} : vector<256x512xf32> to vector<256x128xf32>
    %4 = vector.extract_strided_slice %2 {offsets = [0, 128], sizes = [256, 128], strides = [1, 1]} : vector<256x512xf32> to vector<256x128xf32>
    %5 = arith.maximumf %3, %4 : vector<256x128xf32>
    %6 = vector.extract_strided_slice %2 {offsets = [0, 256], sizes = [256, 128], strides = [1, 1]} : vector<256x512xf32> to vector<256x128xf32>
    %7 = arith.maximumf %5, %6 : vector<256x128xf32>
    %8 = vector.extract_strided_slice %2 {offsets = [0, 384], sizes = [256, 128], strides = [1, 1]} : vector<256x512xf32> to vector<256x128xf32>
    %9 = arith.maximumf %7, %8 : vector<256x128xf32>
    %c0_3 = arith.constant 0 : index
    %c0_4 = arith.constant 0 : index
    %10 = vector.load %arg3[%c0_3, %c0_4] : memref<1x128xf32, #tpu.memory_space<vmem>>, vector<1x128xf32>
    %11 = vector.broadcast %10 : vector<1x128xf32> to vector<256x128xf32>
    %12 = arith.addf %9, %11 : vector<256x128xf32>
    %cst_5 = arith.constant 0.000000e+00 : f32
    %13 = vector.broadcast %cst_5 : f32 to vector<256x128xf32>
    %14 = arith.maximumf %12, %13 : vector<256x128xf32>
    %15 = arith.truncf %14 : vector<256x128xf32> to vector<256x128xbf16>
    %c0_6 = arith.constant 0 : index
    %c0_7 = arith.constant 0 : index
    %16 = vector.load %arg4[%c0_6, %c0_7] : memref<256x128xbf16, #tpu.memory_space<vmem>>, vector<256x128xbf16>
    tpu.vector_store %arg4[%c0_6, %c0_7], %15 {strides = array<i32>} : memref<256x128xbf16, #tpu.memory_space<vmem>>, vector<256x128xbf16>,
    return
  }
  func.func @transform_0(%arg0: i32) -> (i32, i32) {
    %c0_i32 = arith.constant 0 : i32
    %c0_i32_0 = arith.constant 0 : i32
    return %arg0, %c0_i32 : i32, i32
  }
  func.func @transform_1(%arg0: i32) -> (i32, i32) {
    %c0_i32 = arith.constant 0 : i32
    %c0_i32_0 = arith.constant 0 : i32
    %c0_i32_1 = arith.constant 0 : i32
    return %c0_i32, %c0_i32_0 : i32, i32
  }
  func.func @transform_2(%arg0: i32) -> (i32, i32) {
    %c0_i32 = arith.constant 0 : i32
    %c0_i32_0 = arith.constant 0 : i32
    %c0_i32_1 = arith.constant 0 : i32
    return %c0_i32, %c0_i32_0 : i32, i32
  }
  func.func @transform_3(%arg0: i32) -> (i32, i32) {
    %c0_i32 = arith.constant 0 : i32
    %c0_i32_0 = arith.constant 0 : i32
    return %arg0, %c0_i32 : i32, i32
  }
}

module attributes {stable_mosaic.version = 11 : i64} {
  func.func @_conv_pool_slot_kernel(%arg0: i32, %arg1: memref<4x50x400xbf16, #tpu.memory_space<vmem>>, %arg2: memref<400x128xbf16, #tpu.memory_space<vmem>>, %arg3: memref<1x128xf32, #tpu.memory_space<vmem>>, %arg4: memref<50x128xbf16, #tpu.memory_space<vmem>>) attributes {dimension_semantics = [#tpu.dimension_semantics<parallel>], iteration_bounds = array<i64: 1>, scalar_prefetch = 0 : i64, scratch_operands = 0 : i64, tpu.core_type = #tpu.core_type<tc>, window_params = [{transform_indices = @transform_0, window_bounds = array<i64: 4, 50, 400>}, {pipeline_mode = #tpu.pipeline_mode<synchronous>, transform_indices = @transform_1, window_bounds = array<i64: 400, 128>}, {pipeline_mode = #tpu.pipeline_mode<synchronous>, transform_indices = @transform_2, window_bounds = array<i64: 1, 128>}, {transform_indices = @transform_3, window_bounds = array<i64: 50, 128>}]} {
    %c0 = arith.constant 0 : index
    %c0_0 = arith.constant 0 : index
    %0 = vector.load %arg2[%c0, %c0_0] : memref<400x128xbf16, #tpu.memory_space<vmem>>, vector<400x128xbf16>
    %c0_1 = arith.constant 0 : index
    %c0_2 = arith.constant 0 : index
    %c0_3 = arith.constant 0 : index
    %1 = vector.load %arg1[%c0_1, %c0_2, %c0_3] : memref<4x50x400xbf16, #tpu.memory_space<vmem>>, vector<1x50x400xbf16>
    %2 = vector.shape_cast %1 : vector<1x50x400xbf16> to vector<50x400xbf16>
    %cst = arith.constant dense<0.000000e+00> : vector<50x128xf32>
    %3 = tpu.matmul %2, %0, %cst {dimension_numbers = #tpu.dot_dimension_numbers<[1], [0], [0], [1], [0, 0, 1, 1], [], []>} : vector<50x400xbf16>, vector<400x128xbf16>, vector<50x128xf32> -> vector<50x128xf32>
    %c1 = arith.constant 1 : index
    %c0_4 = arith.constant 0 : index
    %c0_5 = arith.constant 0 : index
    %4 = vector.load %arg1[%c1, %c0_4, %c0_5] : memref<4x50x400xbf16, #tpu.memory_space<vmem>>, vector<1x50x400xbf16>
    %5 = vector.shape_cast %4 : vector<1x50x400xbf16> to vector<50x400xbf16>
    %cst_6 = arith.constant dense<0.000000e+00> : vector<50x128xf32>
    %6 = tpu.matmul %5, %0, %cst_6 {dimension_numbers = #tpu.dot_dimension_numbers<[1], [0], [0], [1], [0, 0, 1, 1], [], []>} : vector<50x400xbf16>, vector<400x128xbf16>, vector<50x128xf32> -> vector<50x128xf32>
    %7 = arith.maximumf %3, %6 : vector<50x128xf32>
    %c2 = arith.constant 2 : index
    %c0_7 = arith.constant 0 : index
    %c0_8 = arith.constant 0 : index
    %8 = vector.load %arg1[%c2, %c0_7, %c0_8] : memref<4x50x400xbf16, #tpu.memory_space<vmem>>, vector<1x50x400xbf16>
    %9 = vector.shape_cast %8 : vector<1x50x400xbf16> to vector<50x400xbf16>
    %cst_9 = arith.constant dense<0.000000e+00> : vector<50x128xf32>
    %10 = tpu.matmul %9, %0, %cst_9 {dimension_numbers = #tpu.dot_dimension_numbers<[1], [0], [0], [1], [0, 0, 1, 1], [], []>} : vector<50x400xbf16>, vector<400x128xbf16>, vector<50x128xf32> -> vector<50x128xf32>
    %11 = arith.maximumf %7, %10 : vector<50x128xf32>
    %c3 = arith.constant 3 : index
    %c0_10 = arith.constant 0 : index
    %c0_11 = arith.constant 0 : index
    %12 = vector.load %arg1[%c3, %c0_10, %c0_11] : memref<4x50x400xbf16, #tpu.memory_space<vmem>>, vector<1x50x400xbf16>
    %13 = vector.shape_cast %12 : vector<1x50x400xbf16> to vector<50x400xbf16>
    %cst_12 = arith.constant dense<0.000000e+00> : vector<50x128xf32>
    %14 = tpu.matmul %13, %0, %cst_12 {dimension_numbers = #tpu.dot_dimension_numbers<[1], [0], [0], [1], [0, 0, 1, 1], [], []>} : vector<50x400xbf16>, vector<400x128xbf16>, vector<50x128xf32> -> vector<50x128xf32>
    %15 = arith.maximumf %11, %14 : vector<50x128xf32>
    %c0_13 = arith.constant 0 : index
    %c0_14 = arith.constant 0 : index
    %16 = vector.load %arg3[%c0_13, %c0_14] : memref<1x128xf32, #tpu.memory_space<vmem>>, vector<1x128xf32>
    %17 = vector.broadcast %16 : vector<1x128xf32> to vector<50x128xf32>
    %18 = arith.addf %15, %17 : vector<50x128xf32>
    %cst_15 = arith.constant 0.000000e+00 : f32
    %19 = vector.broadcast %cst_15 : f32 to vector<50x128xf32>
    %20 = arith.maximumf %18, %19 : vector<50x128xf32>
    %21 = arith.truncf %20 : vector<50x128xf32> to vector<50x128xbf16>
    %c0_16 = arith.constant 0 : index
    %c0_17 = arith.constant 0 : index
    %22 = vector.load %arg4[%c0_16, %c0_17] : memref<50x128xbf16, #tpu.memory_space<vmem>>, vector<50x128xbf16>
    tpu.vector_store %arg4[%c0_16, %c0_17], %21 {strides = array<i32>} : memref<50x128xbf16, #tpu.memory_space<vmem>>, vector<50x128xbf16>,
    return
  }
  func.func @transform_0(%arg0: i32) -> (i32, i32, i32) {
    %c0_i32 = arith.constant 0 : i32
    %c0_i32_0 = arith.constant 0 : i32
    %c0_i32_1 = arith.constant 0 : i32
    return %c0_i32, %arg0, %c0_i32_0 : i32, i32, i32
  }
  func.func @transform_1(%arg0: i32) -> (i32, i32) {
    %c0_i32 = arith.constant 0 : i32
    %c0_i32_0 = arith.constant 0 : i32
    %c0_i32_1 = arith.constant 0 : i32
    return %c0_i32, %c0_i32_0 : i32, i32
  }
  func.func @transform_2(%arg0: i32) -> (i32, i32) {
    %c0_i32 = arith.constant 0 : i32
    %c0_i32_0 = arith.constant 0 : i32
    %c0_i32_1 = arith.constant 0 : i32
    return %c0_i32, %c0_i32_0 : i32, i32
  }
  func.func @transform_3(%arg0: i32) -> (i32, i32) {
    %c0_i32 = arith.constant 0 : i32
    %c0_i32_0 = arith.constant 0 : i32
    return %arg0, %c0_i32 : i32, i32
  }
}

module attributes {stable_mosaic.version = 11 : i64} {
  func.func @_matmul_bias_kernel(%arg0: i32, %arg1: memref<2x800xbf16, #tpu.memory_space<vmem>>, %arg2: memref<800x128xbf16, #tpu.memory_space<vmem>>, %arg3: memref<1x128xf32, #tpu.memory_space<vmem>>, %arg4: memref<2x128xf32, #tpu.memory_space<vmem>>) attributes {dimension_semantics = [#tpu.dimension_semantics<parallel>], iteration_bounds = array<i64: 1>, scalar_prefetch = 0 : i64, scratch_operands = 0 : i64, tpu.core_type = #tpu.core_type<tc>, window_params = [{transform_indices = @transform_0, window_bounds = array<i64: 2, 800>}, {pipeline_mode = #tpu.pipeline_mode<synchronous>, transform_indices = @transform_1, window_bounds = array<i64: 800, 128>}, {pipeline_mode = #tpu.pipeline_mode<synchronous>, transform_indices = @transform_2, window_bounds = array<i64: 1, 128>}, {transform_indices = @transform_3, window_bounds = array<i64: 2, 128>}]} {
    %c0 = arith.constant 0 : index
    %c0_0 = arith.constant 0 : index
    %0 = vector.load %arg1[%c0, %c0_0] : memref<2x800xbf16, #tpu.memory_space<vmem>>, vector<2x800xbf16>
    %c0_1 = arith.constant 0 : index
    %c0_2 = arith.constant 0 : index
    %1 = vector.load %arg2[%c0_1, %c0_2] : memref<800x128xbf16, #tpu.memory_space<vmem>>, vector<800x128xbf16>
    %cst = arith.constant dense<0.000000e+00> : vector<2x128xf32>
    %2 = tpu.matmul %0, %1, %cst {dimension_numbers = #tpu.dot_dimension_numbers<[1], [0], [0], [1], [0, 0, 1, 1], [], []>} : vector<2x800xbf16>, vector<800x128xbf16>, vector<2x128xf32> -> vector<2x128xf32>
    %c0_3 = arith.constant 0 : index
    %c0_4 = arith.constant 0 : index
    %3 = vector.load %arg3[%c0_3, %c0_4] : memref<1x128xf32, #tpu.memory_space<vmem>>, vector<1x128xf32>
    %4 = vector.broadcast %3 : vector<1x128xf32> to vector<2x128xf32>
    %5 = arith.addf %2, %4 : vector<2x128xf32>
    %c0_5 = arith.constant 0 : index
    %c0_6 = arith.constant 0 : index
    %6 = vector.load %arg4[%c0_5, %c0_6] : memref<2x128xf32, #tpu.memory_space<vmem>>, vector<2x128xf32>
    tpu.vector_store %arg4[%c0_5, %c0_6], %5 {strides = array<i32>} : memref<2x128xf32, #tpu.memory_space<vmem>>, vector<2x128xf32>,
    return
  }
  func.func @transform_0(%arg0: i32) -> (i32, i32) {
    %c0_i32 = arith.constant 0 : i32
    %c0_i32_0 = arith.constant 0 : i32
    return %arg0, %c0_i32 : i32, i32
  }
  func.func @transform_1(%arg0: i32) -> (i32, i32) {
    %c0_i32 = arith.constant 0 : i32
    %c0_i32_0 = arith.constant 0 : i32
    %c0_i32_1 = arith.constant 0 : i32
    return %c0_i32, %c0_i32_0 : i32, i32
  }
  func.func @transform_2(%arg0: i32) -> (i32, i32) {
    %c0_i32 = arith.constant 0 : i32
    %c0_i32_0 = arith.constant 0 : i32
    %c0_i32_1 = arith.constant 0 : i32
    return %c0_i32, %c0_i32_0 : i32, i32
  }
  func.func @transform_3(%arg0: i32) -> (i32, i32) {
    %c0_i32 = arith.constant 0 : i32
    %c0_i32_0 = arith.constant 0 : i32
    return %arg0, %c0_i32 : i32, i32
  }
}

</mosaic_0001>

<llo_original>
// kernel: _lambda_.3
$region0: #{_lambda_.3}
  #allocation0 [shape = 'u32[]', space=smem, size = 0x4, offset = 0x4, fixed_abs, tag = 'smem constant byte address 0x4 - core index']
  #allocation1 [shape = 'u32[144,128]{1,0:T(1,128)}', space=vmem, size = 0x12000, scoped, tag = 'internal scratch']
  %s0 = inlined_call_operand.vmem [shape: bf16[392,100], index: 0, kind: input, shape index: {}]
  %s1 = inlined_call_operand.vmem [shape: bf16[100,512], index: 1, kind: input, shape index: {}]
  %s2 = inlined_call_operand.vmem [shape: f32[1,128], index: 2, kind: input, shape index: {}]
  %s3 = inlined_call_operand.vmem [shape: bf16[392,128], index: 3, kind: output, shape index: {}]
  %s4 = sld [smem:[#allocation0]]
  $region89: #{_lambda_.3} parent=0
    _
  %s6 = ssub.s32 1, %s4
  %s7 = scalar_select 0, %s6, %s4
  $region1: #{_lambda_.3} parent=0
    #allocation2 [shape = 'u8[131072]{0}', space=vmem, size = 0x20000, scoped, tag = 'output window, operand 0']
    loop: start=0, step=1, limit=4
    $region2: #{_lambda_.3} parent=1 // loop_pre_header
      _
    $region3: #{_lambda_.3} parent=1 // loop_header
      %s9 = sphi 0, %s13
      %p10 = scmp.ge.s32.totalorder %s9, 4
      %s19 = sphi 0, %s21
      %s22 = sphi 0, %s19
      %s23 = sphi 0, %s22
      %s39 = sphi 0, %s23
      %s43 = sphi 0, %s43
      %s45 = sphi 0, %s43
      %s46 = sphi 0, %s45
      %s60 = sphi 0, %s46
      %s64 = sphi 0, %s64
      %s66 = sphi 0, %s64
      %s67 = sphi 0, %s66
      %s81 = sphi 0, %s67
      %s87 = sphi 0, %s89
      %s90 = sphi 0, %s87
      %s91 = sphi 0, %s90
      %s107 = sphi 0, %s91
    $region4: #{_lambda_.3} parent=1 // loop_header_branch
      %12 = sbr.rel (%p10) target = $region8
    $region5: #{_lambda_.3} parent=1 // loop_body
      %s14 = ssub.s32 %s9, 1
      %s15 = ssub.s32 %s9, 2
      %s16 = sadd.s32 %s9, 1
      %s17 = ssub.s32 %s9, %s16
      %p18 = scmp.eq.s32.totalorder %s17, 0
      %s20 = sadd.s32 %s19, 1
      %s21 = scalar_select %p18, %s19, %s20
      %p24 = pneg %p18
      %p25 = scmp.eq.s32.totalorder %s9, 1
      %p26 = por %p24, %p25
      %p27 = scmp.ne.s32.totalorder %s19, %s22
      %p28 = scmp.eq.s32.totalorder %s9, 0
      %p29 = por %p27, %p28
      %p30 = scmp.ne.s32.totalorder %s19, %s22
      %p31 = scmp.eq.s32.totalorder %s14, 1
      %p32 = por %p30, %p31
      %p33 = scmp.ne.s32.totalorder %s22, %s23
      %p34 = scmp.eq.s32.totalorder %s14, 0
      %p35 = por %p33, %p34
      %p36 = scmp.ne.s32.totalorder %s22, %s23
      %p37 = scmp.eq.s32.totalorder %s15, 1
      %p38 = por %p36, %p37
      %p40 = scmp.ne.s32.totalorder %s23, %s39
      %p41 = scmp.eq.s32.totalorder %s15, 0
      %p42 = por %p40, %p41
      %s44 = sadd.s32 %s43, 1
      %p47 = scmp.eq.s32.totalorder %s9, 1
      %p48 = scmp.ne.s32.totalorder %s43, %s45
      %p49 = scmp.eq.s32.totalorder %s9, 0
      %p50 = por %p48, %p49
      %p51 = scmp.ne.s32.totalorder %s43, %s45
      %p52 = scmp.eq.s32.totalorder %s14, 1
      %p53 = por %p51, %p52
      %p54 = scmp.ne.s32.totalorder %s45, %s46
      %p55 = scmp.eq.s32.totalorder %s14, 0
      %p56 = por %p54, %p55
      %p57 = scmp.ne.s32.totalorder %s45, %s46
      %p58 = scmp.eq.s32.totalorder %s15, 1
      %p59 = por %p57, %p58
      %p61 = scmp.ne.s32.totalorder %s46, %s60
      %p62 = scmp.eq.s32.totalorder %s15, 0
      %p63 = por %p61, %p62
      %s65 = sadd.s32 %s64, 1
      %p68 = scmp.eq.s32.totalorder %s9, 1
      %p69 = scmp.ne.s32.totalorder %s64, %s66
      %p70 = scmp.eq.s32.totalorder %s9, 0
      %p71 = por %p69, %p70
      %p72 = scmp.ne.s32.totalorder %s64, %s66
      %p73 = scmp.eq.s32.totalorder %s14, 1
      %p74 = por %p72, %p73
      %p75 = scmp.ne.s32.totalorder %s66, %s67
      %p76 = scmp.eq.s32.totalorder %s14, 0
      %p77 = por %p75, %p76
      %p78 = scmp.ne.s32.totalorder %s66, %s67
      %p79 = scmp.eq.s32.totalorder %s15, 1
      %p80 = por %p78, %p79
      %p82 = scmp.ne.s32.totalorder %s67, %s81
      %p83 = scmp.eq.s32.totalorder %s15, 0
      %p84 = por %p82, %p83
      %s85 = ssub.s32 %s9, %s16
      %p86 = scmp.eq.s32.totalorder %s85, 0
      %s88 = sadd.s32 %s87, 1
      %s89 = scalar_select %p86, %s87, %s88
      %p92 = pneg %p86
      %p93 = scmp.eq.s32.totalorder %s9, 1
      %p94 = por %p92, %p93
      %p95 = scmp.ne.s32.totalorder %s87, %s90
      %p96 = scmp.eq.s32.totalorder %s9, 0
      %p97 = por %p95, %p96
      %p98 = scmp.ne.s32.totalorder %s87, %s90
      %p99 = scmp.eq.s32.totalorder %s14, 1
      %p100 = por %p98, %p99
      %p101 = scmp.ne.s32.totalorder %s90, %s91
      %p102 = scmp.eq.s32.totalorder %s14, 0
      %p103 = por %p101, %p102
      %p104 = scmp.ne.s32.totalorder %s90, %s91
      %p105 = scmp.eq.s32.totalorder %s15, 1
      %p106 = por %p104, %p105
      %p108 = scmp.ne.s32.totalorder %s91, %s107
      %p109 = scmp.eq.s32.totalorder %s15, 0
      %p110 = por %p108, %p109
      %p111 = scmp.le.s32.totalorder 1, %s9
      %p112 = scmp.lt.s32.totalorder %s9, 3
      %p113 = pnand %p111, %p112
      %p114 = pneg %p113
      // Predicated region
      $region9: #{_lambda_.3} parent=5 // pred_check
        _
      $region10: #{_lambda_.3} parent=5 // pred_check_branch
        %116 = sbr.rel (%p113) target = $region12
      $region11: #{_lambda_.3} parent=5 // pred_region
        %s117 = ssub.s32 %s9, 1
        // Predicated region
        $region13: #{_lambda_.3} parent=11 // pred_check
          %p118 = pneg %p56
        $region14: #{_lambda_.3} parent=11 // pred_check_branch
          %120 = sbr.rel (%p118) target = $region16
        $region15: #{_lambda_.3} parent=11 // pred_region
          _
        $region16: #{_lambda_.3} parent=11 // pred_fallthru
          _
        // Predicated region
        $region17: #{_lambda_.3} parent=11 // pred_check
          %p121 = pneg %p77
        $region18: #{_lambda_.3} parent=11 // pred_check_branch
          %123 = sbr.rel (%p121) target = $region20
        $region19: #{_lambda_.3} parent=11 // pred_region
          _
        $region20: #{_lambda_.3} parent=11 // pred_fallthru
          _
      $region12: #{_lambda_.3} parent=5 // pred_fallthru
        _
      %p124 = scmp.lt.s32.totalorder %s9, 2
      // Predicated region
      $region21: #{_lambda_.3} parent=5 // pred_check
        %p125 = pneg %p124
      $region22: #{_lambda_.3} parent=5 // pred_check_branch
        %127 = sbr.rel (%p125) target = $region24
      $region23: #{_lambda_.3} parent=5 // pred_region
        // Predicated region
        $region25: #{_lambda_.3} parent=23 // pred_check
          %p128 = pneg %p29
        $region26: #{_lambda_.3} parent=23 // pred_check_branch
          %130 = sbr.rel (%p128) target = $region28
        $region27: #{_lambda_.3} parent=23 // pred_region
          %s131 = smul.u32 32, %s9
          %s132 = ssub.s32 49, %s131
          %p133 = scmp.lt.s32.totalorder %s132, 32
          %s134 = scalar_select %p133, %s132, 32
          %s135 = smul.u32 64, %s134
          %p136 = scmp.lt.s32.totalorder %s131, 48
          %s137 = scalar_select %p136, %s131, 48
          %s138 = smul.addr %s137, 4
          %s139 = scalar_lea.vmem %s0, %s138
          %s140 = smul.u32 32, %s9
          %s141 = ssub.s32 49, %s140
          %p142 = scmp.lt.s32.totalorder %s141, 32
          %s143 = scalar_select %p142, %s141, 32
          %s144 = smul.u32 64, %s143
        $region28: #{_lambda_.3} parent=23 // pred_fallthru
          _
      $region24: #{_lambda_.3} parent=5 // pred_fallthru
        _
      %p145 = scmp.le.s32.totalorder 1, %s9
      %p146 = scmp.lt.s32.totalorder %s9, 3
      %p147 = pnand %p145, %p146
      %p148 = pneg %p147
      // Predicated region
      $region29: #{_lambda_.3} parent=5 // pred_check
        _
      $region30: #{_lambda_.3} parent=5 // pred_check_branch
        %150 = sbr.rel (%p147) target = $region32
      $region31: #{_lambda_.3} parent=5 // pred_region
        %s151 = ssub.s32 %s9, 1
        %s152 = smul.u32 32, %s14
        %s153 = ssub.s32 49, %s152
        %p154 = scmp.lt.s32.totalorder %s153, 32
        %s155 = scalar_select %p154, %s153, 32
        %s156 = smul.u32 64, %s155
        %p157 = scmp.lt.s32.totalorder %s152, 48
        %s158 = scalar_select %p157, %s152, 48
        %s159 = smul.addr %s158, 4
        %s160 = scalar_lea.vmem %s0, %s159
        %p161 = pneg %p35
        %p162 = pneg %p32
        %p163 = pneg %p56
        %p164 = pneg %p53
        %p165 = pneg %p77
        %p166 = pneg %p74
        %p167 = pneg %p103
        %p168 = pneg %p100
        %s169 = sand.u32 %s90, 1
        %s170 = sand.u32 %s90, 1
        %s171 = smul.addr %s170, 128
        %s172 = scalar_lea.vmem [#allocation2], %s171
        %s173 = smul.u32 32, %s14
        %s174 = ssub.s32 49, %s173
        %p175 = scmp.lt.s32.totalorder %s174, 32
        %s176 = scalar_select %p175, %s174, 32
        %s177 = smul.u32 64, %s176
        %p178 = scmp.lt.s32.totalorder %s173, 48
        %s179 = scalar_select %p178, %s173, 48
        %s180 = smul.addr %s179, 4
        %s181 = scalar_lea.vmem %s0, %s180
        %s182 = smul.u32 32, %s14
        %s183 = ssub.s32 49, %s182
        %p184 = scmp.lt.s32.totalorder %s183, 32
        %s185 = scalar_select %p184, %s183, 32
        %s186 = smul.u32 64, %s185
        %s187 = smul.u32 32, %s14
        %s188 = ssub.s32 49, %s187
        %p189 = scmp.lt.s32.totalorder %s188, 32
        %s190 = scalar_select %p189, %s188, 32
        %s191 = smul.u32 64, %s190
        %v193 = vld [vmem:[%s181] sm:$0xf]
        %v194 = vld [vmem:[%s181 + $0x4] sm:$0xf]
        %v195 = vld [vmem:[%s181 + $0x8] sm:$0xf]
        %v196 = vld [vmem:[%s181 + $0xc] sm:$0xf]
        %v197 = vld [vmem:[%s181 + $0x10] sm:$0xf]
        %v198 = vld [vmem:[%s181 + $0x14] sm:$0xf]
        %v199 = vld [vmem:[%s181 + $0x18] sm:$0xf]
        %v200 = vld [vmem:[%s181 + $0x1c] sm:$0xf]
        %v201 = vld [vmem:[%s181 + $0x20] sm:$0xf]
        %v202 = vld [vmem:[%s181 + $0x24] sm:$0xf]
        %v203 = vld [vmem:[%s181 + $0x28] sm:$0xf]
        %v204 = vld [vmem:[%s181 + $0x2c] sm:$0xf]
        %v205 = vld [vmem:[%s181 + $0x30] sm:$0xf]
        %v206 = vld [vmem:[%s181 + $0x34] sm:$0xf]
        %v207 = vld [vmem:[%s181 + $0x38] sm:$0xf]
        %v208 = vld [vmem:[%s181 + $0x3c] sm:$0xf]
        %v209 = vld [vmem:[%s181 + $0x40] sm:$0xf]
        %v210 = vld [vmem:[%s181 + $0x44] sm:$0xf]
        %v211 = vld [vmem:[%s181 + $0x48] sm:$0xf]
        %v212 = vld [vmem:[%s181 + $0x4c] sm:$0xf]
        %v213 = vld [vmem:[%s181 + $0x50] sm:$0xf]
        %v214 = vld [vmem:[%s181 + $0x54] sm:$0xf]
        %v215 = vld [vmem:[%s181 + $0x58] sm:$0xf]
        %v216 = vld [vmem:[%s181 + $0x5c] sm:$0xf]
        %v217 = vld [vmem:[%s181 + $0x60] sm:$0xf]
        %v218 = vld [vmem:[%s181 + $0x64] sm:$0xf]
        %v219 = vld [vmem:[%s181 + $0x68] sm:$0xf]
        %v220 = vld [vmem:[%s181 + $0x6c] sm:$0xf]
        %v221 = vld [vmem:[%s181 + $0x70] sm:$0xf]
        %v222 = vld [vmem:[%s181 + $0x74] sm:$0xf]
        %v223 = vld [vmem:[%s181 + $0x78] sm:$0xf]
        %v224 = vld [vmem:[%s181 + $0x7c] sm:$0xf]
        %v225 = vld [vmem:[%s1] sm:$0xff]
        %v226 = vld [vmem:[%s1 + $0x8] sm:$0xff]
        %v227 = vld [vmem:[%s1 + $0x10] sm:$0xff]
        %v228 = vld [vmem:[%s1 + $0x18] sm:$0xff]
        %v229 = vld [vmem:[%s1 + $0x20] sm:$0xff]
        %v230 = vld [vmem:[%s1 + $0x28] sm:$0xff]
        %v231 = vld [vmem:[%s1 + $0x30] sm:$0xff]
        %v232 = vld [vmem:[%s1 + $0x38] sm:$0xff]
        %v233 = vld [vmem:[%s1 + $0x40] sm:$0xff]
        %v234 = vld [vmem:[%s1 + $0x48] sm:$0xff]
        %v235 = vld [vmem:[%s1 + $0x50] sm:$0xff]
        %v236 = vld [vmem:[%s1 + $0x58] sm:$0xff]
        %v237 = vld [vmem:[%s1 + $0x60] sm:$0xff]
        %v238 = vld [vmem:[%s1 + $0x68] sm:$0xff]
        %v239 = vld [vmem:[%s1 + $0x70] sm:$0xff]
        %v240 = vld [vmem:[%s1 + $0x78] sm:$0xff]
        %v241 = vld [vmem:[%s1 + $0x80] sm:$0xff]
        %v242 = vld [vmem:[%s1 + $0x88] sm:$0xff]
        %v243 = vld [vmem:[%s1 + $0x90] sm:$0xff]
        %v244 = vld [vmem:[%s1 + $0x98] sm:$0xff]
        %v245 = vld [vmem:[%s1 + $0xa0] sm:$0xff]
        %v246 = vld [vmem:[%s1 + $0xa8] sm:$0xff]
        %v247 = vld [vmem:[%s1 + $0xb0] sm:$0xff]
        %v248 = vld [vmem:[%s1 + $0xb8] sm:$0xff]
        %v249 = vld [vmem:[%s1 + $0xc0] sm:$0x33]
        %v250 = vld [vmem:[%s1 + $0xc8] sm:$0x33]
        %v283 = vunpack.c.l.b16 %v193
        %v284 = vunpack.c.l.b16 %v194
        %v285 = vunpack.c.l.b16 %v195
        %v286 = vunpack.c.l.b16 %v196
        %v287 = vunpack.c.l.b16 %v197
        %v288 = vunpack.c.l.b16 %v198
        %v289 = vunpack.c.l.b16 %v199
        %v290 = vunpack.c.l.b16 %v200
        %v291 = vunpack.c.l.b16 %v201
        %v292 = vunpack.c.l.b16 %v202
        %v293 = vunpack.c.l.b16 %v203
        %v294 = vunpack.c.l.b16 %v204
        %v295 = vunpack.c.l.b16 %v205
        %v296 = vunpack.c.l.b16 %v206
        %v297 = vunpack.c.l.b16 %v207
        %v298 = vunpack.c.l.b16 %v208
        %v299 = vunpack.c.l.b16 %v209
        %v300 = vunpack.c.l.b16 %v210
        %v301 = vunpack.c.l.b16 %v211
        %v302 = vunpack.c.l.b16 %v212
        %v303 = vunpack.c.l.b16 %v213
        %v304 = vunpack.c.l.b16 %v214
        %v305 = vunpack.c.l.b16 %v215
        %v306 = vunpack.c.l.b16 %v216
        %v307 = vunpack.c.l.b16 %v217
        %v308 = vunpack.c.l.b16 %v218
        %v309 = vunpack.c.l.b16 %v219
        %v310 = vunpack.c.l.b16 %v220
        %v311 = vunpack.c.l.b16 %v221
        %v312 = vunpack.c.l.b16 %v222
        %v313 = vunpack.c.l.b16 %v223
        %v314 = vunpack.c.l.b16 %v224
        %v315 = vpack.c.b16 %v284, %v283
        %v316 = vpack.c.b16 %v286, %v285
        %v317 = vpack.c.b16 %v288, %v287
        %v318 = vpack.c.b16 %v290, %v289
        %v319 = vpack.c.b16 %v292, %v291
        %v320 = vpack.c.b16 %v294, %v293
        %v321 = vpack.c.b16 %v296, %v295
        %v322 = vpack.c.b16 %v298, %v297
        %v323 = vpack.c.b16 %v300, %v299
        %v324 = vpack.c.b16 %v302, %v301
        %v325 = vpack.c.b16 %v304, %v303
        %v326 = vpack.c.b16 %v306, %v305
        %v327 = vpack.c.b16 %v308, %v307
        %v328 = vpack.c.b16 %v310, %v309
        %v329 = vpack.c.b16 %v312, %v311
        %v330 = vpack.c.b16 %v314, %v313
        %v357 = vunpack.c.l.b16 %v225
        %v358 = vunpack.c.h.b16 %v225
        %v359 = vunpack.c.l.b16 %v226
        %v360 = vunpack.c.h.b16 %v226
        %v361 = vunpack.c.l.b16 %v227
        %v362 = vunpack.c.h.b16 %v227
        %v363 = vunpack.c.l.b16 %v228
        %v364 = vunpack.c.h.b16 %v228
        %v365 = vunpack.c.l.b16 %v229
        %v366 = vunpack.c.h.b16 %v229
        %v367 = vunpack.c.l.b16 %v230
        %v368 = vunpack.c.h.b16 %v230
        %v369 = vunpack.c.l.b16 %v231
        %v370 = vunpack.c.h.b16 %v231
        %v371 = vunpack.c.l.b16 %v232
        %v372 = vunpack.c.h.b16 %v232
        %v373 = vunpack.c.l.b16 %v233
        %v374 = vunpack.c.h.b16 %v233
        %v375 = vunpack.c.l.b16 %v234
        %v376 = vunpack.c.h.b16 %v234
        %v377 = vunpack.c.l.b16 %v235
        %v378 = vunpack.c.h.b16 %v235
        %v379 = vunpack.c.l.b16 %v236
        %v380 = vunpack.c.h.b16 %v236
        %v381 = vunpack.c.l.b16 %v237
        %v382 = vunpack.c.h.b16 %v237
        %v383 = vunpack.c.l.b16 %v238
        %v384 = vunpack.c.h.b16 %v238
        %v385 = vunpack.c.l.b16 %v239
        %v386 = vunpack.c.h.b16 %v239
        %v387 = vunpack.c.l.b16 %v240
        %v388 = vunpack.c.h.b16 %v240
        %v389 = vunpack.c.l.b16 %v241
        %v390 = vunpack.c.h.b16 %v241
        %v391 = vunpack.c.l.b16 %v242
        %v392 = vunpack.c.h.b16 %v242
        %v393 = vunpack.c.l.b16 %v243
        %v394 = vunpack.c.h.b16 %v243
        %v395 = vunpack.c.l.b16 %v244
        %v396 = vunpack.c.h.b16 %v244
        %v397 = vunpack.c.l.b16 %v245
        %v398 = vunpack.c.h.b16 %v245
        %v399 = vunpack.c.l.b16 %v246
        %v400 = vunpack.c.h.b16 %v246
        %v401 = vunpack.c.l.b16 %v247
        %v402 = vunpack.c.h.b16 %v247
        %v403 = vunpack.c.l.b16 %v248
        %v404 = vunpack.c.h.b16 %v248
        %v405 = vunpack.c.l.b16 %v249
        %v406 = vunpack.c.h.b16 %v249
        %v407 = vunpack.c.l.b16 %v250
        %v408 = vunpack.c.h.b16 %v250
        %v409 = vpack.c.b16 %v361, %v357
        %v410 = vpack.c.b16 %v362, %v358
        %v411 = vpack.c.b16 %v363, %v359
        %v412 = vpack.c.b16 %v364, %v360
        %v413 = vpack.c.b16 %v369, %v365
        %v414 = vpack.c.b16 %v370, %v366
        %v415 = vpack.c.b16 %v371, %v367
        %v416 = vpack.c.b16 %v372, %v368
        %v417 = vpack.c.b16 %v377, %v373
        %v418 = vpack.c.b16 %v378, %v374
        %v419 = vpack.c.b16 %v379, %v375
        %v420 = vpack.c.b16 %v380, %v376
        %v421 = vpack.c.b16 %v385, %v381
        %v422 = vpack.c.b16 %v386, %v382
        %v423 = vpack.c.b16 %v387, %v383
        %v424 = vpack.c.b16 %v388, %v384
        %v425 = vpack.c.b16 %v393, %v389
        %v426 = vpack.c.b16 %v394, %v390
        %v427 = vpack.c.b16 %v395, %v391
        %v428 = vpack.c.b16 %v396, %v392
        %v429 = vpack.c.b16 %v401, %v397
        %v430 = vpack.c.b16 %v402, %v398
        %v431 = vpack.c.b16 %v403, %v399
        %v432 = vpack.c.b16 %v404, %v400
        %v433 = vpack.c.b16 %v405, %v405
        %v434 = vpack.c.b16 %v406, %v406
        %v435 = vpack.c.b16 %v407, %v407
        %v436 = vpack.c.b16 %v408, %v408
        %vm461 = vcmask 818176
        %v463 = vsel %vm461, %v315, 0
        %v466 = vsel %vm461, %v316, 0
        %v469 = vsel %vm461, %v317, 0
        %v472 = vsel %vm461, %v318, 0
        %v475 = vsel %vm461, %v319, 0
        %v478 = vsel %vm461, %v320, 0
        %v481 = vsel %vm461, %v321, 0
        %v484 = vsel %vm461, %v322, 0
        %v487 = vsel %vm461, %v323, 0
        %v490 = vsel %vm461, %v324, 0
        %v493 = vsel %vm461, %v325, 0
        %v496 = vsel %vm461, %v326, 0
        %v499 = vsel %vm461, %v327, 0
        %v502 = vsel %vm461, %v328, 0
        %v505 = vsel %vm461, %v329, 0
        %v508 = vsel %vm461, %v330, 0
        %vm510 = vcmask 1041408
        %v512 = vsel %vm510, %v433, 0
        %v515 = vsel %vm510, %v434, 0
        %v518 = vsel %vm510, %v435, 0
        %v521 = vsel %vm510, %v436, 0
        %523 = vmatprep.subr.bf16.mxu0 %v410
        %524 = vmatpush1.bf16.msra.mxu0 %v409
        %525 = vmatprep.subr.bf16.mxu0 %v414
        %526 = vmatpush1.bf16.msra.mxu0 %v413
        %527 = vmatprep.subr.bf16.mxu0 %v418
        %528 = vmatpush1.bf16.msra.mxu0 %v417
        %529 = vmatprep.subr.bf16.mxu0 %v422
        %530 = vmatpush1.bf16.msra.mxu0 %v421
        %531 = vmatprep.subr.bf16.mxu0 %v426
        %532 = vmatpush1.bf16.msra.mxu0 %v425
        %533 = vmatprep.subr.bf16.mxu0 %v430
        %534 = vmatpush1.bf16.msra.mxu0 %v429
        %535 = vmatprep.subr.bf16.mxu0 %v515
        %536 = vmatpush1.bf16.msra.mxu0 %v512
        %537 = vmatprep.subr.bf16.mxu0 0
        %538 = vmatpush1.bf16.msra.mxu0 0
        %539 = vmatprep.subr.bf16.mxu0 0
        %540 = vmatpush1.bf16.msra.mxu0 0
        %541 = vmatprep.subr.bf16.mxu0 0
        %542 = vmatpush1.bf16.msra.mxu0 0
        %543 = vmatprep.subr.bf16.mxu0 0
        %544 = vmatpush1.bf16.msra.mxu0 0
        %545 = vmatprep.subr.bf16.mxu0 0
        %546 = vmatpush1.bf16.msra.mxu0 0
        %547 = vmatprep.subr.bf16.mxu0 0
        %548 = vmatpush1.bf16.msra.mxu0 0
        %549 = vmatprep.subr.bf16.mxu0 0
        %550 = vmatpush1.bf16.msra.mxu0 0
        %551 = vmatprep.subr.bf16.mxu0 0
        %552 = vmatpush1.bf16.msra.mxu0 0
        %553 = vmatprep.subr.bf16.mxu0 0
        %554 = vmatpush1.bf16.msra.mxu0 0
        %555 = vmatprep.mubr.bf16.mxu0 0
        %556 = vmatmul.mubr.bf16.gmra.mrb[0].mxu0 %v463
        %v557 = vpop.f32.mrb[0].mxu0
        %v558 = vadd.f32 0.0, %v557
        %v559 = vpop.f32.mrb[0].mxu0
        %v560 = vadd.f32 0.0, %v559
        %v561 = vpop.f32.mrb[0].mxu0
        %v562 = vadd.f32 0.0, %v561
        %v563 = vpop.f32.mrb[0].mxu0
        %v564 = vadd.f32 0.0, %v563
        %565 = vmatprep.mubr.bf16.mxu0 0
        %566 = vmatmul.mubr.bf16.gmra.mrb[0].mxu0 %v466
        %v567 = vpop.f32.mrb[0].mxu0
        %v568 = vadd.f32 0.0, %v567
        %v569 = vpop.f32.mrb[0].mxu0
        %v570 = vadd.f32 0.0, %v569
        %v571 = vpop.f32.mrb[0].mxu0
        %v572 = vadd.f32 0.0, %v571
        %v573 = vpop.f32.mrb[0].mxu0
        %v574 = vadd.f32 0.0, %v573
        %575 = vmatprep.mubr.bf16.mxu0 0
        %576 = vmatmul.mubr.bf16.gmra.mrb[0].mxu0 %v469
        %v577 = vpop.f32.mrb[0].mxu0
        %v578 = vadd.f32 0.0, %v577
        %v579 = vpop.f32.mrb[0].mxu0
        %v580 = vadd.f32 0.0, %v579
        %v581 = vpop.f32.mrb[0].mxu0
        %v582 = vadd.f32 0.0, %v581
        %v583 = vpop.f32.mrb[0].mxu0
        %v584 = vadd.f32 0.0, %v583
        %585 = vmatprep.mubr.bf16.mxu0 0
        %586 = vmatmul.mubr.bf16.gmra.mrb[0].mxu0 %v472
        %v587 = vpop.f32.mrb[0].mxu0
        %v588 = vadd.f32 0.0, %v587
        %v589 = vpop.f32.mrb[0].mxu0
        %v590 = vadd.f32 0.0, %v589
        %v591 = vpop.f32.mrb[0].mxu0
        %v592 = vadd.f32 0.0, %v591
        %v593 = vpop.f32.mrb[0].mxu0
        %v594 = vadd.f32 0.0, %v593
        %595 = vmatprep.mubr.bf16.mxu0 0
        %596 = vmatmul.mubr.bf16.gmra.mrb[0].mxu0 %v475
        %v597 = vpop.f32.mrb[0].mxu0
        %v598 = vadd.f32 0.0, %v597
        %v599 = vpop.f32.mrb[0].mxu0
        %v600 = vadd.f32 0.0, %v599
        %v601 = vpop.f32.mrb[0].mxu0
        %v602 = vadd.f32 0.0, %v601
        %v603 = vpop.f32.mrb[0].mxu0
        %v604 = vadd.f32 0.0, %v603
        %605 = vmatprep.mubr.bf16.mxu0 0
        %606 = vmatmul.mubr.bf16.gmra.mrb[0].mxu0 %v478
        %v607 = vpop.f32.mrb[0].mxu0
        %v608 = vadd.f32 0.0, %v607
        %v609 = vpop.f32.mrb[0].mxu0
        %v610 = vadd.f32 0.0, %v609
        %v611 = vpop.f32.mrb[0].mxu0
        %v612 = vadd.f32 0.0, %v611
        %v613 = vpop.f32.mrb[0].mxu0
        %v614 = vadd.f32 0.0, %v613
        %615 = vmatprep.mubr.bf16.mxu0 0
        %616 = vmatmul.mubr.bf16.gmra.mrb[0].mxu0 %v481
        %v617 = vpop.f32.mrb[0].mxu0
        %v618 = vadd.f32 0.0, %v617
        %v619 = vpop.f32.mrb[0].mxu0
        %v620 = vadd.f32 0.0, %v619
        %v621 = vpop.f32.mrb[0].mxu0
        %v622 = vadd.f32 0.0, %v621
        %v623 = vpop.f32.mrb[0].mxu0
        %v624 = vadd.f32 0.0, %v623
        %625 = vmatprep.mubr.bf16.mxu0 0
        %626 = vmatmul.mubr.bf16.gmra.mrb[0].mxu0 %v484
        %v627 = vpop.f32.mrb[0].mxu0
        %v628 = vadd.f32 0.0, %v627
        %v629 = vpop.f32.mrb[0].mxu0
        %v630 = vadd.f32 0.0, %v629
        %v631 = vpop.f32.mrb[0].mxu0
        %v632 = vadd.f32 0.0, %v631
        %v633 = vpop.f32.mrb[0].mxu0
        %v634 = vadd.f32 0.0, %v633
        %635 = vmatprep.mubr.bf16.mxu0 0
        %636 = vmatmul.mubr.bf16.gmra.mrb[0].mxu0 %v487
        %v637 = vpop.f32.mrb[0].mxu0
        %v638 = vadd.f32 0.0, %v637
        %v639 = vpop.f32.mrb[0].mxu0
        %v640 = vadd.f32 0.0, %v639
        %v641 = vpop.f32.mrb[0].mxu0
        %v642 = vadd.f32 0.0, %v641
        %v643 = vpop.f32.mrb[0].mxu0
        %v644 = vadd.f32 0.0, %v643
        %645 = vmatprep.mubr.bf16.mxu0 0
        %646 = vmatmul.mubr.bf16.gmra.mrb[0].mxu0 %v490
        %v647 = vpop.f32.mrb[0].mxu0
        %v648 = vadd.f32 0.0, %v647
        %v649 = vpop.f32.mrb[0].mxu0
        %v650 = vadd.f32 0.0, %v649
        %v651 = vpop.f32.mrb[0].mxu0
        %v652 = vadd.f32 0.0, %v651
        %v653 = vpop.f32.mrb[0].mxu0
        %v654 = vadd.f32 0.0, %v653
        %655 = vmatprep.mubr.bf16.mxu0 0
        %656 = vmatmul.mubr.bf16.gmra.mrb[0].mxu0 %v493
        %v657 = vpop.f32.mrb[0].mxu0
        %v658 = vadd.f32 0.0, %v657
        %v659 = vpop.f32.mrb[0].mxu0
        %v660 = vadd.f32 0.0, %v659
        %v661 = vpop.f32.mrb[0].mxu0
        %v662 = vadd.f32 0.0, %v661
        %v663 = vpop.f32.mrb[0].mxu0
        %v664 = vadd.f32 0.0, %v663
        %665 = vmatprep.mubr.bf16.mxu0 0
        %666 = vmatmul.mubr.bf16.gmra.mrb[0].mxu0 %v496
        %v667 = vpop.f32.mrb[0].mxu0
        %v668 = vadd.f32 0.0, %v667
        %v669 = vpop.f32.mrb[0].mxu0
        %v670 = vadd.f32 0.0, %v669
        %v671 = vpop.f32.mrb[0].mxu0
        %v672 = vadd.f32 0.0, %v671
        %v673 = vpop.f32.mrb[0].mxu0
        %v674 = vadd.f32 0.0, %v673
        %675 = vmatprep.mubr.bf16.mxu0 0
        %676 = vmatmul.mubr.bf16.gmra.mrb[0].mxu0 %v499
        %v677 = vpop.f32.mrb[0].mxu0
        %v678 = vadd.f32 0.0, %v677
        %v679 = vpop.f32.mrb[0].mxu0
        %v680 = vadd.f32 0.0, %v679
        %v681 = vpop.f32.mrb[0].mxu0
        %v682 = vadd.f32 0.0, %v681
        %v683 = vpop.f32.mrb[0].mxu0
        %v684 = vadd.f32 0.0, %v683
        %685 = vmatprep.mubr.bf16.mxu0 0
        %686 = vmatmul.mubr.bf16.gmra.mrb[0].mxu0 %v502
        %v687 = vpop.f32.mrb[0].mxu0
        %v688 = vadd.f32 0.0, %v687
        %v689 = vpop.f32.mrb[0].mxu0
        %v690 = vadd.f32 0.0, %v689
        %v691 = vpop.f32.mrb[0].mxu0
        %v692 = vadd.f32 0.0, %v691
        %v693 = vpop.f32.mrb[0].mxu0
        %v694 = vadd.f32 0.0, %v693
        %695 = vmatprep.mubr.bf16.mxu0 0
        %696 = vmatmul.mubr.bf16.gmra.mrb[0].mxu0 %v505
        %v697 = vpop.f32.mrb[0].mxu0
        %v698 = vadd.f32 0.0, %v697
        %v699 = vpop.f32.mrb[0].mxu0
        %v700 = vadd.f32 0.0, %v699
        %v701 = vpop.f32.mrb[0].mxu0
        %v702 = vadd.f32 0.0, %v701
        %v703 = vpop.f32.mrb[0].mxu0
        %v704 = vadd.f32 0.0, %v703
        %705 = vmatprep.mubr.bf16.mxu0 0
        %706 = vmatmul.mubr.bf16.gmra.mrb[0].mxu0 %v508
        %v707 = vpop.f32.mrb[0].mxu0
        %v708 = vadd.f32 0.0, %v707
        %v709 = vpop.f32.mrb[0].mxu0
        %v710 = vadd.f32 0.0, %v709
        %v711 = vpop.f32.mrb[0].mxu0
        %v712 = vadd.f32 0.0, %v711
        %v713 = vpop.f32.mrb[0].mxu0
        %v714 = vadd.f32 0.0, %v713
        %715 = vdwg.mxu0
        %716 = vmatprep.subr.bf16.mxu0 %v412
        %717 = vmatpush1.bf16.msra.mxu0 %v411
        %718 = vmatprep.subr.bf16.mxu0 %v416
        %719 = vmatpush1.bf16.msra.mxu0 %v415
        %720 = vmatprep.subr.bf16.mxu0 %v420
        %721 = vmatpush1.bf16.msra.mxu0 %v419
        %722 = vmatprep.subr.bf16.mxu0 %v424
        %723 = vmatpush1.bf16.msra.mxu0 %v423
        %724 = vmatprep.subr.bf16.mxu0 %v428
        %725 = vmatpush1.bf16.msra.mxu0 %v427
        %726 = vmatprep.subr.bf16.mxu0 %v432
        %727 = vmatpush1.bf16.msra.mxu0 %v431
        %728 = vmatprep.subr.bf16.mxu0 %v521
        %729 = vmatpush1.bf16.msra.mxu0 %v518
        %730 = vmatprep.subr.bf16.mxu0 0
        %731 = vmatpush1.bf16.msra.mxu0 0
        %732 = vmatprep.subr.bf16.mxu0 0
        %733 = vmatpush1.bf16.msra.mxu0 0
        %734 = vmatprep.subr.bf16.mxu0 0
        %735 = vmatpush1.bf16.msra.mxu0 0
        %736 = vmatprep.subr.bf16.mxu0 0
        %737 = vmatpush1.bf16.msra.mxu0 0
        %738 = vmatprep.subr.bf16.mxu0 0
        %739 = vmatpush1.bf16.msra.mxu0 0
        %740 = vmatprep.subr.bf16.mxu0 0
        %741 = vmatpush1.bf16.msra.mxu0 0
        %742 = vmatprep.subr.bf16.mxu0 0
        %743 = vmatpush1.bf16.msra.mxu0 0
        %744 = vmatprep.subr.bf16.mxu0 0
        %745 = vmatpush1.bf16.msra.mxu0 0
        %746 = vmatprep.subr.bf16.mxu0 0
        %747 = vmatpush1.bf16.msra.mxu0 0
        %748 = vmatprep.mubr.bf16.mxu0 0
        %749 = vmatmul.mubr.bf16.gmra.mrb[0].mxu0 %v463
        %v750 = vpop.f32.mrb[0].mxu0
        %v751 = vadd.f32 0.0, %v750
        %v752 = vpop.f32.mrb[0].mxu0
        %v753 = vadd.f32 0.0, %v752
        %v754 = vpop.f32.mrb[0].mxu0
        %v755 = vadd.f32 0.0, %v754
        %v756 = vpop.f32.mrb[0].mxu0
        %v757 = vadd.f32 0.0, %v756
        %758 = vmatprep.mubr.bf16.mxu0 0
        %759 = vmatmul.mubr.bf16.gmra.mrb[0].mxu0 %v466
        %v760 = vpop.f32.mrb[0].mxu0
        %v761 = vadd.f32 0.0, %v760
        %v762 = vpop.f32.mrb[0].mxu0
        %v763 = vadd.f32 0.0, %v762
        %v764 = vpop.f32.mrb[0].mxu0
        %v765 = vadd.f32 0.0, %v764
        %v766 = vpop.f32.mrb[0].mxu0
        %v767 = vadd.f32 0.0, %v766
        %768 = vmatprep.mubr.bf16.mxu0 0
        %769 = vmatmul.mubr.bf16.gmra.mrb[0].mxu0 %v469
        %v770 = vpop.f32.mrb[0].mxu0
        %v771 = vadd.f32 0.0, %v770
        %v772 = vpop.f32.mrb[0].mxu0
        %v773 = vadd.f32 0.0, %v772
        %v774 = vpop.f32.mrb[0].mxu0
        %v775 = vadd.f32 0.0, %v774
        %v776 = vpop.f32.mrb[0].mxu0
        %v777 = vadd.f32 0.0, %v776
        %778 = vmatprep.mubr.bf16.mxu0 0
        %779 = vmatmul.mubr.bf16.gmra.mrb[0].mxu0 %v472
        %v780 = vpop.f32.mrb[0].mxu0
        %v781 = vadd.f32 0.0, %v780
        %v782 = vpop.f32.mrb[0].mxu0
        %v783 = vadd.f32 0.0, %v782
        %v784 = vpop.f32.mrb[0].mxu0
        %v785 = vadd.f32 0.0, %v784
        %v786 = vpop.f32.mrb[0].mxu0
        %v787 = vadd.f32 0.0, %v786
        %788 = vmatprep.mubr.bf16.mxu0 0
        %789 = vmatmul.mubr.bf16.gmra.mrb[0].mxu0 %v475
        %v790 = vpop.f32.mrb[0].mxu0
        %v791 = vadd.f32 0.0, %v790
        %v792 = vpop.f32.mrb[0].mxu0
        %v793 = vadd.f32 0.0, %v792
        %v794 = vpop.f32.mrb[0].mxu0
        %v795 = vadd.f32 0.0, %v794
        %v796 = vpop.f32.mrb[0].mxu0
        %v797 = vadd.f32 0.0, %v796
        %798 = vmatprep.mubr.bf16.mxu0 0
        %799 = vmatmul.mubr.bf16.gmra.mrb[0].mxu0 %v478
        %v800 = vpop.f32.mrb[0].mxu0
        %v801 = vadd.f32 0.0, %v800
        %v802 = vpop.f32.mrb[0].mxu0
        %v803 = vadd.f32 0.0, %v802
        %v804 = vpop.f32.mrb[0].mxu0
        %v805 = vadd.f32 0.0, %v804
        %v806 = vpop.f32.mrb[0].mxu0
        %v807 = vadd.f32 0.0, %v806
        %808 = vmatprep.mubr.bf16.mxu0 0
        %809 = vmatmul.mubr.bf16.gmra.mrb[0].mxu0 %v481
        %v810 = vpop.f32.mrb[0].mxu0
        %v811 = vadd.f32 0.0, %v810
        %v812 = vpop.f32.mrb[0].mxu0
        %v813 = vadd.f32 0.0, %v812
        %v814 = vpop.f32.mrb[0].mxu0
        %v815 = vadd.f32 0.0, %v814
        %v816 = vpop.f32.mrb[0].mxu0
        %v817 = vadd.f32 0.0, %v816
        %818 = vmatprep.mubr.bf16.mxu0 0
        %819 = vmatmul.mubr.bf16.gmra.mrb[0].mxu0 %v484
        %v820 = vpop.f32.mrb[0].mxu0
        %v821 = vadd.f32 0.0, %v820
        %v822 = vpop.f32.mrb[0].mxu0
        %v823 = vadd.f32 0.0, %v822
        %v824 = vpop.f32.mrb[0].mxu0
        %v825 = vadd.f32 0.0, %v824
        %v826 = vpop.f32.mrb[0].mxu0
        %v827 = vadd.f32 0.0, %v826
        %828 = vmatprep.mubr.bf16.mxu0 0
        %829 = vmatmul.mubr.bf16.gmra.mrb[0].mxu0 %v487
        %v830 = vpop.f32.mrb[0].mxu0
        %v831 = vadd.f32 0.0, %v830
        %v832 = vpop.f32.mrb[0].mxu0
        %v833 = vadd.f32 0.0, %v832
        %v834 = vpop.f32.mrb[0].mxu0
        %v835 = vadd.f32 0.0, %v834
        %v836 = vpop.f32.mrb[0].mxu0
        %v837 = vadd.f32 0.0, %v836
        %838 = vmatprep.mubr.bf16.mxu0 0
        %839 = vmatmul.mubr.bf16.gmra.mrb[0].mxu0 %v490
        %v840 = vpop.f32.mrb[0].mxu0
        %v841 = vadd.f32 0.0, %v840
        %v842 = vpop.f32.mrb[0].mxu0
        %v843 = vadd.f32 0.0, %v842
        %v844 = vpop.f32.mrb[0].mxu0
        %v845 = vadd.f32 0.0, %v844
        %v846 = vpop.f32.mrb[0].mxu0
        %v847 = vadd.f32 0.0, %v846
        %848 = vmatprep.mubr.bf16.mxu0 0
        %849 = vmatmul.mubr.bf16.gmra.mrb[0].mxu0 %v493
        %v850 = vpop.f32.mrb[0].mxu0
        %v851 = vadd.f32 0.0, %v850
        %v852 = vpop.f32.mrb[0].mxu0
        %v853 = vadd.f32 0.0, %v852
        %v854 = vpop.f32.mrb[0].mxu0
        %v855 = vadd.f32 0.0, %v854
        %v856 = vpop.f32.mrb[0].mxu0
        %v857 = vadd.f32 0.0, %v856
        %858 = vmatprep.mubr.bf16.mxu0 0
        %859 = vmatmul.mubr.bf16.gmra.mrb[0].mxu0 %v496
        %v860 = vpop.f32.mrb[0].mxu0
        %v861 = vadd.f32 0.0, %v860
        %v862 = vpop.f32.mrb[0].mxu0
        %v863 = vadd.f32 0.0, %v862
        %v864 = vpop.f32.mrb[0].mxu0
        %v865 = vadd.f32 0.0, %v864
        %v866 = vpop.f32.mrb[0].mxu0
        %v867 = vadd.f32 0.0, %v866
        %868 = vmatprep.mubr.bf16.mxu0 0
        %869 = vmatmul.mubr.bf16.gmra.mrb[0].mxu0 %v499
        %v870 = vpop.f32.mrb[0].mxu0
        %v871 = vadd.f32 0.0, %v870
        %v872 = vpop.f32.mrb[0].mxu0
        %v873 = vadd.f32 0.0, %v872
        %v874 = vpop.f32.mrb[0].mxu0
        %v875 = vadd.f32 0.0, %v874
        %v876 = vpop.f32.mrb[0].mxu0
        %v877 = vadd.f32 0.0, %v876
        %878 = vmatprep.mubr.bf16.mxu0 0
        %879 = vmatmul.mubr.bf16.gmra.mrb[0].mxu0 %v502
        %v880 = vpop.f32.mrb[0].mxu0
        %v881 = vadd.f32 0.0, %v880
        %v882 = vpop.f32.mrb[0].mxu0
        %v883 = vadd.f32 0.0, %v882
        %v884 = vpop.f32.mrb[0].mxu0
        %v885 = vadd.f32 0.0, %v884
        %v886 = vpop.f32.mrb[0].mxu0
        %v887 = vadd.f32 0.0, %v886
        %888 = vmatprep.mubr.bf16.mxu0 0
        %889 = vmatmul.mubr.bf16.gmra.mrb[0].mxu0 %v505
        %v890 = vpop.f32.mrb[0].mxu0
        %v891 = vadd.f32 0.0, %v890
        %v892 = vpop.f32.mrb[0].mxu0
        %v893 = vadd.f32 0.0, %v892
        %v894 = vpop.f32.mrb[0].mxu0
        %v895 = vadd.f32 0.0, %v894
        %v896 = vpop.f32.mrb[0].mxu0
        %v897 = vadd.f32 0.0, %v896
        %898 = vmatprep.mubr.bf16.mxu0 0
        %899 = vmatmul.mubr.bf16.gmra.mrb[0].mxu0 %v508
        %v900 = vpop.f32.mrb[0].mxu0
        %v901 = vadd.f32 0.0, %v900
        %v902 = vpop.f32.mrb[0].mxu0
        %v903 = vadd.f32 0.0, %v902
        %v904 = vpop.f32.mrb[0].mxu0
        %v905 = vadd.f32 0.0, %v904
        %v906 = vpop.f32.mrb[0].mxu0
        %v907 = vadd.f32 0.0, %v906
        %908 = vdwg.mxu0
        %v909 = vmax.f32 %v558, %v560
        %v910 = vmax.f32 %v562, %v564
        %v911 = vmax.f32 %v568, %v570
        %v912 = vmax.f32 %v572, %v574
        %v913 = vmax.f32 %v578, %v580
        %v914 = vmax.f32 %v582, %v584
        %v915 = vmax.f32 %v588, %v590
        %v916 = vmax.f32 %v592, %v594
        %v917 = vmax.f32 %v598, %v600
        %v918 = vmax.f32 %v602, %v604
        %v919 = vmax.f32 %v608, %v610
        %v920 = vmax.f32 %v612, %v614
        %v921 = vmax.f32 %v618, %v620
        %v922 = vmax.f32 %v622, %v624
        %v923 = vmax.f32 %v628, %v630
        %v924 = vmax.f32 %v632, %v634
        %v925 = vmax.f32 %v638, %v640
        %v926 = vmax.f32 %v642, %v644
        %v927 = vmax.f32 %v648, %v650
        %v928 = vmax.f32 %v652, %v654
        %v929 = vmax.f32 %v658, %v660
        %v930 = vmax.f32 %v662, %v664
        %v931 = vmax.f32 %v668, %v670
        %v932 = vmax.f32 %v672, %v674
        %v933 = vmax.f32 %v678, %v680
        %v934 = vmax.f32 %v682, %v684
        %v935 = vmax.f32 %v688, %v690
        %v936 = vmax.f32 %v692, %v694
        %v937 = vmax.f32 %v698, %v700
        %v938 = vmax.f32 %v702, %v704
        %v939 = vmax.f32 %v708, %v710
        %v940 = vmax.f32 %v712, %v714
        %v941 = vmax.f32 %v909, %v751
        %v942 = vmax.f32 %v910, %v755
        %v943 = vmax.f32 %v911, %v761
        %v944 = vmax.f32 %v912, %v765
        %v945 = vmax.f32 %v913, %v771
        %v946 = vmax.f32 %v914, %v775
        %v947 = vmax.f32 %v915, %v781
        %v948 = vmax.f32 %v916, %v785
        %v949 = vmax.f32 %v917, %v791
        %v950 = vmax.f32 %v918, %v795
        %v951 = vmax.f32 %v919, %v801
        %v952 = vmax.f32 %v920, %v805
        %v953 = vmax.f32 %v921, %v811
        %v954 = vmax.f32 %v922, %v815
        %v955 = vmax.f32 %v923, %v821
        %v956 = vmax.f32 %v924, %v825
        %v957 = vmax.f32 %v925, %v831
        %v958 = vmax.f32 %v926, %v835
        %v959 = vmax.f32 %v927, %v841
        %v960 = vmax.f32 %v928, %v845
        %v961 = vmax.f32 %v929, %v851
        %v962 = vmax.f32 %v930, %v855
        %v963 = vmax.f32 %v931, %v861
        %v964 = vmax.f32 %v932, %v865
        %v965 = vmax.f32 %v933, %v871
        %v966 = vmax.f32 %v934, %v875
        %v967 = vmax.f32 %v935, %v881
        %v968 = vmax.f32 %v936, %v885
        %v969 = vmax.f32 %v937, %v891
        %v970 = vmax.f32 %v938, %v895
        %v971 = vmax.f32 %v939, %v901
        %v972 = vmax.f32 %v940, %v905
        %v973 = vmax.f32 %v941, %v753
        %v974 = vmax.f32 %v942, %v757
        %v975 = vmax.f32 %v943, %v763
        %v976 = vmax.f32 %v944, %v767
        %v977 = vmax.f32 %v945, %v773
        %v978 = vmax.f32 %v946, %v777
        %v979 = vmax.f32 %v947, %v783
        %v980 = vmax.f32 %v948, %v787
        %v981 = vmax.f32 %v949, %v793
        %v982 = vmax.f32 %v950, %v797
        %v983 = vmax.f32 %v951, %v803
        %v984 = vmax.f32 %v952, %v807
        %v985 = vmax.f32 %v953, %v813
        %v986 = vmax.f32 %v954, %v817
        %v987 = vmax.f32 %v955, %v823
        %v988 = vmax.f32 %v956, %v827
        %v989 = vmax.f32 %v957, %v833
        %v990 = vmax.f32 %v958, %v837
        %v991 = vmax.f32 %v959, %v843
        %v992 = vmax.f32 %v960, %v847
        %v993 = vmax.f32 %v961, %v853
        %v994 = vmax.f32 %v962, %v857
        %v995 = vmax.f32 %v963, %v863
        %v996 = vmax.f32 %v964, %v867
        %v997 = vmax.f32 %v965, %v873
        %v998 = vmax.f32 %v966, %v877
        %v999 = vmax.f32 %v967, %v883
        %v1000 = vmax.f32 %v968, %v887
        %v1001 = vmax.f32 %v969, %v893
        %v1002 = vmax.f32 %v970, %v897
        %v1003 = vmax.f32 %v971, %v903
        %v1004 = vmax.f32 %v972, %v907
        %v1005 = vld [vmem:[%s2] sm:$0x1]
        %v1007 = vlaneseq
        %v1008 = vshrl.u32 %v1007, 7
        %v1009 = vsub.s32 0, %v1008
        %v1010 = vrot.slane %v1005, %v1009
        %v1012 = vadd.f32 %v973, %v1010
        %v1013 = vadd.f32 %v974, %v1010
        %v1014 = vadd.f32 %v975, %v1010
        %v1015 = vadd.f32 %v976, %v1010
        %v1016 = vadd.f32 %v977, %v1010
        %v1017 = vadd.f32 %v978, %v1010
        %v1018 = vadd.f32 %v979, %v1010
        %v1019 = vadd.f32 %v980, %v1010
        %v1020 = vadd.f32 %v981, %v1010
        %v1021 = vadd.f32 %v982, %v1010
        %v1022 = vadd.f32 %v983, %v1010
        %v1023 = vadd.f32 %v984, %v1010
        %v1024 = vadd.f32 %v985, %v1010
        %v1025 = vadd.f32 %v986, %v1010
        %v1026 = vadd.f32 %v987, %v1010
        %v1027 = vadd.f32 %v988, %v1010
        %v1028 = vadd.f32 %v989, %v1010
        %v1029 = vadd.f32 %v990, %v1010
        %v1030 = vadd.f32 %v991, %v1010
        %v1031 = vadd.f32 %v992, %v1010
        %v1032 = vadd.f32 %v993, %v1010
        %v1033 = vadd.f32 %v994, %v1010
        %v1034 = vadd.f32 %v995, %v1010
        %v1035 = vadd.f32 %v996, %v1010
        %v1036 = vadd.f32 %v997, %v1010
        %v1037 = vadd.f32 %v998, %v1010
        %v1038 = vadd.f32 %v999, %v1010
        %v1039 = vadd.f32 %v1000, %v1010
        %v1040 = vadd.f32 %v1001, %v1010
        %v1041 = vadd.f32 %v1002, %v1010
        %v1042 = vadd.f32 %v1003, %v1010
        %v1043 = vadd.f32 %v1004, %v1010
        %v1044 = vmax.f32 %v1012, 0.0
        %v1045 = vmax.f32 %v1013, 0.0
        %v1046 = vmax.f32 %v1014, 0.0
        %v1047 = vmax.f32 %v1015, 0.0
        %v1048 = vmax.f32 %v1016, 0.0
        %v1049 = vmax.f32 %v1017, 0.0
        %v1050 = vmax.f32 %v1018, 0.0
        %v1051 = vmax.f32 %v1019, 0.0
        %v1052 = vmax.f32 %v1020, 0.0
        %v1053 = vmax.f32 %v1021, 0.0
        %v1054 = vmax.f32 %v1022, 0.0
        %v1055 = vmax.f32 %v1023, 0.0
        %v1056 = vmax.f32 %v1024, 0.0
        %v1057 = vmax.f32 %v1025, 0.0
        %v1058 = vmax.f32 %v1026, 0.0
        %v1059 = vmax.f32 %v1027, 0.0
        %v1060 = vmax.f32 %v1028, 0.0
        %v1061 = vmax.f32 %v1029, 0.0
        %v1062 = vmax.f32 %v1030, 0.0
        %v1063 = vmax.f32 %v1031, 0.0
        %v1064 = vmax.f32 %v1032, 0.0
        %v1065 = vmax.f32 %v1033, 0.0
        %v1066 = vmax.f32 %v1034, 0.0
        %v1067 = vmax.f32 %v1035, 0.0
        %v1068 = vmax.f32 %v1036, 0.0
        %v1069 = vmax.f32 %v1037, 0.0
        %v1070 = vmax.f32 %v1038, 0.0
        %v1071 = vmax.f32 %v1039, 0.0
        %v1072 = vmax.f32 %v1040, 0.0
        %v1073 = vmax.f32 %v1041, 0.0
        %v1074 = vmax.f32 %v1042, 0.0
        %v1075 = vmax.f32 %v1043, 0.0
        %v1076 = vpack.c.bf16 %v1045, %v1044
        %v1077 = vpack.c.bf16 %v1047, %v1046
        %v1078 = vpack.c.bf16 %v1049, %v1048
        %v1079 = vpack.c.bf16 %v1051, %v1050
        %v1080 = vpack.c.bf16 %v1053, %v1052
        %v1081 = vpack.c.bf16 %v1055, %v1054
        %v1082 = vpack.c.bf16 %v1057, %v1056
        %v1083 = vpack.c.bf16 %v1059, %v1058
        %v1084 = vpack.c.bf16 %v1061, %v1060
        %v1085 = vpack.c.bf16 %v1063, %v1062
        %v1086 = vpack.c.bf16 %v1065, %v1064
        %v1087 = vpack.c.bf16 %v1067, %v1066
        %v1088 = vpack.c.bf16 %v1069, %v1068
        %v1089 = vpack.c.bf16 %v1071, %v1070
        %v1090 = vpack.c.bf16 %v1073, %v1072
        %v1091 = vpack.c.bf16 %v1075, %v1074
        %v1108 = vunpack.c.l.b16 %v1076
        %v1109 = vunpack.c.h.b16 %v1076
        %v1110 = vunpack.c.l.b16 %v1077
        %v1111 = vunpack.c.h.b16 %v1077
        %v1112 = vunpack.c.l.b16 %v1078
        %v1113 = vunpack.c.h.b16 %v1078
        %v1114 = vunpack.c.l.b16 %v1079
        %v1115 = vunpack.c.h.b16 %v1079
        %v1116 = vunpack.c.l.b16 %v1080
        %v1117 = vunpack.c.h.b16 %v1080
        %v1118 = vunpack.c.l.b16 %v1081
        %v1119 = vunpack.c.h.b16 %v1081
        %v1120 = vunpack.c.l.b16 %v1082
        %v1121 = vunpack.c.h.b16 %v1082
        %v1122 = vunpack.c.l.b16 %v1083
        %v1123 = vunpack.c.h.b16 %v1083
        %v1124 = vunpack.c.l.b16 %v1084
        %v1125 = vunpack.c.h.b16 %v1084
        %v1126 = vunpack.c.l.b16 %v1085
        %v1127 = vunpack.c.h.b16 %v1085
        %v1128 = vunpack.c.l.b16 %v1086
        %v1129 = vunpack.c.h.b16 %v1086
        %v1130 = vunpack.c.l.b16 %v1087
        %v1131 = vunpack.c.h.b16 %v1087
        %v1132 = vunpack.c.l.b16 %v1088
        %v1133 = vunpack.c.h.b16 %v1088
        %v1134 = vunpack.c.l.b16 %v1089
        %v1135 = vunpack.c.h.b16 %v1089
        %v1136 = vunpack.c.l.b16 %v1090
        %v1137 = vunpack.c.h.b16 %v1090
        %v1138 = vunpack.c.l.b16 %v1091
        %v1139 = vunpack.c.h.b16 %v1091
        %v1140 = vpack.c.b16 %v1108, %v1108
        %v1141 = vpack.c.b16 %v1109, %v1109
        %v1142 = vpack.c.b16 %v1110, %v1110
        %v1143 = vpack.c.b16 %v1111, %v1111
        %v1144 = vpack.c.b16 %v1112, %v1112
        %v1145 = vpack.c.b16 %v1113, %v1113
        %v1146 = vpack.c.b16 %v1114, %v1114
        %v1147 = vpack.c.b16 %v1115, %v1115
        %v1148 = vpack.c.b16 %v1116, %v1116
        %v1149 = vpack.c.b16 %v1117, %v1117
        %v1150 = vpack.c.b16 %v1118, %v1118
        %v1151 = vpack.c.b16 %v1119, %v1119
        %v1152 = vpack.c.b16 %v1120, %v1120
        %v1153 = vpack.c.b16 %v1121, %v1121
        %v1154 = vpack.c.b16 %v1122, %v1122
        %v1155 = vpack.c.b16 %v1123, %v1123
        %v1156 = vpack.c.b16 %v1124, %v1124
        %v1157 = vpack.c.b16 %v1125, %v1125
        %v1158 = vpack.c.b16 %v1126, %v1126
        %v1159 = vpack.c.b16 %v1127, %v1127
        %v1160 = vpack.c.b16 %v1128, %v1128
        %v1161 = vpack.c.b16 %v1129, %v1129
        %v1162 = vpack.c.b16 %v1130, %v1130
        %v1163 = vpack.c.b16 %v1131, %v1131
        %v1164 = vpack.c.b16 %v1132, %v1132
        %v1165 = vpack.c.b16 %v1133, %v1133
        %v1166 = vpack.c.b16 %v1134, %v1134
        %v1167 = vpack.c.b16 %v1135, %v1135
        %v1168 = vpack.c.b16 %v1136, %v1136
        %v1169 = vpack.c.b16 %v1137, %v1137
        %v1170 = vpack.c.b16 %v1138, %v1138
        %v1171 = vpack.c.b16 %v1139, %v1139
        %1204 = vst [vmem:[%s172] sm:$0xf] %v1140
        %1205 = vst [vmem:[%s172 + $0x4] sm:$0xf] %v1141
        %1206 = vst [vmem:[%s172 + $0x8] sm:$0xf] %v1142
        %1207 = vst [vmem:[%s172 + $0xc] sm:$0xf] %v1143
        %1208 = vst [vmem:[%s172 + $0x10] sm:$0xf] %v1144
        %1209 = vst [vmem:[%s172 + $0x14] sm:$0xf] %v1145
        %1210 = vst [vmem:[%s172 + $0x18] sm:$0xf] %v1146
        %1211 = vst [vmem:[%s172 + $0x1c] sm:$0xf] %v1147
        %1212 = vst [vmem:[%s172 + $0x20] sm:$0xf] %v1148
        %1213 = vst [vmem:[%s172 + $0x24] sm:$0xf] %v1149
        %1214 = vst [vmem:[%s172 + $0x28] sm:$0xf] %v1150
        %1215 = vst [vmem:[%s172 + $0x2c] sm:$0xf] %v1151
        %1216 = vst [vmem:[%s172 + $0x30] sm:$0xf] %v1152
        %1217 = vst [vmem:[%s172 + $0x34] sm:$0xf] %v1153
        %1218 = vst [vmem:[%s172 + $0x38] sm:$0xf] %v1154
        %1219 = vst [vmem:[%s172 + $0x3c] sm:$0xf] %v1155
        %1220 = vst [vmem:[%s172 + $0x40] sm:$0xf] %v1156
        %1221 = vst [vmem:[%s172 + $0x44] sm:$0xf] %v1157
        %1222 = vst [vmem:[%s172 + $0x48] sm:$0xf] %v1158
        %1223 = vst [vmem:[%s172 + $0x4c] sm:$0xf] %v1159
        %1224 = vst [vmem:[%s172 + $0x50] sm:$0xf] %v1160
        %1225 = vst [vmem:[%s172 + $0x54] sm:$0xf] %v1161
        %1226 = vst [vmem:[%s172 + $0x58] sm:$0xf] %v1162
        %1227 = vst [vmem:[%s172 + $0x5c] sm:$0xf] %v1163
        %1228 = vst [vmem:[%s172 + $0x60] sm:$0xf] %v1164
        %1229 = vst [vmem:[%s172 + $0x64] sm:$0xf] %v1165
        %1230 = vst [vmem:[%s172 + $0x68] sm:$0xf] %v1166
        %1231 = vst [vmem:[%s172 + $0x6c] sm:$0xf] %v1167
        %1232 = vst [vmem:[%s172 + $0x70] sm:$0xf] %v1168
        %1233 = vst [vmem:[%s172 + $0x74] sm:$0xf] %v1169
        %1234 = vst [vmem:[%s172 + $0x78] sm:$0xf] %v1170
        %1235 = vst [vmem:[%s172 + $0x7c] sm:$0xf] %v1171
        %s1236 = sand.u32 %s90, 1
        %s1237 = sand.u32 %s90, 1
        %s1238 = smul.addr %s1237, 128
        %s1239 = scalar_lea.vmem [#allocation2], %s1238
        // Predicated region
        $region33: #{_lambda_.3} parent=31 // pred_check
          %p1240 = pneg %p100
        $region34: #{_lambda_.3} parent=31 // pred_check_branch
          %1242 = sbr.rel (%p1240) target = $region36
        $region35: #{_lambda_.3} parent=31 // pred_region
          %s1243 = smul.u32 32, %s14
          %s1244 = ssub.s32 49, %s1243
          %p1245 = scmp.lt.s32.totalorder %s1244, 32
          %s1246 = scalar_select %p1245, %s1244, 32
          %s1247 = smul.u32 64, %s1246
          %p1248 = scmp.ne.s32.totalorder 0, %s1247
          %s1249 = smul.addr %s1243, 4
          %s1250 = scalar_lea.vmem %s3, %s1249
          // Predicated region
          $region37: #{_lambda_.3} parent=35 // pred_check
            %p1251 = pneg %p1248
          $region38: #{_lambda_.3} parent=35 // pred_check_branch
            %1253 = sbr.rel (%p1251) target = $region40
          $region39: #{_lambda_.3} parent=35 // pred_region
            // Predicated region
            $region41: #{_lambda_.3} parent=39 // pred_check
              _
            $region42: #{_lambda_.3} parent=39 // pred_check_branch
              %1255 = sbr.rel target = $region44
            $region43: #{_lambda_.3} parent=39 // pred_region
              // Predicated region
              $region63: #{_lambda_.3} parent=43 // pred_check
                _
              $region64: #{_lambda_.3} parent=43 // pred_check_branch
                %1366 = sbr.rel (0) target = $region66
              $region65: #{_lambda_.3} parent=43 // pred_region
                %s1368 = sshrl.u32 %s1246, 5
                // While loop
                $region67: #{_lambda_.3} parent=65 // loop_pre_header
                  _
                $region68: #{_lambda_.3} parent=65 // loop_header
                  %s1370 = sphi 0, %s1372
                  %p1371 = scmp.ge.s32.totalorder %s1370, %s1368
                  %s1375 = sphi 0, %s1444
                  %s1376 = sphi %s1239, %s1447
                  %s1377 = sphi %s1250, %s1448
                $region69: #{_lambda_.3} parent=65 // loop_header_branch
                  %1374 = sbr.rel (%p1371) target = $region73
                $region70: #{_lambda_.3} parent=65 // loop_body
                  %v1378 = vld [vmem:[%s1376] sm:$0xf]
                  %1379 = vst [vmem:[%s1377] sm:$0xf] %v1378
                  %v1380 = vld [vmem:[%s1376 + $0x4] sm:$0xf]
                  %1381 = vst [vmem:[%s1377 + $0x4] sm:$0xf] %v1380
                  %v1382 = vld [vmem:[%s1376 + $0x8] sm:$0xf]
                  %1383 = vst [vmem:[%s1377 + $0x8] sm:$0xf] %v1382
                  %v1384 = vld [vmem:[%s1376 + $0xc] sm:$0xf]
                  %1385 = vst [vmem:[%s1377 + $0xc] sm:$0xf] %v1384
                  %v1386 = vld [vmem:[%s1376 + $0x10] sm:$0xf]
                  %1387 = vst [vmem:[%s1377 + $0x10] sm:$0xf] %v1386
                  %v1388 = vld [vmem:[%s1376 + $0x14] sm:$0xf]
                  %1389 = vst [vmem:[%s1377 + $0x14] sm:$0xf] %v1388
                  %v1390 = vld [vmem:[%s1376 + $0x18] sm:$0xf]
                  %1391 = vst [vmem:[%s1377 + $0x18] sm:$0xf] %v1390
                  %v1392 = vld [vmem:[%s1376 + $0x1c] sm:$0xf]
                  %1393 = vst [vmem:[%s1377 + $0x1c] sm:$0xf] %v1392
                  %v1394 = vld [vmem:[%s1376 + $0x20] sm:$0xf]
                  %1395 = vst [vmem:[%s1377 + $0x20] sm:$0xf] %v1394
                  %v1396 = vld [vmem:[%s1376 + $0x24] sm:$0xf]
                  %1397 = vst [vmem:[%s1377 + $0x24] sm:$0xf] %v1396
                  %v1398 = vld [vmem:[%s1376 + $0x28] sm:$0xf]
                  %1399 = vst [vmem:[%s1377 + $0x28] sm:$0xf] %v1398
                  %v1400 = vld [vmem:[%s1376 + $0x2c] sm:$0xf]
                  %1401 = vst [vmem:[%s1377 + $0x2c] sm:$0xf] %v1400
                  %v1402 = vld [vmem:[%s1376 + $0x30] sm:$0xf]
                  %1403 = vst [vmem:[%s1377 + $0x30] sm:$0xf] %v1402
                  %v1404 = vld [vmem:[%s1376 + $0x34] sm:$0xf]
                  %1405 = vst [vmem:[%s1377 + $0x34] sm:$0xf] %v1404
                  %v1406 = vld [vmem:[%s1376 + $0x38] sm:$0xf]
                  %1407 = vst [vmem:[%s1377 + $0x38] sm:$0xf] %v1406
                  %v1408 = vld [vmem:[%s1376 + $0x3c] sm:$0xf]
                  %1409 = vst [vmem:[%s1377 + $0x3c] sm:$0xf] %v1408
                  %v1410 = vld [vmem:[%s1376 + $0x40] sm:$0xf]
                  %1411 = vst [vmem:[%s1377 + $0x40] sm:$0xf] %v1410
                  %v1412 = vld [vmem:[%s1376 + $0x44] sm:$0xf]
                  %1413 = vst [vmem:[%s1377 + $0x44] sm:$0xf] %v1412
                  %v1414 = vld [vmem:[%s1376 + $0x48] sm:$0xf]
                  %1415 = vst [vmem:[%s1377 + $0x48] sm:$0xf] %v1414
                  %v1416 = vld [vmem:[%s1376 + $0x4c] sm:$0xf]
                  %1417 = vst [vmem:[%s1377 + $0x4c] sm:$0xf] %v1416
                  %v1418 = vld [vmem:[%s1376 + $0x50] sm:$0xf]
                  %1419 = vst [vmem:[%s1377 + $0x50] sm:$0xf] %v1418
                  %v1420 = vld [vmem:[%s1376 + $0x54] sm:$0xf]
                  %1421 = vst [vmem:[%s1377 + $0x54] sm:$0xf] %v1420
                  %v1422 = vld [vmem:[%s1376 + $0x58] sm:$0xf]
                  %1423 = vst [vmem:[%s1377 + $0x58] sm:$0xf] %v1422
                  %v1424 = vld [vmem:[%s1376 + $0x5c] sm:$0xf]
                  %1425 = vst [vmem:[%s1377 + $0x5c] sm:$0xf] %v1424
                  %v1426 = vld [vmem:[%s1376 + $0x60] sm:$0xf]
                  %1427 = vst [vmem:[%s1377 + $0x60] sm:$0xf] %v1426
                  %v1428 = vld [vmem:[%s1376 + $0x64] sm:$0xf]
                  %1429 = vst [vmem:[%s1377 + $0x64] sm:$0xf] %v1428
                  %v1430 = vld [vmem:[%s1376 + $0x68] sm:$0xf]
                  %1431 = vst [vmem:[%s1377 + $0x68] sm:$0xf] %v1430
                  %v1432 = vld [vmem:[%s1376 + $0x6c] sm:$0xf]
                  %1433 = vst [vmem:[%s1377 + $0x6c] sm:$0xf] %v1432
                  %v1434 = vld [vmem:[%s1376 + $0x70] sm:$0xf]
                  %1435 = vst [vmem:[%s1377 + $0x70] sm:$0xf] %v1434
                  %v1436 = vld [vmem:[%s1376 + $0x74] sm:$0xf]
                  %1437 = vst [vmem:[%s1377 + $0x74] sm:$0xf] %v1436
                  %v1438 = vld [vmem:[%s1376 + $0x78] sm:$0xf]
                  %1439 = vst [vmem:[%s1377 + $0x78] sm:$0xf] %v1438
                  %v1440 = vld [vmem:[%s1376 + $0x7c] sm:$0xf]
                  %1441 = vst [vmem:[%s1377 + $0x7c] sm:$0xf] %v1440
                  %s1442 = sadd.s32 1, %s1375
                  %p1443 = scmp.ge.s32.totalorder %s1442, %s1368
                  %s1444 = scalar_select %p1443, 0, %s1442
                  %s1445 = smul.u32 %s1444, 128
                  %s1446 = smul.u32 %s1444, 128
                  %s1447 = scalar_lea.vmem %s1239, %s1445 [#allocation2]
                  %s1448 = scalar_lea.vmem %s1250, %s1446
                $region71: #{_lambda_.3} parent=65 // loop_footer
                  %s1372 = sadd.s32 %s1370, 1
                $region72: #{_lambda_.3} parent=65 // loop_footer_branch
                  %1369 = sbr.rel target = $region68
                $region73: #{_lambda_.3} parent=65 // loop_exit
                  _
                %s1449 = sshrl.u32 %s1246, 5
                %s1450 = sand.u32 %s1246, 31
                %s1451 = smul.u32 %s1449, 32
                %s1452 = smul.u32 4, %s1451
                %s1453 = scalar_lea.vmem %s1239, %s1452 [#allocation2]
                %s1454 = smul.u32 4, %s1451
                %s1455 = scalar_lea.vmem %s1250, %s1454
                // While loop
                $region74: #{_lambda_.3} parent=65 // loop_pre_header
                  _
                $region75: #{_lambda_.3} parent=65 // loop_header
                  %s1457 = sphi 0, %s1459
                  %p1458 = scmp.ge.s32.totalorder %s1457, %s1450
                  %s1462 = sphi 0, %s1469
                  %s1463 = sphi %s1453, %s1472
                  %s1464 = sphi %s1455, %s1473
                $region76: #{_lambda_.3} parent=65 // loop_header_branch
                  %1461 = sbr.rel (%p1458) target = $region80
                $region77: #{_lambda_.3} parent=65 // loop_body
                  %v1465 = vld [vmem:[%s1463] sm:$0xf]
                  %1466 = vst [vmem:[%s1464] sm:$0xf] %v1465
                  %s1467 = sadd.s32 1, %s1462
                  %p1468 = scmp.ge.s32.totalorder %s1467, %s1450
                  %s1469 = scalar_select %p1468, 0, %s1467
                  %s1470 = smul.u32 %s1469, 4
                  %s1471 = smul.u32 %s1469, 4
                  %s1472 = scalar_lea.vmem %s1453, %s1470 [#allocation2]
                  %s1473 = scalar_lea.vmem %s1455, %s1471
                $region78: #{_lambda_.3} parent=65 // loop_footer
                  %s1459 = sadd.s32 %s1457, 1
                $region79: #{_lambda_.3} parent=65 // loop_footer_branch
                  %1456 = sbr.rel target = $region75
                $region80: #{_lambda_.3} parent=65 // loop_exit
                  _
              $region66: #{_lambda_.3} parent=43 // pred_fallthru
                _
            $region44: #{_lambda_.3} parent=39 // pred_fallthru
              _
            // Predicated region
            $region45: #{_lambda_.3} parent=39 // pred_check
              _
            $region46: #{_lambda_.3} parent=39 // pred_check_branch
              %1257 = sbr.rel (0) target = $region48
            $region47: #{_lambda_.3} parent=39 // pred_region
              %s1259 = sshrl.u32 %s1246, 5
              // While loop
              $region49: #{_lambda_.3} parent=47 // loop_pre_header
                _
              $region50: #{_lambda_.3} parent=47 // loop_header
                %s1261 = sphi 0, %s1263
                %p1262 = scmp.ge.s32.totalorder %s1261, %s1259
                %s1266 = sphi 0, %s1335
                %s1267 = sphi %s1239, %s1338
                %s1268 = sphi %s1250, %s1339
              $region51: #{_lambda_.3} parent=47 // loop_header_branch
                %1265 = sbr.rel (%p1262) target = $region55
              $region52: #{_lambda_.3} parent=47 // loop_body
                %v1269 = vld [vmem:[%s1267] sm:$0xf]
                %1270 = vst [vmem:[%s1268] sm:$0xf] %v1269
                %v1271 = vld [vmem:[%s1267 + $0x4] sm:$0xf]
                %1272 = vst [vmem:[%s1268 + $0x4] sm:$0xf] %v1271
                %v1273 = vld [vmem:[%s1267 + $0x8] sm:$0xf]
                %1274 = vst [vmem:[%s1268 + $0x8] sm:$0xf] %v1273
                %v1275 = vld [vmem:[%s1267 + $0xc] sm:$0xf]
                %1276 = vst [vmem:[%s1268 + $0xc] sm:$0xf] %v1275
                %v1277 = vld [vmem:[%s1267 + $0x10] sm:$0xf]
                %1278 = vst [vmem:[%s1268 + $0x10] sm:$0xf] %v1277
                %v1279 = vld [vmem:[%s1267 + $0x14] sm:$0xf]
                %1280 = vst [vmem:[%s1268 + $0x14] sm:$0xf] %v1279
                %v1281 = vld [vmem:[%s1267 + $0x18] sm:$0xf]
                %1282 = vst [vmem:[%s1268 + $0x18] sm:$0xf] %v1281
                %v1283 = vld [vmem:[%s1267 + $0x1c] sm:$0xf]
                %1284 = vst [vmem:[%s1268 + $0x1c] sm:$0xf] %v1283
                %v1285 = vld [vmem:[%s1267 + $0x20] sm:$0xf]
                %1286 = vst [vmem:[%s1268 + $0x20] sm:$0xf] %v1285
                %v1287 = vld [vmem:[%s1267 + $0x24] sm:$0xf]
                %1288 = vst [vmem:[%s1268 + $0x24] sm:$0xf] %v1287
                %v1289 = vld [vmem:[%s1267 + $0x28] sm:$0xf]
                %1290 = vst [vmem:[%s1268 + $0x28] sm:$0xf] %v1289
                %v1291 = vld [vmem:[%s1267 + $0x2c] sm:$0xf]
                %1292 = vst [vmem:[%s1268 + $0x2c] sm:$0xf] %v1291
                %v1293 = vld [vmem:[%s1267 + $0x30] sm:$0xf]
                %1294 = vst [vmem:[%s1268 + $0x30] sm:$0xf] %v1293
                %v1295 = vld [vmem:[%s1267 + $0x34] sm:$0xf]
                %1296 = vst [vmem:[%s1268 + $0x34] sm:$0xf] %v1295
                %v1297 = vld [vmem:[%s1267 + $0x38] sm:$0xf]
                %1298 = vst [vmem:[%s1268 + $0x38] sm:$0xf] %v1297
                %v1299 = vld [vmem:[%s1267 + $0x3c] sm:$0xf]
                %1300 = vst [vmem:[%s1268 + $0x3c] sm:$0xf] %v1299
                %v1301 = vld [vmem:[%s1267 + $0x40] sm:$0xf]
                %1302 = vst [vmem:[%s1268 + $0x40] sm:$0xf] %v1301
                %v1303 = vld [vmem:[%s1267 + $0x44] sm:$0xf]
                %1304 = vst [vmem:[%s1268 + $0x44] sm:$0xf] %v1303
                %v1305 = vld [vmem:[%s1267 + $0x48] sm:$0xf]
                %1306 = vst [vmem:[%s1268 + $0x48] sm:$0xf] %v1305
                %v1307 = vld [vmem:[%s1267 + $0x4c] sm:$0xf]
                %1308 = vst [vmem:[%s1268 + $0x4c] sm:$0xf] %v1307
                %v1309 = vld [vmem:[%s1267 + $0x50] sm:$0xf]
                %1310 = vst [vmem:[%s1268 + $0x50] sm:$0xf] %v1309
                %v1311 = vld [vmem:[%s1267 + $0x54] sm:$0xf]
                %1312 = vst [vmem:[%s1268 + $0x54] sm:$0xf] %v1311
                %v1313 = vld [vmem:[%s1267 + $0x58] sm:$0xf]
                %1314 = vst [vmem:[%s1268 + $0x58] sm:$0xf] %v1313
                %v1315 = vld [vmem:[%s1267 + $0x5c] sm:$0xf]
                %1316 = vst [vmem:[%s1268 + $0x5c] sm:$0xf] %v1315
                %v1317 = vld [vmem:[%s1267 + $0x60] sm:$0xf]
                %1318 = vst [vmem:[%s1268 + $0x60] sm:$0xf] %v1317
                %v1319 = vld [vmem:[%s1267 + $0x64] sm:$0xf]
                %1320 = vst [vmem:[%s1268 + $0x64] sm:$0xf] %v1319
                %v1321 = vld [vmem:[%s1267 + $0x68] sm:$0xf]
                %1322 = vst [vmem:[%s1268 + $0x68] sm:$0xf] %v1321
                %v1323 = vld [vmem:[%s1267 + $0x6c] sm:$0xf]
                %1324 = vst [vmem:[%s1268 + $0x6c] sm:$0xf] %v1323
                %v1325 = vld [vmem:[%s1267 + $0x70] sm:$0xf]
                %1326 = vst [vmem:[%s1268 + $0x70] sm:$0xf] %v1325
                %v1327 = vld [vmem:[%s1267 + $0x74] sm:$0xf]
                %1328 = vst [vmem:[%s1268 + $0x74] sm:$0xf] %v1327
                %v1329 = vld [vmem:[%s1267 + $0x78] sm:$0xf]
                %1330 = vst [vmem:[%s1268 + $0x78] sm:$0xf] %v1329
                %v1331 = vld [vmem:[%s1267 + $0x7c] sm:$0xf]
                %1332 = vst [vmem:[%s1268 + $0x7c] sm:$0xf] %v1331
                %s1333 = sadd.s32 1, %s1266
                %p1334 = scmp.ge.s32.totalorder %s1333, %s1259
                %s1335 = scalar_select %p1334, 0, %s1333
                %s1336 = smul.u32 %s1335, 128
                %s1337 = smul.u32 %s1335, 128
                %s1338 = scalar_lea.vmem %s1239, %s1336 [#allocation2]
                %s1339 = scalar_lea.vmem %s1250, %s1337
              $region53: #{_lambda_.3} parent=47 // loop_footer
                %s1263 = sadd.s32 %s1261, 1
              $region54: #{_lambda_.3} parent=47 // loop_footer_branch
                %1260 = sbr.rel target = $region50
              $region55: #{_lambda_.3} parent=47 // loop_exit
                _
              %s1340 = sshrl.u32 %s1246, 5
              %s1341 = sand.u32 %s1246, 31
              %s1342 = smul.u32 %s1340, 32
              %s1343 = smul.u32 4, %s1342
              %s1344 = scalar_lea.vmem %s1239, %s1343 [#allocation2]
              %s1345 = smul.u32 4, %s1342
              %s1346 = scalar_lea.vmem %s1250, %s1345
              // While loop
              $region56: #{_lambda_.3} parent=47 // loop_pre_header
                _
              $region57: #{_lambda_.3} parent=47 // loop_header
                %s1348 = sphi 0, %s1350
                %p1349 = scmp.ge.s32.totalorder %s1348, %s1341
                %s1353 = sphi 0, %s1360
                %s1354 = sphi %s1344, %s1363
                %s1355 = sphi %s1346, %s1364
              $region58: #{_lambda_.3} parent=47 // loop_header_branch
                %1352 = sbr.rel (%p1349) target = $region62
              $region59: #{_lambda_.3} parent=47 // loop_body
                %v1356 = vld [vmem:[%s1354] sm:$0xf]
                %1357 = vst [vmem:[%s1355] sm:$0xf] %v1356
                %s1358 = sadd.s32 1, %s1353
                %p1359 = scmp.ge.s32.totalorder %s1358, %s1341
                %s1360 = scalar_select %p1359, 0, %s1358
                %s1361 = smul.u32 %s1360, 4
                %s1362 = smul.u32 %s1360, 4
                %s1363 = scalar_lea.vmem %s1344, %s1361 [#allocation2]
                %s1364 = scalar_lea.vmem %s1346, %s1362
              $region60: #{_lambda_.3} parent=47 // loop_footer
                %s1350 = sadd.s32 %s1348, 1
              $region61: #{_lambda_.3} parent=47 // loop_footer_branch
                %1347 = sbr.rel target = $region57
              $region62: #{_lambda_.3} parent=47 // loop_exit
                _
            $region48: #{_lambda_.3} parent=39 // pred_fallthru
              _
          $region40: #{_lambda_.3} parent=35 // pred_fallthru
            _
          %1474 = vnop
        $region36: #{_lambda_.3} parent=31 // pred_fallthru
          _
      $region32: #{_lambda_.3} parent=5 // pred_fallthru
        _
      %p1475 = scmp.le.s32.totalorder 2, %s9
      // Predicated region
      $region81: #{_lambda_.3} parent=5 // pred_check
        %p1476 = pneg %p1475
      $region82: #{_lambda_.3} parent=5 // pred_check_branch
        %1478 = sbr.rel (%p1476) target = $region84
      $region83: #{_lambda_.3} parent=5 // pred_region
        %s1479 = ssub.s32 %s9, 2
        // Predicated region
        $region85: #{_lambda_.3} parent=83 // pred_check
          %p1480 = pneg %p106
        $region86: #{_lambda_.3} parent=83 // pred_check_branch
          %1482 = sbr.rel (%p1480) target = $region88
        $region87: #{_lambda_.3} parent=83 // pred_region
          %s1483 = sand.u32 %s91, 1
          %s1484 = sand.u32 %s91, 1
          %s1485 = smul.addr %s1484, 128
          %s1486 = scalar_lea.vmem [#allocation2], %s1485
        $region88: #{_lambda_.3} parent=83 // pred_fallthru
          _
      $region84: #{_lambda_.3} parent=5 // pred_fallthru
        _
    $region6: #{_lambda_.3} parent=1 // loop_footer
      %s13 = sadd.s32 1, %s9
    $region7: #{_lambda_.3} parent=1 // loop_footer_branch
      %8 = sbr.rel target = $region3
    $region8: #{_lambda_.3} parent=1 // loop_exit
      _

// kernel: _lambda_.5
$region0: #{_lambda_.5}
  #allocation0 [shape = 'u32[]', space=smem, size = 0x4, offset = 0x4, fixed_abs, tag = 'smem constant byte address 0x4 - core index']
  #allocation1 [shape = 'u32[144,128]{1,0:T(1,128)}', space=vmem, size = 0x12000, scoped, tag = 'internal scratch']
  %s0 = inlined_call_operand.vmem [shape: bf16[2,800], index: 0, kind: input, shape index: {}]
  %s1 = inlined_call_operand.vmem [shape: bf16[800,128], index: 1, kind: input, shape index: {}]
  %s2 = inlined_call_operand.vmem [shape: f32[1,128], index: 2, kind: input, shape index: {}]
  %s3 = inlined_call_operand.hbm [shape: f32[2,128], index: 3, kind: output, shape index: {}]
  %s4 = sld [smem:[#allocation0]]
  $region22: #{_lambda_.5} parent=0
    _
  %s6 = ssub.s32 1, %s4
  %s7 = scalar_select 0, %s6, %s4
  $region1: #{_lambda_.5} parent=0
    #allocation2 [shape = 'u8[1024]{0}', space=vmem, size = 0x400, scoped, tag = 'output window, operand 0, single buffered']
    #allocation3 [shape = 's32[1]{0}', space=sflag, size = 0x4, scoped, tag = 'scoped memory for _lambda_.5']
    %8 = vsyncpa [#allocation3], 0
    // Predicated region
    $region2: #{_lambda_.5} parent=1 // pred_check
      _
    $region3: #{_lambda_.5} parent=1 // pred_check_branch
      %10 = sbr.rel (0) target = $region5
    $region4: #{_lambda_.5} parent=1 // pred_region
      _
    $region5: #{_lambda_.5} parent=1 // pred_fallthru
      _
    // Predicated region
    $region6: #{_lambda_.5} parent=1 // pred_check
      _
    $region7: #{_lambda_.5} parent=1 // pred_check_branch
      %12 = sbr.rel (0) target = $region9
    $region8: #{_lambda_.5} parent=1 // pred_region
      _
    $region9: #{_lambda_.5} parent=1 // pred_fallthru
      _
    // Predicated region
    $region10: #{_lambda_.5} parent=1 // pred_check
      _
    $region11: #{_lambda_.5} parent=1 // pred_check_branch
      %14 = sbr.rel (0) target = $region13
    $region12: #{_lambda_.5} parent=1 // pred_region
      _
    $region13: #{_lambda_.5} parent=1 // pred_fallthru
      _
    %v16 = vld [vmem:[%s0] sm:$0x7f]
    %v17 = vld [vmem:[%s1] sm:$0xf]
    %v18 = vld [vmem:[%s1 + $0x4] sm:$0xf]
    %v19 = vld [vmem:[%s1 + $0x8] sm:$0xf]
    %v20 = vld [vmem:[%s1 + $0xc] sm:$0xf]
    %v21 = vld [vmem:[%s1 + $0x10] sm:$0xf]
    %v22 = vld [vmem:[%s1 + $0x14] sm:$0xf]
    %v23 = vld [vmem:[%s1 + $0x18] sm:$0xf]
    %v24 = vld [vmem:[%s1 + $0x1c] sm:$0xf]
    %v25 = vld [vmem:[%s1 + $0x20] sm:$0xf]
    %v26 = vld [vmem:[%s1 + $0x24] sm:$0xf]
    %v27 = vld [vmem:[%s1 + $0x28] sm:$0xf]
    %v28 = vld [vmem:[%s1 + $0x2c] sm:$0xf]
    %v29 = vld [vmem:[%s1 + $0x30] sm:$0xf]
    %v30 = vld [vmem:[%s1 + $0x34] sm:$0xf]
    %v31 = vld [vmem:[%s1 + $0x38] sm:$0xf]
    %v32 = vld [vmem:[%s1 + $0x3c] sm:$0xf]
    %v33 = vld [vmem:[%s1 + $0x40] sm:$0xf]
    %v34 = vld [vmem:[%s1 + $0x44] sm:$0xf]
    %v35 = vld [vmem:[%s1 + $0x48] sm:$0xf]
    %v36 = vld [vmem:[%s1 + $0x4c] sm:$0xf]
    %v37 = vld [vmem:[%s1 + $0x50] sm:$0xf]
    %v38 = vld [vmem:[%s1 + $0x54] sm:$0xf]
    %v39 = vld [vmem:[%s1 + $0x58] sm:$0xf]
    %v40 = vld [vmem:[%s1 + $0x5c] sm:$0xf]
    %v41 = vld [vmem:[%s1 + $0x60] sm:$0xf]
    %v42 = vld [vmem:[%s1 + $0x64] sm:$0xf]
    %v43 = vld [vmem:[%s1 + $0x68] sm:$0xf]
    %v44 = vld [vmem:[%s1 + $0x6c] sm:$0xf]
    %v45 = vld [vmem:[%s1 + $0x70] sm:$0xf]
    %v46 = vld [vmem:[%s1 + $0x74] sm:$0xf]
    %v47 = vld [vmem:[%s1 + $0x78] sm:$0xf]
    %v48 = vld [vmem:[%s1 + $0x7c] sm:$0xf]
    %v49 = vld [vmem:[%s1 + $0x80] sm:$0xf]
    %v50 = vld [vmem:[%s1 + $0x84] sm:$0xf]
    %v51 = vld [vmem:[%s1 + $0x88] sm:$0xf]
    %v52 = vld [vmem:[%s1 + $0x8c] sm:$0xf]
    %v53 = vld [vmem:[%s1 + $0x90] sm:$0xf]
    %v54 = vld [vmem:[%s1 + $0x94] sm:$0xf]
    %v55 = vld [vmem:[%s1 + $0x98] sm:$0xf]
    %v56 = vld [vmem:[%s1 + $0x9c] sm:$0xf]
    %v57 = vld [vmem:[%s1 + $0xa0] sm:$0xf]
    %v58 = vld [vmem:[%s1 + $0xa4] sm:$0xf]
    %v59 = vld [vmem:[%s1 + $0xa8] sm:$0xf]
    %v60 = vld [vmem:[%s1 + $0xac] sm:$0xf]
    %v61 = vld [vmem:[%s1 + $0xb0] sm:$0xf]
    %v62 = vld [vmem:[%s1 + $0xb4] sm:$0xf]
    %v63 = vld [vmem:[%s1 + $0xb8] sm:$0xf]
    %v64 = vld [vmem:[%s1 + $0xbc] sm:$0xf]
    %v65 = vld [vmem:[%s1 + $0xc0] sm:$0xf]
    %v66 = vld [vmem:[%s1 + $0xc4] sm:$0xf]
    %v67 = vld [vmem:[%s1 + $0xc8] sm:$0xf]
    %v68 = vld [vmem:[%s1 + $0xcc] sm:$0xf]
    %v69 = vld [vmem:[%s1 + $0xd0] sm:$0xf]
    %v70 = vld [vmem:[%s1 + $0xd4] sm:$0xf]
    %v71 = vld [vmem:[%s1 + $0xd8] sm:$0xf]
    %v72 = vld [vmem:[%s1 + $0xdc] sm:$0xf]
    %v73 = vld [vmem:[%s1 + $0xe0] sm:$0xf]
    %v74 = vld [vmem:[%s1 + $0xe4] sm:$0xf]
    %v75 = vld [vmem:[%s1 + $0xe8] sm:$0xf]
    %v76 = vld [vmem:[%s1 + $0xec] sm:$0xf]
    %v77 = vld [vmem:[%s1 + $0xf0] sm:$0xf]
    %v78 = vld [vmem:[%s1 + $0xf4] sm:$0xf]
    %v79 = vld [vmem:[%s1 + $0xf8] sm:$0xf]
    %v80 = vld [vmem:[%s1 + $0xfc] sm:$0xf]
    %v81 = vld [vmem:[%s1 + $0x100] sm:$0xf]
    %v82 = vld [vmem:[%s1 + $0x104] sm:$0xf]
    %v83 = vld [vmem:[%s1 + $0x108] sm:$0xf]
    %v84 = vld [vmem:[%s1 + $0x10c] sm:$0xf]
    %v85 = vld [vmem:[%s1 + $0x110] sm:$0xf]
    %v86 = vld [vmem:[%s1 + $0x114] sm:$0xf]
    %v87 = vld [vmem:[%s1 + $0x118] sm:$0xf]
    %v88 = vld [vmem:[%s1 + $0x11c] sm:$0xf]
    %v89 = vld [vmem:[%s1 + $0x120] sm:$0xf]
    %v90 = vld [vmem:[%s1 + $0x124] sm:$0xf]
    %v91 = vld [vmem:[%s1 + $0x128] sm:$0xf]
    %v92 = vld [vmem:[%s1 + $0x12c] sm:$0xf]
    %v93 = vld [vmem:[%s1 + $0x130] sm:$0xf]
    %v94 = vld [vmem:[%s1 + $0x134] sm:$0xf]
    %v95 = vld [vmem:[%s1 + $0x138] sm:$0xf]
    %v96 = vld [vmem:[%s1 + $0x13c] sm:$0xf]
    %v97 = vld [vmem:[%s1 + $0x140] sm:$0xf]
    %v98 = vld [vmem:[%s1 + $0x144] sm:$0xf]
    %v99 = vld [vmem:[%s1 + $0x148] sm:$0xf]
    %v100 = vld [vmem:[%s1 + $0x14c] sm:$0xf]
    %v101 = vld [vmem:[%s1 + $0x150] sm:$0xf]
    %v102 = vld [vmem:[%s1 + $0x154] sm:$0xf]
    %v103 = vld [vmem:[%s1 + $0x158] sm:$0xf]
    %v104 = vld [vmem:[%s1 + $0x15c] sm:$0xf]
    %v105 = vld [vmem:[%s1 + $0x160] sm:$0xf]
    %v106 = vld [vmem:[%s1 + $0x164] sm:$0xf]
    %v107 = vld [vmem:[%s1 + $0x168] sm:$0xf]
    %v108 = vld [vmem:[%s1 + $0x16c] sm:$0xf]
    %v109 = vld [vmem:[%s1 + $0x170] sm:$0xf]
    %v110 = vld [vmem:[%s1 + $0x174] sm:$0xf]
    %v111 = vld [vmem:[%s1 + $0x178] sm:$0xf]
    %v112 = vld [vmem:[%s1 + $0x17c] sm:$0xf]
    %v113 = vld [vmem:[%s1 + $0x180] sm:$0xf]
    %v114 = vld [vmem:[%s1 + $0x184] sm:$0xf]
    %v115 = vld [vmem:[%s1 + $0x188] sm:$0xf]
    %v116 = vld [vmem:[%s1 + $0x18c] sm:$0xf]
    %v117 = vld [vmem:[%s2] sm:$0x1]
    %v119 = vlaneseq
    %v120 = vshrl.u32 %v119, 7
    %v121 = vsub.s32 0, %v120
    %v122 = vrot.slane %v117, %v121
    %v125 = vcombine.high %v16, %v16
    %v127 = vunpack.c.l.s4 1966171168
    %v128 = vunpack.c.0.s8 %v127
    %v129 = vlaneseq
    %v130 = vshrl.u32 %v129, 7
    %v131 = vsub.s32 %v128, %v130
    %v132 = vrot.slane %v16, %v131
    %v134 = vunpack.c.l.s4 1966171168
    %v135 = vunpack.c.0.s8 %v134
    %v136 = vlaneseq
    %v137 = vshrl.u32 %v136, 7
    %v138 = vsub.s32 %v135, %v137
    %v139 = vrot.slane %v125, %v138
    %v140 = vcombine.high %v132, %v132
    %v141 = vcombine.high %v139, %v139
    %v143 = vunpack.c.l.s4 1966171168
    %v144 = vunpack.c.0.s8 %v143
    %v145 = vlaneseq
    %v146 = vshrl.u32 %v145, 7
    %v147 = vsub.s32 %v144, %v146
    %v148 = vrot.slane %v132, %v147
    %v150 = vunpack.c.l.s4 1966171168
    %v151 = vunpack.c.0.s8 %v150
    %v152 = vlaneseq
    %v153 = vshrl.u32 %v152, 7
    %v154 = vsub.s32 %v151, %v153
    %v155 = vrot.slane %v139, %v154
    %v157 = vunpack.c.l.s4 1966171168
    %v158 = vunpack.c.0.s8 %v157
    %v159 = vlaneseq
    %v160 = vshrl.u32 %v159, 7
    %v161 = vsub.s32 %v158, %v160
    %v162 = vrot.slane %v140, %v161
    %v164 = vunpack.c.l.s4 1966171168
    %v165 = vunpack.c.0.s8 %v164
    %v166 = vlaneseq
    %v167 = vshrl.u32 %v166, 7
    %v168 = vsub.s32 %v165, %v167
    %v169 = vrot.slane %v141, %v168
    %v170 = vcombine.high %v148, %v148
    %v171 = vcombine.high %v155, %v155
    %v172 = vcombine.high %v162, %v162
    %v279 = vunpack.c.l.b16 %v17
    %v280 = vunpack.c.l.b16 %v18
    %v281 = vunpack.c.l.b16 %v19
    %v282 = vunpack.c.l.b16 %v20
    %v283 = vunpack.c.l.b16 %v21
    %v284 = vunpack.c.l.b16 %v22
    %v285 = vunpack.c.l.b16 %v23
    %v286 = vunpack.c.l.b16 %v24
    %v287 = vunpack.c.l.b16 %v25
    %v288 = vunpack.c.l.b16 %v26
    %v289 = vunpack.c.l.b16 %v27
    %v290 = vunpack.c.l.b16 %v28
    %v291 = vunpack.c.l.b16 %v29
    %v292 = vunpack.c.l.b16 %v30
    %v293 = vunpack.c.l.b16 %v31
    %v294 = vunpack.c.l.b16 %v32
    %v295 = vunpack.c.l.b16 %v33
    %v296 = vunpack.c.l.b16 %v34
    %v297 = vunpack.c.l.b16 %v35
    %v298 = vunpack.c.l.b16 %v36
    %v299 = vunpack.c.l.b16 %v37
    %v300 = vunpack.c.l.b16 %v38
    %v301 = vunpack.c.l.b16 %v39
    %v302 = vunpack.c.l.b16 %v40
    %v303 = vunpack.c.l.b16 %v41
    %v304 = vunpack.c.l.b16 %v42
    %v305 = vunpack.c.l.b16 %v43
    %v306 = vunpack.c.l.b16 %v44
    %v307 = vunpack.c.l.b16 %v45
    %v308 = vunpack.c.l.b16 %v46
    %v309 = vunpack.c.l.b16 %v47
    %v310 = vunpack.c.l.b16 %v48
    %v311 = vunpack.c.l.b16 %v49
    %v312 = vunpack.c.l.b16 %v50
    %v313 = vunpack.c.l.b16 %v51
    %v314 = vunpack.c.l.b16 %v52
    %v315 = vunpack.c.l.b16 %v53
    %v316 = vunpack.c.l.b16 %v54
    %v317 = vunpack.c.l.b16 %v55
    %v318 = vunpack.c.l.b16 %v56
    %v319 = vunpack.c.l.b16 %v57
    %v320 = vunpack.c.l.b16 %v58
    %v321 = vunpack.c.l.b16 %v59
    %v322 = vunpack.c.l.b16 %v60
    %v323 = vunpack.c.l.b16 %v61
    %v324 = vunpack.c.l.b16 %v62
    %v325 = vunpack.c.l.b16 %v63
    %v326 = vunpack.c.l.b16 %v64
    %v327 = vunpack.c.l.b16 %v65
    %v328 = vunpack.c.l.b16 %v66
    %v329 = vunpack.c.l.b16 %v67
    %v330 = vunpack.c.l.b16 %v68
    %v331 = vunpack.c.l.b16 %v69
    %v332 = vunpack.c.l.b16 %v70
    %v333 = vunpack.c.l.b16 %v71
    %v334 = vunpack.c.l.b16 %v72
    %v335 = vunpack.c.l.b16 %v73
    %v336 = vunpack.c.l.b16 %v74
    %v337 = vunpack.c.l.b16 %v75
    %v338 = vunpack.c.l.b16 %v76
    %v339 = vunpack.c.l.b16 %v77
    %v340 = vunpack.c.l.b16 %v78
    %v341 = vunpack.c.l.b16 %v79
    %v342 = vunpack.c.l.b16 %v80
    %v343 = vunpack.c.l.b16 %v81
    %v344 = vunpack.c.l.b16 %v82
    %v345 = vunpack.c.l.b16 %v83
    %v346 = vunpack.c.l.b16 %v84
    %v347 = vunpack.c.l.b16 %v85
    %v348 = vunpack.c.l.b16 %v86
    %v349 = vunpack.c.l.b16 %v87
    %v350 = vunpack.c.l.b16 %v88
    %v351 = vunpack.c.l.b16 %v89
    %v352 = vunpack.c.l.b16 %v90
    %v353 = vunpack.c.l.b16 %v91
    %v354 = vunpack.c.l.b16 %v92
    %v355 = vunpack.c.l.b16 %v93
    %v356 = vunpack.c.l.b16 %v94
    %v357 = vunpack.c.l.b16 %v95
    %v358 = vunpack.c.l.b16 %v96
    %v359 = vunpack.c.l.b16 %v97
    %v360 = vunpack.c.l.b16 %v98
    %v361 = vunpack.c.l.b16 %v99
    %v362 = vunpack.c.l.b16 %v100
    %v363 = vunpack.c.l.b16 %v101
    %v364 = vunpack.c.l.b16 %v102
    %v365 = vunpack.c.l.b16 %v103
    %v366 = vunpack.c.l.b16 %v104
    %v367 = vunpack.c.l.b16 %v105
    %v368 = vunpack.c.l.b16 %v106
    %v369 = vunpack.c.l.b16 %v107
    %v370 = vunpack.c.l.b16 %v108
    %v371 = vunpack.c.l.b16 %v109
    %v372 = vunpack.c.l.b16 %v110
    %v373 = vunpack.c.l.b16 %v111
    %v374 = vunpack.c.l.b16 %v112
    %v375 = vunpack.c.l.b16 %v113
    %v376 = vunpack.c.l.b16 %v114
    %v377 = vunpack.c.l.b16 %v115
    %v378 = vunpack.c.l.b16 %v116
    %v379 = vpack.c.b16 %v280, %v279
    %v380 = vpack.c.b16 %v282, %v281
    %v381 = vpack.c.b16 %v284, %v283
    %v382 = vpack.c.b16 %v286, %v285
    %v383 = vpack.c.b16 %v288, %v287
    %v384 = vpack.c.b16 %v290, %v289
    %v385 = vpack.c.b16 %v292, %v291
    %v386 = vpack.c.b16 %v294, %v293
    %v387 = vpack.c.b16 %v296, %v295
    %v388 = vpack.c.b16 %v298, %v297
    %v389 = vpack.c.b16 %v300, %v299
    %v390 = vpack.c.b16 %v302, %v301
    %v391 = vpack.c.b16 %v304, %v303
    %v392 = vpack.c.b16 %v306, %v305
    %v393 = vpack.c.b16 %v308, %v307
    %v394 = vpack.c.b16 %v310, %v309
    %v395 = vpack.c.b16 %v312, %v311
    %v396 = vpack.c.b16 %v314, %v313
    %v397 = vpack.c.b16 %v316, %v315
    %v398 = vpack.c.b16 %v318, %v317
    %v399 = vpack.c.b16 %v320, %v319
    %v400 = vpack.c.b16 %v322, %v321
    %v401 = vpack.c.b16 %v324, %v323
    %v402 = vpack.c.b16 %v326, %v325
    %v403 = vpack.c.b16 %v328, %v327
    %v404 = vpack.c.b16 %v330, %v329
    %v405 = vpack.c.b16 %v332, %v331
    %v406 = vpack.c.b16 %v334, %v333
    %v407 = vpack.c.b16 %v336, %v335
    %v408 = vpack.c.b16 %v338, %v337
    %v409 = vpack.c.b16 %v340, %v339
    %v410 = vpack.c.b16 %v342, %v341
    %v411 = vpack.c.b16 %v344, %v343
    %v412 = vpack.c.b16 %v346, %v345
    %v413 = vpack.c.b16 %v348, %v347
    %v414 = vpack.c.b16 %v350, %v349
    %v415 = vpack.c.b16 %v352, %v351
    %v416 = vpack.c.b16 %v354, %v353
    %v417 = vpack.c.b16 %v356, %v355
    %v418 = vpack.c.b16 %v358, %v357
    %v419 = vpack.c.b16 %v360, %v359
    %v420 = vpack.c.b16 %v362, %v361
    %v421 = vpack.c.b16 %v364, %v363
    %v422 = vpack.c.b16 %v366, %v365
    %v423 = vpack.c.b16 %v368, %v367
    %v424 = vpack.c.b16 %v370, %v369
    %v425 = vpack.c.b16 %v372, %v371
    %v426 = vpack.c.b16 %v374, %v373
    %v427 = vpack.c.b16 %v376, %v375
    %v428 = vpack.c.b16 %v378, %v377
    %vm479 = vcmask 261120
    %v481 = vsel %vm479, %v171, 0
    %483 = vmatprep.subr.bf16.mxu0 0
    %484 = vmatpush1.bf16.msra.mxu0 %v379
    %485 = vmatprep.subr.bf16.mxu0 0
    %486 = vmatpush1.bf16.msra.mxu0 %v380
    %487 = vmatprep.subr.bf16.mxu0 0
    %488 = vmatpush1.bf16.msra.mxu0 %v381
    %489 = vmatprep.subr.bf16.mxu0 0
    %490 = vmatpush1.bf16.msra.mxu0 %v382
    %491 = vmatprep.subr.bf16.mxu0 0
    %492 = vmatpush1.bf16.msra.mxu0 %v383
    %493 = vmatprep.subr.bf16.mxu0 0
    %494 = vmatpush1.bf16.msra.mxu0 %v384
    %495 = vmatprep.subr.bf16.mxu0 0
    %496 = vmatpush1.bf16.msra.mxu0 %v385
    %497 = vmatprep.subr.bf16.mxu0 0
    %498 = vmatpush1.bf16.msra.mxu0 %v386
    %499 = vmatprep.subr.bf16.mxu0 0
    %500 = vmatpush1.bf16.msra.mxu0 %v387
    %501 = vmatprep.subr.bf16.mxu0 0
    %502 = vmatpush1.bf16.msra.mxu0 %v388
    %503 = vmatprep.subr.bf16.mxu0 0
    %504 = vmatpush1.bf16.msra.mxu0 %v389
    %505 = vmatprep.subr.bf16.mxu0 0
    %506 = vmatpush1.bf16.msra.mxu0 %v390
    %507 = vmatprep.subr.bf16.mxu0 0
    %508 = vmatpush1.bf16.msra.mxu0 %v391
    %509 = vmatprep.subr.bf16.mxu0 0
    %510 = vmatpush1.bf16.msra.mxu0 %v392
    %511 = vmatprep.subr.bf16.mxu0 0
    %512 = vmatpush1.bf16.msra.mxu0 %v393
    %513 = vmatprep.subr.bf16.mxu0 0
    %514 = vmatpush1.bf16.msra.mxu0 %v394
    %515 = vmatprep.mubr.bf16.mxu0 %v162
    %516 = vmatmul.mubr.bf16.gmra.mrb[0].mxu0 %v148
    %v517 = vpop.f32.mrb[0].mxu0
    %v518 = vadd.f32 %v122, %v517
    %v519 = vpop.f32.mrb[0].mxu0
    %v520 = vpop.f32.mrb[0].mxu0
    %v521 = vpop.f32.mrb[0].mxu0
    %522 = vdwg.mxu0
    %523 = vmatprep.subr.bf16.mxu0 0
    %524 = vmatpush1.bf16.msra.mxu0 %v395
    %525 = vmatprep.subr.bf16.mxu0 0
    %526 = vmatpush1.bf16.msra.mxu0 %v396
    %527 = vmatprep.subr.bf16.mxu0 0
    %528 = vmatpush1.bf16.msra.mxu0 %v397
    %529 = vmatprep.subr.bf16.mxu0 0
    %530 = vmatpush1.bf16.msra.mxu0 %v398
    %531 = vmatprep.subr.bf16.mxu0 0
    %532 = vmatpush1.bf16.msra.mxu0 %v399
    %533 = vmatprep.subr.bf16.mxu0 0
    %534 = vmatpush1.bf16.msra.mxu0 %v400
    %535 = vmatprep.subr.bf16.mxu0 0
    %536 = vmatpush1.bf16.msra.mxu0 %v401
    %537 = vmatprep.subr.bf16.mxu0 0
    %538 = vmatpush1.bf16.msra.mxu0 %v402
    %539 = vmatprep.subr.bf16.mxu0 0
    %540 = vmatpush1.bf16.msra.mxu0 %v403
    %541 = vmatprep.subr.bf16.mxu0 0
    %542 = vmatpush1.bf16.msra.mxu0 %v404
    %543 = vmatprep.subr.bf16.mxu0 0
    %544 = vmatpush1.bf16.msra.mxu0 %v405
    %545 = vmatprep.subr.bf16.mxu0 0
    %546 = vmatpush1.bf16.msra.mxu0 %v406
    %547 = vmatprep.subr.bf16.mxu0 0
    %548 = vmatpush1.bf16.msra.mxu0 %v407
    %549 = vmatprep.subr.bf16.mxu0 0
    %550 = vmatpush1.bf16.msra.mxu0 %v408
    %551 = vmatprep.subr.bf16.mxu0 0
    %552 = vmatpush1.bf16.msra.mxu0 %v409
    %553 = vmatprep.subr.bf16.mxu0 0
    %554 = vmatpush1.bf16.msra.mxu0 %v410
    %555 = vmatprep.mubr.bf16.mxu0 %v172
    %556 = vmatmul.mubr.bf16.gmra.mrb[0].mxu0 %v170
    %v557 = vpop.f32.mrb[0].mxu0
    %v558 = vadd.f32 %v518, %v557
    %v559 = vpop.f32.mrb[0].mxu0
    %v560 = vpop.f32.mrb[0].mxu0
    %v561 = vpop.f32.mrb[0].mxu0
    %562 = vdwg.mxu0
    %563 = vmatprep.subr.bf16.mxu0 0
    %564 = vmatpush1.bf16.msra.mxu0 %v411
    %565 = vmatprep.subr.bf16.mxu0 0
    %566 = vmatpush1.bf16.msra.mxu0 %v412
    %567 = vmatprep.subr.bf16.mxu0 0
    %568 = vmatpush1.bf16.msra.mxu0 %v413
    %569 = vmatprep.subr.bf16.mxu0 0
    %570 = vmatpush1.bf16.msra.mxu0 %v414
    %571 = vmatprep.subr.bf16.mxu0 0
    %572 = vmatpush1.bf16.msra.mxu0 %v415
    %573 = vmatprep.subr.bf16.mxu0 0
    %574 = vmatpush1.bf16.msra.mxu0 %v416
    %575 = vmatprep.subr.bf16.mxu0 0
    %576 = vmatpush1.bf16.msra.mxu0 %v417
    %577 = vmatprep.subr.bf16.mxu0 0
    %578 = vmatpush1.bf16.msra.mxu0 %v418
    %579 = vmatprep.subr.bf16.mxu0 0
    %580 = vmatpush1.bf16.msra.mxu0 %v419
    %581 = vmatprep.subr.bf16.mxu0 0
    %582 = vmatpush1.bf16.msra.mxu0 %v420
    %583 = vmatprep.subr.bf16.mxu0 0
    %584 = vmatpush1.bf16.msra.mxu0 %v421
    %585 = vmatprep.subr.bf16.mxu0 0
    %586 = vmatpush1.bf16.msra.mxu0 %v422
    %587 = vmatprep.subr.bf16.mxu0 0
    %588 = vmatpush1.bf16.msra.mxu0 %v423
    %589 = vmatprep.subr.bf16.mxu0 0
    %590 = vmatpush1.bf16.msra.mxu0 %v424
    %591 = vmatprep.subr.bf16.mxu0 0
    %592 = vmatpush1.bf16.msra.mxu0 %v425
    %593 = vmatprep.subr.bf16.mxu0 0
    %594 = vmatpush1.bf16.msra.mxu0 %v426
    %595 = vmatprep.mubr.bf16.mxu0 %v169
    %596 = vmatmul.mubr.bf16.gmra.mrb[0].mxu0 %v155
    %v597 = vpop.f32.mrb[0].mxu0
    %v598 = vadd.f32 %v558, %v597
    %v599 = vpop.f32.mrb[0].mxu0
    %v600 = vpop.f32.mrb[0].mxu0
    %v601 = vpop.f32.mrb[0].mxu0
    %602 = vdwg.mxu0
    %603 = vmatprep.subr.bf16.mxu0 0
    %604 = vmatpush1.bf16.msra.mxu0 %v427
    %605 = vmatprep.subr.bf16.mxu0 0
    %606 = vmatpush1.bf16.msra.mxu0 %v428
    %607 = vmatprep.subr.bf16.mxu0 0
    %608 = vmatpush1.bf16.msra.mxu0 0
    %609 = vmatprep.subr.bf16.mxu0 0
    %610 = vmatpush1.bf16.msra.mxu0 0
    %611 = vmatprep.subr.bf16.mxu0 0
    %612 = vmatpush1.bf16.msra.mxu0 0
    %613 = vmatprep.subr.bf16.mxu0 0
    %614 = vmatpush1.bf16.msra.mxu0 0
    %615 = vmatprep.subr.bf16.mxu0 0
    %616 = vmatpush1.bf16.msra.mxu0 0
    %617 = vmatprep.subr.bf16.mxu0 0
    %618 = vmatpush1.bf16.msra.mxu0 0
    %619 = vmatprep.subr.bf16.mxu0 0
    %620 = vmatpush1.bf16.msra.mxu0 0
    %621 = vmatprep.subr.bf16.mxu0 0
    %622 = vmatpush1.bf16.msra.mxu0 0
    %623 = vmatprep.subr.bf16.mxu0 0
    %624 = vmatpush1.bf16.msra.mxu0 0
    %625 = vmatprep.subr.bf16.mxu0 0
    %626 = vmatpush1.bf16.msra.mxu0 0
    %627 = vmatprep.subr.bf16.mxu0 0
    %628 = vmatpush1.bf16.msra.mxu0 0
    %629 = vmatprep.subr.bf16.mxu0 0
    %630 = vmatpush1.bf16.msra.mxu0 0
    %631 = vmatprep.subr.bf16.mxu0 0
    %632 = vmatpush1.bf16.msra.mxu0 0
    %633 = vmatprep.subr.bf16.mxu0 0
    %634 = vmatpush1.bf16.msra.mxu0 0
    %635 = vmatprep.mubr.bf16.mxu0 0
    %636 = vmatmul.mubr.bf16.gmra.mrb[0].mxu0 %v481
    %v637 = vpop.f32.mrb[0].mxu0
    %v638 = vadd.f32 %v598, %v637
    %v639 = vpop.f32.mrb[0].mxu0
    %v640 = vpop.f32.mrb[0].mxu0
    %v641 = vpop.f32.mrb[0].mxu0
    %642 = vdwg.mxu0
    %643 = vst [vmem:[#allocation2] sm:$0x3] %v638
    // Predicated region
    $region14: #{_lambda_.5} parent=1 // pred_check
      _
    $region15: #{_lambda_.5} parent=1 // pred_check_branch
      %645 = sbr.rel (0) target = $region17
    $region16: #{_lambda_.5} parent=1 // pred_region
      %s647 = ssub.s32 32, 32
      %648 = vsyncadd [#allocation3], %s647
      %s650 = sshll.u32 [#allocation2], 4
      %s651 = int_to_ptr.vmem [resolvable:$true] %s650
      %653 = dma.vmem_to_hbm [thread:$0]  %s651, 32, %s3, [#allocation3]
    $region17: #{_lambda_.5} parent=1 // pred_fallthru
      _
    // Predicated region
    $region18: #{_lambda_.5} parent=1 // pred_check
      _
    $region19: #{_lambda_.5} parent=1 // pred_check_branch
      %655 = sbr.rel (0) target = $region21
    $region20: #{_lambda_.5} parent=1 // pred_region
      %656 = dma.done [#allocation3], 32
    $region21: #{_lambda_.5} parent=1 // pred_fallthru
      _
    %657 = vsyncpa [#allocation3], 1

// kernel: _lambda_.4
$region0: #{_lambda_.4}
  #allocation0 [shape = 'u32[]', space=smem, size = 0x4, offset = 0x4, fixed_abs, tag = 'smem constant byte address 0x4 - core index']
  #allocation1 [shape = 'u32[144,128]{1,0:T(1,128)}', space=vmem, size = 0x12000, scoped, tag = 'internal scratch']
  %s0 = inlined_call_operand.vmem [shape: bf16[4,50,400], index: 0, kind: input, shape index: {}]
  %s1 = inlined_call_operand.vmem [shape: bf16[400,128], index: 1, kind: input, shape index: {}]
  %s2 = inlined_call_operand.vmem [shape: f32[1,128], index: 2, kind: input, shape index: {}]
  %s3 = inlined_call_operand.vmem [shape: bf16[50,128], index: 3, kind: output, shape index: {}]
  %s4 = sld [smem:[#allocation0]]
  $region22: #{_lambda_.4} parent=0
    _
  %s6 = ssub.s32 1, %s4
  %s7 = scalar_select 0, %s6, %s4
  // Predicated region
  $region2: #{_lambda_.4} parent=0 // pred_check
    _
  $region3: #{_lambda_.4} parent=0 // pred_check_branch
    %9 = sbr.rel (0) target = $region5
  $region4: #{_lambda_.4} parent=0 // pred_region
    _
  $region5: #{_lambda_.4} parent=0 // pred_fallthru
    _
  // Predicated region
  $region6: #{_lambda_.4} parent=0 // pred_check
    _
  $region7: #{_lambda_.4} parent=0 // pred_check_branch
    %11 = sbr.rel (0) target = $region9
  $region8: #{_lambda_.4} parent=0 // pred_region
    _
  $region9: #{_lambda_.4} parent=0 // pred_fallthru
    _
  // Predicated region
  $region10: #{_lambda_.4} parent=0 // pred_check
    _
  $region11: #{_lambda_.4} parent=0 // pred_check_branch
    %13 = sbr.rel (0) target = $region13
  $region12: #{_lambda_.4} parent=0 // pred_region
    _
  $region13: #{_lambda_.4} parent=0 // pred_fallthru
    _
  %v15 = vld [vmem:[%s1] sm:$0xf]
  %v16 = vld [vmem:[%s1 + $0x4] sm:$0xf]
  %v17 = vld [vmem:[%s1 + $0x8] sm:$0xf]
  %v18 = vld [vmem:[%s1 + $0xc] sm:$0xf]
  %v19 = vld [vmem:[%s1 + $0x10] sm:$0xf]
  %v20 = vld [vmem:[%s1 + $0x14] sm:$0xf]
  %v21 = vld [vmem:[%s1 + $0x18] sm:$0xf]
  %v22 = vld [vmem:[%s1 + $0x1c] sm:$0xf]
  %v23 = vld [vmem:[%s1 + $0x20] sm:$0xf]
  %v24 = vld [vmem:[%s1 + $0x24] sm:$0xf]
  %v25 = vld [vmem:[%s1 + $0x28] sm:$0xf]
  %v26 = vld [vmem:[%s1 + $0x2c] sm:$0xf]
  %v27 = vld [vmem:[%s1 + $0x30] sm:$0xf]
  %v28 = vld [vmem:[%s1 + $0x34] sm:$0xf]
  %v29 = vld [vmem:[%s1 + $0x38] sm:$0xf]
  %v30 = vld [vmem:[%s1 + $0x3c] sm:$0xf]
  %v31 = vld [vmem:[%s1 + $0x40] sm:$0xf]
  %v32 = vld [vmem:[%s1 + $0x44] sm:$0xf]
  %v33 = vld [vmem:[%s1 + $0x48] sm:$0xf]
  %v34 = vld [vmem:[%s1 + $0x4c] sm:$0xf]
  %v35 = vld [vmem:[%s1 + $0x50] sm:$0xf]
  %v36 = vld [vmem:[%s1 + $0x54] sm:$0xf]
  %v37 = vld [vmem:[%s1 + $0x58] sm:$0xf]
  %v38 = vld [vmem:[%s1 + $0x5c] sm:$0xf]
  %v39 = vld [vmem:[%s1 + $0x60] sm:$0xf]
  %v40 = vld [vmem:[%s1 + $0x64] sm:$0xf]
  %v41 = vld [vmem:[%s1 + $0x68] sm:$0xf]
  %v42 = vld [vmem:[%s1 + $0x6c] sm:$0xf]
  %v43 = vld [vmem:[%s1 + $0x70] sm:$0xf]
  %v44 = vld [vmem:[%s1 + $0x74] sm:$0xf]
  %v45 = vld [vmem:[%s1 + $0x78] sm:$0xf]
  %v46 = vld [vmem:[%s1 + $0x7c] sm:$0xf]
  %v47 = vld [vmem:[%s1 + $0x80] sm:$0xf]
  %v48 = vld [vmem:[%s1 + $0x84] sm:$0xf]
  %v49 = vld [vmem:[%s1 + $0x88] sm:$0xf]
  %v50 = vld [vmem:[%s1 + $0x8c] sm:$0xf]
  %v51 = vld [vmem:[%s1 + $0x90] sm:$0xf]
  %v52 = vld [vmem:[%s1 + $0x94] sm:$0xf]
  %v53 = vld [vmem:[%s1 + $0x98] sm:$0xf]
  %v54 = vld [vmem:[%s1 + $0x9c] sm:$0xf]
  %v55 = vld [vmem:[%s1 + $0xa0] sm:$0xf]
  %v56 = vld [vmem:[%s1 + $0xa4] sm:$0xf]
  %v57 = vld [vmem:[%s1 + $0xa8] sm:$0xf]
  %v58 = vld [vmem:[%s1 + $0xac] sm:$0xf]
  %v59 = vld [vmem:[%s1 + $0xb0] sm:$0xf]
  %v60 = vld [vmem:[%s1 + $0xb4] sm:$0xf]
  %v61 = vld [vmem:[%s1 + $0xb8] sm:$0xf]
  %v62 = vld [vmem:[%s1 + $0xbc] sm:$0xf]
  %v63 = vld [vmem:[%s1 + $0xc0] sm:$0xf]
  %v64 = vld [vmem:[%s1 + $0xc4] sm:$0xf]
  %v65 = vld [vmem:[%s0] sm:$0xff]
  %v66 = vld [vmem:[%s0 + $0x8] sm:$0xff]
  %v67 = vld [vmem:[%s0 + $0x10] sm:$0xff]
  %v68 = vld [vmem:[%s0 + $0x18] sm:$0xff]
  %v69 = vld [vmem:[%s0 + $0x20] sm:$0xff]
  %v70 = vld [vmem:[%s0 + $0x28] sm:$0xff]
  %v71 = vld [vmem:[%s0 + $0x30] sm:$0xff]
  %v72 = vld [vmem:[%s0 + $0x38] sm:$0xff]
  %v73 = vld [vmem:[%s0 + $0x40] sm:$0xff]
  %v74 = vld [vmem:[%s0 + $0x48] sm:$0xff]
  %v75 = vld [vmem:[%s0 + $0x50] sm:$0xff]
  %v76 = vld [vmem:[%s0 + $0x58] sm:$0xff]
  %v77 = vld [vmem:[%s0 + $0x60] sm:$0x11]
  %v78 = vld [vmem:[%s0 + $0x68] sm:$0x11]
  %v93 = vunpack.c.l.b16 %v65
  %v94 = vunpack.c.h.b16 %v65
  %v95 = vunpack.c.l.b16 %v66
  %v96 = vunpack.c.h.b16 %v66
  %v97 = vunpack.c.l.b16 %v67
  %v98 = vunpack.c.h.b16 %v67
  %v99 = vunpack.c.l.b16 %v68
  %v100 = vunpack.c.h.b16 %v68
  %v101 = vunpack.c.l.b16 %v69
  %v102 = vunpack.c.h.b16 %v69
  %v103 = vunpack.c.l.b16 %v70
  %v104 = vunpack.c.h.b16 %v70
  %v105 = vunpack.c.l.b16 %v71
  %v106 = vunpack.c.h.b16 %v71
  %v107 = vunpack.c.l.b16 %v72
  %v108 = vunpack.c.h.b16 %v72
  %v109 = vunpack.c.l.b16 %v73
  %v110 = vunpack.c.h.b16 %v73
  %v111 = vunpack.c.l.b16 %v74
  %v112 = vunpack.c.h.b16 %v74
  %v113 = vunpack.c.l.b16 %v75
  %v114 = vunpack.c.h.b16 %v75
  %v115 = vunpack.c.l.b16 %v76
  %v116 = vunpack.c.h.b16 %v76
  %v117 = vunpack.c.l.b16 %v77
  %v118 = vunpack.c.h.b16 %v77
  %v119 = vunpack.c.l.b16 %v78
  %v120 = vunpack.c.h.b16 %v78
  %v121 = vpack.c.b16 %v97, %v93
  %v122 = vpack.c.b16 %v98, %v94
  %v123 = vpack.c.b16 %v99, %v95
  %v124 = vpack.c.b16 %v100, %v96
  %v125 = vpack.c.b16 %v105, %v101
  %v126 = vpack.c.b16 %v106, %v102
  %v127 = vpack.c.b16 %v107, %v103
  %v128 = vpack.c.b16 %v108, %v104
  %v129 = vpack.c.b16 %v113, %v109
  %v130 = vpack.c.b16 %v114, %v110
  %v131 = vpack.c.b16 %v115, %v111
  %v132 = vpack.c.b16 %v116, %v112
  %v133 = vpack.c.b16 %v117, %v117
  %v134 = vpack.c.b16 %v118, %v118
  %v135 = vpack.c.b16 %v119, %v119
  %v136 = vpack.c.b16 %v120, %v120
  %v199 = vunpack.c.l.b16 %v15
  %v200 = vunpack.c.l.b16 %v16
  %v201 = vunpack.c.l.b16 %v17
  %v202 = vunpack.c.l.b16 %v18
  %v203 = vunpack.c.l.b16 %v19
  %v204 = vunpack.c.l.b16 %v20
  %v205 = vunpack.c.l.b16 %v21
  %v206 = vunpack.c.l.b16 %v22
  %v207 = vunpack.c.l.b16 %v23
  %v208 = vunpack.c.l.b16 %v24
  %v209 = vunpack.c.l.b16 %v25
  %v210 = vunpack.c.l.b16 %v26
  %v211 = vunpack.c.l.b16 %v27
  %v212 = vunpack.c.l.b16 %v28
  %v213 = vunpack.c.l.b16 %v29
  %v214 = vunpack.c.l.b16 %v30
  %v215 = vunpack.c.l.b16 %v31
  %v216 = vunpack.c.l.b16 %v32
  %v217 = vunpack.c.l.b16 %v33
  %v218 = vunpack.c.l.b16 %v34
  %v219 = vunpack.c.l.b16 %v35
  %v220 = vunpack.c.l.b16 %v36
  %v221 = vunpack.c.l.b16 %v37
  %v222 = vunpack.c.l.b16 %v38
  %v223 = vunpack.c.l.b16 %v39
  %v224 = vunpack.c.l.b16 %v40
  %v225 = vunpack.c.l.b16 %v41
  %v226 = vunpack.c.l.b16 %v42
  %v227 = vunpack.c.l.b16 %v43
  %v228 = vunpack.c.l.b16 %v44
  %v229 = vunpack.c.l.b16 %v45
  %v230 = vunpack.c.l.b16 %v46
  %v231 = vunpack.c.l.b16 %v47
  %v232 = vunpack.c.l.b16 %v48
  %v233 = vunpack.c.l.b16 %v49
  %v234 = vunpack.c.l.b16 %v50
  %v235 = vunpack.c.l.b16 %v51
  %v236 = vunpack.c.l.b16 %v52
  %v237 = vunpack.c.l.b16 %v53
  %v238 = vunpack.c.l.b16 %v54
  %v239 = vunpack.c.l.b16 %v55
  %v240 = vunpack.c.l.b16 %v56
  %v241 = vunpack.c.l.b16 %v57
  %v242 = vunpack.c.l.b16 %v58
  %v243 = vunpack.c.l.b16 %v59
  %v244 = vunpack.c.l.b16 %v60
  %v245 = vunpack.c.l.b16 %v61
  %v246 = vunpack.c.l.b16 %v62
  %v247 = vunpack.c.l.b16 %v63
  %v248 = vunpack.c.l.b16 %v64
  %v249 = vpack.c.b16 %v200, %v199
  %v250 = vpack.c.b16 %v202, %v201
  %v251 = vpack.c.b16 %v204, %v203
  %v252 = vpack.c.b16 %v206, %v205
  %v253 = vpack.c.b16 %v208, %v207
  %v254 = vpack.c.b16 %v210, %v209
  %v255 = vpack.c.b16 %v212, %v211
  %v256 = vpack.c.b16 %v214, %v213
  %v257 = vpack.c.b16 %v216, %v215
  %v258 = vpack.c.b16 %v218, %v217
  %v259 = vpack.c.b16 %v220, %v219
  %v260 = vpack.c.b16 %v222, %v221
  %v261 = vpack.c.b16 %v224, %v223
  %v262 = vpack.c.b16 %v226, %v225
  %v263 = vpack.c.b16 %v228, %v227
  %v264 = vpack.c.b16 %v230, %v229
  %v265 = vpack.c.b16 %v232, %v231
  %v266 = vpack.c.b16 %v234, %v233
  %v267 = vpack.c.b16 %v236, %v235
  %v268 = vpack.c.b16 %v238, %v237
  %v269 = vpack.c.b16 %v240, %v239
  %v270 = vpack.c.b16 %v242, %v241
  %v271 = vpack.c.b16 %v244, %v243
  %v272 = vpack.c.b16 %v246, %v245
  %v273 = vpack.c.b16 %v248, %v247
  %vm299 = vcmask 130048
  %v301 = vsel %vm299, %v124, 0
  %v304 = vsel %vm299, %v128, 0
  %v307 = vsel %vm299, %v132, 0
  %v310 = vsel %vm299, %v136, 0
  %312 = vmatprep.subr.bf16.mxu0 0
  %313 = vmatpush1.bf16.msra.mxu0 %v249
  %314 = vmatprep.subr.bf16.mxu0 0
  %315 = vmatpush1.bf16.msra.mxu0 %v250
  %316 = vmatprep.subr.bf16.mxu0 0
  %317 = vmatpush1.bf16.msra.mxu0 %v251
  %318 = vmatprep.subr.bf16.mxu0 0
  %319 = vmatpush1.bf16.msra.mxu0 %v252
  %320 = vmatprep.subr.bf16.mxu0 0
  %321 = vmatpush1.bf16.msra.mxu0 %v253
  %322 = vmatprep.subr.bf16.mxu0 0
  %323 = vmatpush1.bf16.msra.mxu0 %v254
  %324 = vmatprep.subr.bf16.mxu0 0
  %325 = vmatpush1.bf16.msra.mxu0 %v255
  %326 = vmatprep.subr.bf16.mxu0 0
  %327 = vmatpush1.bf16.msra.mxu0 %v256
  %328 = vmatprep.subr.bf16.mxu0 0
  %329 = vmatpush1.bf16.msra.mxu0 %v257
  %330 = vmatprep.subr.bf16.mxu0 0
  %331 = vmatpush1.bf16.msra.mxu0 %v258
  %332 = vmatprep.subr.bf16.mxu0 0
  %333 = vmatpush1.bf16.msra.mxu0 %v259
  %334 = vmatprep.subr.bf16.mxu0 0
  %335 = vmatpush1.bf16.msra.mxu0 %v260
  %336 = vmatprep.subr.bf16.mxu0 0
  %337 = vmatpush1.bf16.msra.mxu0 %v261
  %338 = vmatprep.subr.bf16.mxu0 0
  %339 = vmatpush1.bf16.msra.mxu0 %v262
  %340 = vmatprep.subr.bf16.mxu0 0
  %341 = vmatpush1.bf16.msra.mxu0 %v263
  %342 = vmatprep.subr.bf16.mxu0 0
  %343 = vmatpush1.bf16.msra.mxu0 %v264
  %344 = vmatprep.mubr.bf16.mxu0 %v122
  %345 = vmatmul.mubr.bf16.gmra.mrb[0].mxu0 %v121
  %v346 = vpop.f32.mrb[0].mxu0
  %v347 = vadd.f32 0.0, %v346
  %v348 = vpop.f32.mrb[0].mxu0
  %v349 = vpop.f32.mrb[0].mxu0
  %v350 = vadd.f32 0.0, %v349
  %v351 = vpop.f32.mrb[0].mxu0
  %352 = vmatprep.mubr.bf16.mxu0 %v126
  %353 = vmatmul.mubr.bf16.gmra.mrb[0].mxu0 %v125
  %v354 = vpop.f32.mrb[0].mxu0
  %v355 = vadd.f32 0.0, %v354
  %v356 = vpop.f32.mrb[0].mxu0
  %v357 = vpop.f32.mrb[0].mxu0
  %v358 = vadd.f32 0.0, %v357
  %v359 = vpop.f32.mrb[0].mxu0
  %360 = vmatprep.mubr.bf16.mxu0 %v130
  %361 = vmatmul.mubr.bf16.gmra.mrb[0].mxu0 %v129
  %v362 = vpop.f32.mrb[0].mxu0
  %v363 = vadd.f32 0.0, %v362
  %v364 = vpop.f32.mrb[0].mxu0
  %v365 = vpop.f32.mrb[0].mxu0
  %v366 = vadd.f32 0.0, %v365
  %v367 = vpop.f32.mrb[0].mxu0
  %368 = vmatprep.mubr.bf16.mxu0 %v134
  %369 = vmatmul.mubr.bf16.gmra.mrb[0].mxu0 %v133
  %v370 = vpop.f32.mrb[0].mxu0
  %v371 = vadd.f32 0.0, %v370
  %v372 = vpop.f32.mrb[0].mxu0
  %v373 = vpop.f32.mrb[0].mxu0
  %v374 = vpop.f32.mrb[0].mxu0
  %375 = vdwg.mxu0
  %376 = vmatprep.subr.bf16.mxu0 0
  %377 = vmatpush1.bf16.msra.mxu0 %v265
  %378 = vmatprep.subr.bf16.mxu0 0
  %379 = vmatpush1.bf16.msra.mxu0 %v266
  %380 = vmatprep.subr.bf16.mxu0 0
  %381 = vmatpush1.bf16.msra.mxu0 %v267
  %382 = vmatprep.subr.bf16.mxu0 0
  %383 = vmatpush1.bf16.msra.mxu0 %v268
  %384 = vmatprep.subr.bf16.mxu0 0
  %385 = vmatpush1.bf16.msra.mxu0 %v269
  %386 = vmatprep.subr.bf16.mxu0 0
  %387 = vmatpush1.bf16.msra.mxu0 %v270
  %388 = vmatprep.subr.bf16.mxu0 0
  %389 = vmatpush1.bf16.msra.mxu0 %v271
  %390 = vmatprep.subr.bf16.mxu0 0
  %391 = vmatpush1.bf16.msra.mxu0 %v272
  %392 = vmatprep.subr.bf16.mxu0 0
  %393 = vmatpush1.bf16.msra.mxu0 %v273
  %394 = vmatprep.subr.bf16.mxu0 0
  %395 = vmatpush1.bf16.msra.mxu0 0
  %396 = vmatprep.subr.bf16.mxu0 0
  %397 = vmatpush1.bf16.msra.mxu0 0
  %398 = vmatprep.subr.bf16.mxu0 0
  %399 = vmatpush1.bf16.msra.mxu0 0
  %400 = vmatprep.subr.bf16.mxu0 0
  %401 = vmatpush1.bf16.msra.mxu0 0
  %402 = vmatprep.subr.bf16.mxu0 0
  %403 = vmatpush1.bf16.msra.mxu0 0
  %404 = vmatprep.subr.bf16.mxu0 0
  %405 = vmatpush1.bf16.msra.mxu0 0
  %406 = vmatprep.subr.bf16.mxu0 0
  %407 = vmatpush1.bf16.msra.mxu0 0
  %408 = vmatprep.mubr.bf16.mxu0 %v301
  %409 = vmatmul.mubr.bf16.gmra.mrb[0].mxu0 %v123
  %v410 = vpop.f32.mrb[0].mxu0
  %v411 = vadd.f32 %v347, %v410
  %v412 = vpop.f32.mrb[0].mxu0
  %v413 = vpop.f32.mrb[0].mxu0
  %v414 = vadd.f32 %v350, %v413
  %v415 = vpop.f32.mrb[0].mxu0
  %416 = vmatprep.mubr.bf16.mxu0 %v304
  %417 = vmatmul.mubr.bf16.gmra.mrb[0].mxu0 %v127
  %v418 = vpop.f32.mrb[0].mxu0
  %v419 = vadd.f32 %v355, %v418
  %v420 = vpop.f32.mrb[0].mxu0
  %v421 = vpop.f32.mrb[0].mxu0
  %v422 = vadd.f32 %v358, %v421
  %v423 = vpop.f32.mrb[0].mxu0
  %424 = vmatprep.mubr.bf16.mxu0 %v307
  %425 = vmatmul.mubr.bf16.gmra.mrb[0].mxu0 %v131
  %v426 = vpop.f32.mrb[0].mxu0
  %v427 = vadd.f32 %v363, %v426
  %v428 = vpop.f32.mrb[0].mxu0
  %v429 = vpop.f32.mrb[0].mxu0
  %v430 = vadd.f32 %v366, %v429
  %v431 = vpop.f32.mrb[0].mxu0
  %432 = vmatprep.mubr.bf16.mxu0 %v310
  %433 = vmatmul.mubr.bf16.gmra.mrb[0].mxu0 %v135
  %v434 = vpop.f32.mrb[0].mxu0
  %v435 = vadd.f32 %v371, %v434
  %v436 = vpop.f32.mrb[0].mxu0
  %v437 = vpop.f32.mrb[0].mxu0
  %v438 = vpop.f32.mrb[0].mxu0
  %439 = vdwg.mxu0
  %s440 = scalar_lea.vmem %s0, 112
  %v441 = vld [vmem:[%s440] sm:$0xff]
  %v442 = vld [vmem:[%s440 + $0x8] sm:$0xff]
  %v443 = vld [vmem:[%s440 + $0x10] sm:$0xff]
  %v444 = vld [vmem:[%s440 + $0x18] sm:$0xff]
  %v445 = vld [vmem:[%s440 + $0x20] sm:$0xff]
  %v446 = vld [vmem:[%s440 + $0x28] sm:$0xff]
  %v447 = vld [vmem:[%s440 + $0x30] sm:$0xff]
  %v448 = vld [vmem:[%s440 + $0x38] sm:$0xff]
  %v449 = vld [vmem:[%s440 + $0x40] sm:$0xff]
  %v450 = vld [vmem:[%s440 + $0x48] sm:$0xff]
  %v451 = vld [vmem:[%s440 + $0x50] sm:$0xff]
  %v452 = vld [vmem:[%s440 + $0x58] sm:$0xff]
  %v453 = vld [vmem:[%s440 + $0x60] sm:$0x11]
  %v454 = vld [vmem:[%s440 + $0x68] sm:$0x11]
  %v469 = vunpack.c.l.b16 %v441
  %v470 = vunpack.c.h.b16 %v441
  %v471 = vunpack.c.l.b16 %v442
  %v472 = vunpack.c.h.b16 %v442
  %v473 = vunpack.c.l.b16 %v443
  %v474 = vunpack.c.h.b16 %v443
  %v475 = vunpack.c.l.b16 %v444
  %v476 = vunpack.c.h.b16 %v444
  %v477 = vunpack.c.l.b16 %v445
  %v478 = vunpack.c.h.b16 %v445
  %v479 = vunpack.c.l.b16 %v446
  %v480 = vunpack.c.h.b16 %v446
  %v481 = vunpack.c.l.b16 %v447
  %v482 = vunpack.c.h.b16 %v447
  %v483 = vunpack.c.l.b16 %v448
  %v484 = vunpack.c.h.b16 %v448
  %v485 = vunpack.c.l.b16 %v449
  %v486 = vunpack.c.h.b16 %v449
  %v487 = vunpack.c.l.b16 %v450
  %v488 = vunpack.c.h.b16 %v450
  %v489 = vunpack.c.l.b16 %v451
  %v490 = vunpack.c.h.b16 %v451
  %v491 = vunpack.c.l.b16 %v452
  %v492 = vunpack.c.h.b16 %v452
  %v493 = vunpack.c.l.b16 %v453
  %v494 = vunpack.c.h.b16 %v453
  %v495 = vunpack.c.l.b16 %v454
  %v496 = vunpack.c.h.b16 %v454
  %v497 = vpack.c.b16 %v473, %v469
  %v498 = vpack.c.b16 %v474, %v470
  %v499 = vpack.c.b16 %v475, %v471
  %v500 = vpack.c.b16 %v476, %v472
  %v501 = vpack.c.b16 %v481, %v477
  %v502 = vpack.c.b16 %v482, %v478
  %v503 = vpack.c.b16 %v483, %v479
  %v504 = vpack.c.b16 %v484, %v480
  %v505 = vpack.c.b16 %v489, %v485
  %v506 = vpack.c.b16 %v490, %v486
  %v507 = vpack.c.b16 %v491, %v487
  %v508 = vpack.c.b16 %v492, %v488
  %v509 = vpack.c.b16 %v493, %v493
  %v510 = vpack.c.b16 %v494, %v494
  %v511 = vpack.c.b16 %v495, %v495
  %v512 = vpack.c.b16 %v496, %v496
  %v526 = vsel %vm299, %v500, 0
  %v529 = vsel %vm299, %v504, 0
  %v532 = vsel %vm299, %v508, 0
  %v535 = vsel %vm299, %v512, 0
  %537 = vmatprep.subr.bf16.mxu0 0
  %538 = vmatpush1.bf16.msra.mxu0 %v249
  %539 = vmatprep.subr.bf16.mxu0 0
  %540 = vmatpush1.bf16.msra.mxu0 %v250
  %541 = vmatprep.subr.bf16.mxu0 0
  %542 = vmatpush1.bf16.msra.mxu0 %v251
  %543 = vmatprep.subr.bf16.mxu0 0
  %544 = vmatpush1.bf16.msra.mxu0 %v252
  %545 = vmatprep.subr.bf16.mxu0 0
  %546 = vmatpush1.bf16.msra.mxu0 %v253
  %547 = vmatprep.subr.bf16.mxu0 0
  %548 = vmatpush1.bf16.msra.mxu0 %v254
  %549 = vmatprep.subr.bf16.mxu0 0
  %550 = vmatpush1.bf16.msra.mxu0 %v255
  %551 = vmatprep.subr.bf16.mxu0 0
  %552 = vmatpush1.bf16.msra.mxu0 %v256
  %553 = vmatprep.subr.bf16.mxu0 0
  %554 = vmatpush1.bf16.msra.mxu0 %v257
  %555 = vmatprep.subr.bf16.mxu0 0
  %556 = vmatpush1.bf16.msra.mxu0 %v258
  %557 = vmatprep.subr.bf16.mxu0 0
  %558 = vmatpush1.bf16.msra.mxu0 %v259
  %559 = vmatprep.subr.bf16.mxu0 0
  %560 = vmatpush1.bf16.msra.mxu0 %v260
  %561 = vmatprep.subr.bf16.mxu0 0
  %562 = vmatpush1.bf16.msra.mxu0 %v261
  %563 = vmatprep.subr.bf16.mxu0 0
  %564 = vmatpush1.bf16.msra.mxu0 %v262
  %565 = vmatprep.subr.bf16.mxu0 0
  %566 = vmatpush1.bf16.msra.mxu0 %v263
  %567 = vmatprep.subr.bf16.mxu0 0
  %568 = vmatpush1.bf16.msra.mxu0 %v264
  %569 = vmatprep.mubr.bf16.mxu0 %v498
  %570 = vmatmul.mubr.bf16.gmra.mrb[0].mxu0 %v497
  %v571 = vpop.f32.mrb[0].mxu0
  %v572 = vadd.f32 0.0, %v571
  %v573 = vpop.f32.mrb[0].mxu0
  %v574 = vpop.f32.mrb[0].mxu0
  %v575 = vadd.f32 0.0, %v574
  %v576 = vpop.f32.mrb[0].mxu0
  %577 = vmatprep.mubr.bf16.mxu0 %v502
  %578 = vmatmul.mubr.bf16.gmra.mrb[0].mxu0 %v501
  %v579 = vpop.f32.mrb[0].mxu0
  %v580 = vadd.f32 0.0, %v579
  %v581 = vpop.f32.mrb[0].mxu0
  %v582 = vpop.f32.mrb[0].mxu0
  %v583 = vadd.f32 0.0, %v582
  %v584 = vpop.f32.mrb[0].mxu0
  %585 = vmatprep.mubr.bf16.mxu0 %v506
  %586 = vmatmul.mubr.bf16.gmra.mrb[0].mxu0 %v505
  %v587 = vpop.f32.mrb[0].mxu0
  %v588 = vadd.f32 0.0, %v587
  %v589 = vpop.f32.mrb[0].mxu0
  %v590 = vpop.f32.mrb[0].mxu0
  %v591 = vadd.f32 0.0, %v590
  %v592 = vpop.f32.mrb[0].mxu0
  %593 = vmatprep.mubr.bf16.mxu0 %v510
  %594 = vmatmul.mubr.bf16.gmra.mrb[0].mxu0 %v509
  %v595 = vpop.f32.mrb[0].mxu0
  %v596 = vadd.f32 0.0, %v595
  %v597 = vpop.f32.mrb[0].mxu0
  %v598 = vpop.f32.mrb[0].mxu0
  %v599 = vpop.f32.mrb[0].mxu0
  %600 = vdwg.mxu0
  %601 = vmatprep.subr.bf16.mxu0 0
  %602 = vmatpush1.bf16.msra.mxu0 %v265
  %603 = vmatprep.subr.bf16.mxu0 0
  %604 = vmatpush1.bf16.msra.mxu0 %v266
  %605 = vmatprep.subr.bf16.mxu0 0
  %606 = vmatpush1.bf16.msra.mxu0 %v267
  %607 = vmatprep.subr.bf16.mxu0 0
  %608 = vmatpush1.bf16.msra.mxu0 %v268
  %609 = vmatprep.subr.bf16.mxu0 0
  %610 = vmatpush1.bf16.msra.mxu0 %v269
  %611 = vmatprep.subr.bf16.mxu0 0
  %612 = vmatpush1.bf16.msra.mxu0 %v270
  %613 = vmatprep.subr.bf16.mxu0 0
  %614 = vmatpush1.bf16.msra.mxu0 %v271
  %615 = vmatprep.subr.bf16.mxu0 0
  %616 = vmatpush1.bf16.msra.mxu0 %v272
  %617 = vmatprep.subr.bf16.mxu0 0
  %618 = vmatpush1.bf16.msra.mxu0 %v273
  %619 = vmatprep.subr.bf16.mxu0 0
  %620 = vmatpush1.bf16.msra.mxu0 0
  %621 = vmatprep.subr.bf16.mxu0 0
  %622 = vmatpush1.bf16.msra.mxu0 0
  %623 = vmatprep.subr.bf16.mxu0 0
  %624 = vmatpush1.bf16.msra.mxu0 0
  %625 = vmatprep.subr.bf16.mxu0 0
  %626 = vmatpush1.bf16.msra.mxu0 0
  %627 = vmatprep.subr.bf16.mxu0 0
  %628 = vmatpush1.bf16.msra.mxu0 0
  %629 = vmatprep.subr.bf16.mxu0 0
  %630 = vmatpush1.bf16.msra.mxu0 0
  %631 = vmatprep.subr.bf16.mxu0 0
  %632 = vmatpush1.bf16.msra.mxu0 0
  %633 = vmatprep.mubr.bf16.mxu0 %v526
  %634 = vmatmul.mubr.bf16.gmra.mrb[0].mxu0 %v499
  %v635 = vpop.f32.mrb[0].mxu0
  %v636 = vadd.f32 %v572, %v635
  %v637 = vpop.f32.mrb[0].mxu0
  %v638 = vpop.f32.mrb[0].mxu0
  %v639 = vadd.f32 %v575, %v638
  %v640 = vpop.f32.mrb[0].mxu0
  %641 = vmatprep.mubr.bf16.mxu0 %v529
  %642 = vmatmul.mubr.bf16.gmra.mrb[0].mxu0 %v503
  %v643 = vpop.f32.mrb[0].mxu0
  %v644 = vadd.f32 %v580, %v643
  %v645 = vpop.f32.mrb[0].mxu0
  %v646 = vpop.f32.mrb[0].mxu0
  %v647 = vadd.f32 %v583, %v646
  %v648 = vpop.f32.mrb[0].mxu0
  %649 = vmatprep.mubr.bf16.mxu0 %v532
  %650 = vmatmul.mubr.bf16.gmra.mrb[0].mxu0 %v507
  %v651 = vpop.f32.mrb[0].mxu0
  %v652 = vadd.f32 %v588, %v651
  %v653 = vpop.f32.mrb[0].mxu0
  %v654 = vpop.f32.mrb[0].mxu0
  %v655 = vadd.f32 %v591, %v654
  %v656 = vpop.f32.mrb[0].mxu0
  %657 = vmatprep.mubr.bf16.mxu0 %v535
  %658 = vmatmul.mubr.bf16.gmra.mrb[0].mxu0 %v511
  %v659 = vpop.f32.mrb[0].mxu0
  %v660 = vadd.f32 %v596, %v659
  %v661 = vpop.f32.mrb[0].mxu0
  %v662 = vpop.f32.mrb[0].mxu0
  %v663 = vpop.f32.mrb[0].mxu0
  %664 = vdwg.mxu0
  %v665 = vmax.f32 %v411, %v636
  %v666 = vmax.f32 %v414, %v639
  %v667 = vmax.f32 %v419, %v644
  %v668 = vmax.f32 %v422, %v647
  %v669 = vmax.f32 %v427, %v652
  %v670 = vmax.f32 %v430, %v655
  %v671 = vmax.f32 %v435, %v660
  %s672 = scalar_lea.vmem %s0, 224
  %v673 = vld [vmem:[%s672] sm:$0xff]
  %v674 = vld [vmem:[%s672 + $0x8] sm:$0xff]
  %v675 = vld [vmem:[%s672 + $0x10] sm:$0xff]
  %v676 = vld [vmem:[%s672 + $0x18] sm:$0xff]
  %v677 = vld [vmem:[%s672 + $0x20] sm:$0xff]
  %v678 = vld [vmem:[%s672 + $0x28] sm:$0xff]
  %v679 = vld [vmem:[%s672 + $0x30] sm:$0xff]
  %v680 = vld [vmem:[%s672 + $0x38] sm:$0xff]
  %v681 = vld [vmem:[%s672 + $0x40] sm:$0xff]
  %v682 = vld [vmem:[%s672 + $0x48] sm:$0xff]
  %v683 = vld [vmem:[%s672 + $0x50] sm:$0xff]
  %v684 = vld [vmem:[%s672 + $0x58] sm:$0xff]
  %v685 = vld [vmem:[%s672 + $0x60] sm:$0x11]
  %v686 = vld [vmem:[%s672 + $0x68] sm:$0x11]
  %v701 = vunpack.c.l.b16 %v673
  %v702 = vunpack.c.h.b16 %v673
  %v703 = vunpack.c.l.b16 %v674
  %v704 = vunpack.c.h.b16 %v674
  %v705 = vunpack.c.l.b16 %v675
  %v706 = vunpack.c.h.b16 %v675
  %v707 = vunpack.c.l.b16 %v676
  %v708 = vunpack.c.h.b16 %v676
  %v709 = vunpack.c.l.b16 %v677
  %v710 = vunpack.c.h.b16 %v677
  %v711 = vunpack.c.l.b16 %v678
  %v712 = vunpack.c.h.b16 %v678
  %v713 = vunpack.c.l.b16 %v679
  %v714 = vunpack.c.h.b16 %v679
  %v715 = vunpack.c.l.b16 %v680
  %v716 = vunpack.c.h.b16 %v680
  %v717 = vunpack.c.l.b16 %v681
  %v718 = vunpack.c.h.b16 %v681
  %v719 = vunpack.c.l.b16 %v682
  %v720 = vunpack.c.h.b16 %v682
  %v721 = vunpack.c.l.b16 %v683
  %v722 = vunpack.c.h.b16 %v683
  %v723 = vunpack.c.l.b16 %v684
  %v724 = vunpack.c.h.b16 %v684
  %v725 = vunpack.c.l.b16 %v685
  %v726 = vunpack.c.h.b16 %v685
  %v727 = vunpack.c.l.b16 %v686
  %v728 = vunpack.c.h.b16 %v686
  %v729 = vpack.c.b16 %v705, %v701
  %v730 = vpack.c.b16 %v706, %v702
  %v731 = vpack.c.b16 %v707, %v703
  %v732 = vpack.c.b16 %v708, %v704
  %v733 = vpack.c.b16 %v713, %v709
  %v734 = vpack.c.b16 %v714, %v710
  %v735 = vpack.c.b16 %v715, %v711
  %v736 = vpack.c.b16 %v716, %v712
  %v737 = vpack.c.b16 %v721, %v717
  %v738 = vpack.c.b16 %v722, %v718
  %v739 = vpack.c.b16 %v723, %v719
  %v740 = vpack.c.b16 %v724, %v720
  %v741 = vpack.c.b16 %v725, %v725
  %v742 = vpack.c.b16 %v726, %v726
  %v743 = vpack.c.b16 %v727, %v727
  %v744 = vpack.c.b16 %v728, %v728
  %v758 = vsel %vm299, %v732, 0
  %v761 = vsel %vm299, %v736, 0
  %v764 = vsel %vm299, %v740, 0
  %v767 = vsel %vm299, %v744, 0
  %769 = vmatprep.subr.bf16.mxu0 0
  %770 = vmatpush1.bf16.msra.mxu0 %v249
  %771 = vmatprep.subr.bf16.mxu0 0
  %772 = vmatpush1.bf16.msra.mxu0 %v250
  %773 = vmatprep.subr.bf16.mxu0 0
  %774 = vmatpush1.bf16.msra.mxu0 %v251
  %775 = vmatprep.subr.bf16.mxu0 0
  %776 = vmatpush1.bf16.msra.mxu0 %v252
  %777 = vmatprep.subr.bf16.mxu0 0
  %778 = vmatpush1.bf16.msra.mxu0 %v253
  %779 = vmatprep.subr.bf16.mxu0 0
  %780 = vmatpush1.bf16.msra.mxu0 %v254
  %781 = vmatprep.subr.bf16.mxu0 0
  %782 = vmatpush1.bf16.msra.mxu0 %v255
  %783 = vmatprep.subr.bf16.mxu0 0
  %784 = vmatpush1.bf16.msra.mxu0 %v256
  %785 = vmatprep.subr.bf16.mxu0 0
  %786 = vmatpush1.bf16.msra.mxu0 %v257
  %787 = vmatprep.subr.bf16.mxu0 0
  %788 = vmatpush1.bf16.msra.mxu0 %v258
  %789 = vmatprep.subr.bf16.mxu0 0
  %790 = vmatpush1.bf16.msra.mxu0 %v259
  %791 = vmatprep.subr.bf16.mxu0 0
  %792 = vmatpush1.bf16.msra.mxu0 %v260
  %793 = vmatprep.subr.bf16.mxu0 0
  %794 = vmatpush1.bf16.msra.mxu0 %v261
  %795 = vmatprep.subr.bf16.mxu0 0
  %796 = vmatpush1.bf16.msra.mxu0 %v262
  %797 = vmatprep.subr.bf16.mxu0 0
  %798 = vmatpush1.bf16.msra.mxu0 %v263
  %799 = vmatprep.subr.bf16.mxu0 0
  %800 = vmatpush1.bf16.msra.mxu0 %v264
  %801 = vmatprep.mubr.bf16.mxu0 %v730
  %802 = vmatmul.mubr.bf16.gmra.mrb[0].mxu0 %v729
  %v803 = vpop.f32.mrb[0].mxu0
  %v804 = vadd.f32 0.0, %v803
  %v805 = vpop.f32.mrb[0].mxu0
  %v806 = vpop.f32.mrb[0].mxu0
  %v807 = vadd.f32 0.0, %v806
  %v808 = vpop.f32.mrb[0].mxu0
  %809 = vmatprep.mubr.bf16.mxu0 %v734
  %810 = vmatmul.mubr.bf16.gmra.mrb[0].mxu0 %v733
  %v811 = vpop.f32.mrb[0].mxu0
  %v812 = vadd.f32 0.0, %v811
  %v813 = vpop.f32.mrb[0].mxu0
  %v814 = vpop.f32.mrb[0].mxu0
  %v815 = vadd.f32 0.0, %v814
  %v816 = vpop.f32.mrb[0].mxu0
  %817 = vmatprep.mubr.bf16.mxu0 %v738
  %818 = vmatmul.mubr.bf16.gmra.mrb[0].mxu0 %v737
  %v819 = vpop.f32.mrb[0].mxu0
  %v820 = vadd.f32 0.0, %v819
  %v821 = vpop.f32.mrb[0].mxu0
  %v822 = vpop.f32.mrb[0].mxu0
  %v823 = vadd.f32 0.0, %v822
  %v824 = vpop.f32.mrb[0].mxu0
  %825 = vmatprep.mubr.bf16.mxu0 %v742
  %826 = vmatmul.mubr.bf16.gmra.mrb[0].mxu0 %v741
  %v827 = vpop.f32.mrb[0].mxu0
  %v828 = vadd.f32 0.0, %v827
  %v829 = vpop.f32.mrb[0].mxu0
  %v830 = vpop.f32.mrb[0].mxu0
  %v831 = vpop.f32.mrb[0].mxu0
  %832 = vdwg.mxu0
  %833 = vmatprep.subr.bf16.mxu0 0
  %834 = vmatpush1.bf16.msra.mxu0 %v265
  %835 = vmatprep.subr.bf16.mxu0 0
  %836 = vmatpush1.bf16.msra.mxu0 %v266
  %837 = vmatprep.subr.bf16.mxu0 0
  %838 = vmatpush1.bf16.msra.mxu0 %v267
  %839 = vmatprep.subr.bf16.mxu0 0
  %840 = vmatpush1.bf16.msra.mxu0 %v268
  %841 = vmatprep.subr.bf16.mxu0 0
  %842 = vmatpush1.bf16.msra.mxu0 %v269
  %843 = vmatprep.subr.bf16.mxu0 0
  %844 = vmatpush1.bf16.msra.mxu0 %v270
  %845 = vmatprep.subr.bf16.mxu0 0
  %846 = vmatpush1.bf16.msra.mxu0 %v271
  %847 = vmatprep.subr.bf16.mxu0 0
  %848 = vmatpush1.bf16.msra.mxu0 %v272
  %849 = vmatprep.subr.bf16.mxu0 0
  %850 = vmatpush1.bf16.msra.mxu0 %v273
  %851 = vmatprep.subr.bf16.mxu0 0
  %852 = vmatpush1.bf16.msra.mxu0 0
  %853 = vmatprep.subr.bf16.mxu0 0
  %854 = vmatpush1.bf16.msra.mxu0 0
  %855 = vmatprep.subr.bf16.mxu0 0
  %856 = vmatpush1.bf16.msra.mxu0 0
  %857 = vmatprep.subr.bf16.mxu0 0
  %858 = vmatpush1.bf16.msra.mxu0 0
  %859 = vmatprep.subr.bf16.mxu0 0
  %860 = vmatpush1.bf16.msra.mxu0 0
  %861 = vmatprep.subr.bf16.mxu0 0
  %862 = vmatpush1.bf16.msra.mxu0 0
  %863 = vmatprep.subr.bf16.mxu0 0
  %864 = vmatpush1.bf16.msra.mxu0 0
  %865 = vmatprep.mubr.bf16.mxu0 %v758
  %866 = vmatmul.mubr.bf16.gmra.mrb[0].mxu0 %v731
  %v867 = vpop.f32.mrb[0].mxu0
  %v868 = vadd.f32 %v804, %v867
  %v869 = vpop.f32.mrb[0].mxu0
  %v870 = vpop.f32.mrb[0].mxu0
  %v871 = vadd.f32 %v807, %v870
  %v872 = vpop.f32.mrb[0].mxu0
  %873 = vmatprep.mubr.bf16.mxu0 %v761
  %874 = vmatmul.mubr.bf16.gmra.mrb[0].mxu0 %v735
  %v875 = vpop.f32.mrb[0].mxu0
  %v876 = vadd.f32 %v812, %v875
  %v877 = vpop.f32.mrb[0].mxu0
  %v878 = vpop.f32.mrb[0].mxu0
  %v879 = vadd.f32 %v815, %v878
  %v880 = vpop.f32.mrb[0].mxu0
  %881 = vmatprep.mubr.bf16.mxu0 %v764
  %882 = vmatmul.mubr.bf16.gmra.mrb[0].mxu0 %v739
  %v883 = vpop.f32.mrb[0].mxu0
  %v884 = vadd.f32 %v820, %v883
  %v885 = vpop.f32.mrb[0].mxu0
  %v886 = vpop.f32.mrb[0].mxu0
  %v887 = vadd.f32 %v823, %v886
  %v888 = vpop.f32.mrb[0].mxu0
  %889 = vmatprep.mubr.bf16.mxu0 %v767
  %890 = vmatmul.mubr.bf16.gmra.mrb[0].mxu0 %v743
  %v891 = vpop.f32.mrb[0].mxu0
  %v892 = vadd.f32 %v828, %v891
  %v893 = vpop.f32.mrb[0].mxu0
  %v894 = vpop.f32.mrb[0].mxu0
  %v895 = vpop.f32.mrb[0].mxu0
  %896 = vdwg.mxu0
  %v897 = vmax.f32 %v665, %v868
  %v898 = vmax.f32 %v666, %v871
  %v899 = vmax.f32 %v667, %v876
  %v900 = vmax.f32 %v668, %v879
  %v901 = vmax.f32 %v669, %v884
  %v902 = vmax.f32 %v670, %v887
  %v903 = vmax.f32 %v671, %v892
  %s904 = scalar_lea.vmem %s0, 336
  %v905 = vld [vmem:[%s904] sm:$0xff]
  %v906 = vld [vmem:[%s904 + $0x8] sm:$0xff]
  %v907 = vld [vmem:[%s904 + $0x10] sm:$0xff]
  %v908 = vld [vmem:[%s904 + $0x18] sm:$0xff]
  %v909 = vld [vmem:[%s904 + $0x20] sm:$0xff]
  %v910 = vld [vmem:[%s904 + $0x28] sm:$0xff]
  %v911 = vld [vmem:[%s904 + $0x30] sm:$0xff]
  %v912 = vld [vmem:[%s904 + $0x38] sm:$0xff]
  %v913 = vld [vmem:[%s904 + $0x40] sm:$0xff]
  %v914 = vld [vmem:[%s904 + $0x48] sm:$0xff]
  %v915 = vld [vmem:[%s904 + $0x50] sm:$0xff]
  %v916 = vld [vmem:[%s904 + $0x58] sm:$0xff]
  %v917 = vld [vmem:[%s904 + $0x60] sm:$0x11]
  %v918 = vld [vmem:[%s904 + $0x68] sm:$0x11]
  %v933 = vunpack.c.l.b16 %v905
  %v934 = vunpack.c.h.b16 %v905
  %v935 = vunpack.c.l.b16 %v906
  %v936 = vunpack.c.h.b16 %v906
  %v937 = vunpack.c.l.b16 %v907
  %v938 = vunpack.c.h.b16 %v907
  %v939 = vunpack.c.l.b16 %v908
  %v940 = vunpack.c.h.b16 %v908
  %v941 = vunpack.c.l.b16 %v909
  %v942 = vunpack.c.h.b16 %v909
  %v943 = vunpack.c.l.b16 %v910
  %v944 = vunpack.c.h.b16 %v910
  %v945 = vunpack.c.l.b16 %v911
  %v946 = vunpack.c.h.b16 %v911
  %v947 = vunpack.c.l.b16 %v912
  %v948 = vunpack.c.h.b16 %v912
  %v949 = vunpack.c.l.b16 %v913
  %v950 = vunpack.c.h.b16 %v913
  %v951 = vunpack.c.l.b16 %v914
  %v952 = vunpack.c.h.b16 %v914
  %v953 = vunpack.c.l.b16 %v915
  %v954 = vunpack.c.h.b16 %v915
  %v955 = vunpack.c.l.b16 %v916
  %v956 = vunpack.c.h.b16 %v916
  %v957 = vunpack.c.l.b16 %v917
  %v958 = vunpack.c.h.b16 %v917
  %v959 = vunpack.c.l.b16 %v918
  %v960 = vunpack.c.h.b16 %v918
  %v961 = vpack.c.b16 %v937, %v933
  %v962 = vpack.c.b16 %v938, %v934
  %v963 = vpack.c.b16 %v939, %v935
  %v964 = vpack.c.b16 %v940, %v936
  %v965 = vpack.c.b16 %v945, %v941
  %v966 = vpack.c.b16 %v946, %v942
  %v967 = vpack.c.b16 %v947, %v943
  %v968 = vpack.c.b16 %v948, %v944
  %v969 = vpack.c.b16 %v953, %v949
  %v970 = vpack.c.b16 %v954, %v950
  %v971 = vpack.c.b16 %v955, %v951
  %v972 = vpack.c.b16 %v956, %v952
  %v973 = vpack.c.b16 %v957, %v957
  %v974 = vpack.c.b16 %v958, %v958
  %v975 = vpack.c.b16 %v959, %v959
  %v976 = vpack.c.b16 %v960, %v960
  %v990 = vsel %vm299, %v964, 0
  %v993 = vsel %vm299, %v968, 0
  %v996 = vsel %vm299, %v972, 0
  %v999 = vsel %vm299, %v976, 0
  %1001 = vmatprep.subr.bf16.mxu0 0
  %1002 = vmatpush1.bf16.msra.mxu0 %v249
  %1003 = vmatprep.subr.bf16.mxu0 0
  %1004 = vmatpush1.bf16.msra.mxu0 %v250
  %1005 = vmatprep.subr.bf16.mxu0 0
  %1006 = vmatpush1.bf16.msra.mxu0 %v251
  %1007 = vmatprep.subr.bf16.mxu0 0
  %1008 = vmatpush1.bf16.msra.mxu0 %v252
  %1009 = vmatprep.subr.bf16.mxu0 0
  %1010 = vmatpush1.bf16.msra.mxu0 %v253
  %1011 = vmatprep.subr.bf16.mxu0 0
  %1012 = vmatpush1.bf16.msra.mxu0 %v254
  %1013 = vmatprep.subr.bf16.mxu0 0
  %1014 = vmatpush1.bf16.msra.mxu0 %v255
  %1015 = vmatprep.subr.bf16.mxu0 0
  %1016 = vmatpush1.bf16.msra.mxu0 %v256
  %1017 = vmatprep.subr.bf16.mxu0 0
  %1018 = vmatpush1.bf16.msra.mxu0 %v257
  %1019 = vmatprep.subr.bf16.mxu0 0
  %1020 = vmatpush1.bf16.msra.mxu0 %v258
  %1021 = vmatprep.subr.bf16.mxu0 0
  %1022 = vmatpush1.bf16.msra.mxu0 %v259
  %1023 = vmatprep.subr.bf16.mxu0 0
  %1024 = vmatpush1.bf16.msra.mxu0 %v260
  %1025 = vmatprep.subr.bf16.mxu0 0
  %1026 = vmatpush1.bf16.msra.mxu0 %v261
  %1027 = vmatprep.subr.bf16.mxu0 0
  %1028 = vmatpush1.bf16.msra.mxu0 %v262
  %1029 = vmatprep.subr.bf16.mxu0 0
  %1030 = vmatpush1.bf16.msra.mxu0 %v263
  %1031 = vmatprep.subr.bf16.mxu0 0
  %1032 = vmatpush1.bf16.msra.mxu0 %v264
  %1033 = vmatprep.mubr.bf16.mxu0 %v962
  %1034 = vmatmul.mubr.bf16.gmra.mrb[0].mxu0 %v961
  %v1035 = vpop.f32.mrb[0].mxu0
  %v1036 = vadd.f32 0.0, %v1035
  %v1037 = vpop.f32.mrb[0].mxu0
  %v1038 = vpop.f32.mrb[0].mxu0
  %v1039 = vadd.f32 0.0, %v1038
  %v1040 = vpop.f32.mrb[0].mxu0
  %1041 = vmatprep.mubr.bf16.mxu0 %v966
  %1042 = vmatmul.mubr.bf16.gmra.mrb[0].mxu0 %v965
  %v1043 = vpop.f32.mrb[0].mxu0
  %v1044 = vadd.f32 0.0, %v1043
  %v1045 = vpop.f32.mrb[0].mxu0
  %v1046 = vpop.f32.mrb[0].mxu0
  %v1047 = vadd.f32 0.0, %v1046
  %v1048 = vpop.f32.mrb[0].mxu0
  %1049 = vmatprep.mubr.bf16.mxu0 %v970
  %1050 = vmatmul.mubr.bf16.gmra.mrb[0].mxu0 %v969
  %v1051 = vpop.f32.mrb[0].mxu0
  %v1052 = vadd.f32 0.0, %v1051
  %v1053 = vpop.f32.mrb[0].mxu0
  %v1054 = vpop.f32.mrb[0].mxu0
  %v1055 = vadd.f32 0.0, %v1054
  %v1056 = vpop.f32.mrb[0].mxu0
  %1057 = vmatprep.mubr.bf16.mxu0 %v974
  %1058 = vmatmul.mubr.bf16.gmra.mrb[0].mxu0 %v973
  %v1059 = vpop.f32.mrb[0].mxu0
  %v1060 = vadd.f32 0.0, %v1059
  %v1061 = vpop.f32.mrb[0].mxu0
  %v1062 = vpop.f32.mrb[0].mxu0
  %v1063 = vpop.f32.mrb[0].mxu0
  %1064 = vdwg.mxu0
  %1065 = vmatprep.subr.bf16.mxu0 0
  %1066 = vmatpush1.bf16.msra.mxu0 %v265
  %1067 = vmatprep.subr.bf16.mxu0 0
  %1068 = vmatpush1.bf16.msra.mxu0 %v266
  %1069 = vmatprep.subr.bf16.mxu0 0
  %1070 = vmatpush1.bf16.msra.mxu0 %v267
  %1071 = vmatprep.subr.bf16.mxu0 0
  %1072 = vmatpush1.bf16.msra.mxu0 %v268
  %1073 = vmatprep.subr.bf16.mxu0 0
  %1074 = vmatpush1.bf16.msra.mxu0 %v269
  %1075 = vmatprep.subr.bf16.mxu0 0
  %1076 = vmatpush1.bf16.msra.mxu0 %v270
  %1077 = vmatprep.subr.bf16.mxu0 0
  %1078 = vmatpush1.bf16.msra.mxu0 %v271
  %1079 = vmatprep.subr.bf16.mxu0 0
  %1080 = vmatpush1.bf16.msra.mxu0 %v272
  %1081 = vmatprep.subr.bf16.mxu0 0
  %1082 = vmatpush1.bf16.msra.mxu0 %v273
  %1083 = vmatprep.subr.bf16.mxu0 0
  %1084 = vmatpush1.bf16.msra.mxu0 0
  %1085 = vmatprep.subr.bf16.mxu0 0
  %1086 = vmatpush1.bf16.msra.mxu0 0
  %1087 = vmatprep.subr.bf16.mxu0 0
  %1088 = vmatpush1.bf16.msra.mxu0 0
  %1089 = vmatprep.subr.bf16.mxu0 0
  %1090 = vmatpush1.bf16.msra.mxu0 0
  %1091 = vmatprep.subr.bf16.mxu0 0
  %1092 = vmatpush1.bf16.msra.mxu0 0
  %1093 = vmatprep.subr.bf16.mxu0 0
  %1094 = vmatpush1.bf16.msra.mxu0 0
  %1095 = vmatprep.subr.bf16.mxu0 0
  %1096 = vmatpush1.bf16.msra.mxu0 0
  %1097 = vmatprep.mubr.bf16.mxu0 %v990
  %1098 = vmatmul.mubr.bf16.gmra.mrb[0].mxu0 %v963
  %v1099 = vpop.f32.mrb[0].mxu0
  %v1100 = vadd.f32 %v1036, %v1099
  %v1101 = vpop.f32.mrb[0].mxu0
  %v1102 = vpop.f32.mrb[0].mxu0
  %v1103 = vadd.f32 %v1039, %v1102
  %v1104 = vpop.f32.mrb[0].mxu0
  %1105 = vmatprep.mubr.bf16.mxu0 %v993
  %1106 = vmatmul.mubr.bf16.gmra.mrb[0].mxu0 %v967
  %v1107 = vpop.f32.mrb[0].mxu0
  %v1108 = vadd.f32 %v1044, %v1107
  %v1109 = vpop.f32.mrb[0].mxu0
  %v1110 = vpop.f32.mrb[0].mxu0
  %v1111 = vadd.f32 %v1047, %v1110
  %v1112 = vpop.f32.mrb[0].mxu0
  %1113 = vmatprep.mubr.bf16.mxu0 %v996
  %1114 = vmatmul.mubr.bf16.gmra.mrb[0].mxu0 %v971
  %v1115 = vpop.f32.mrb[0].mxu0
  %v1116 = vadd.f32 %v1052, %v1115
  %v1117 = vpop.f32.mrb[0].mxu0
  %v1118 = vpop.f32.mrb[0].mxu0
  %v1119 = vadd.f32 %v1055, %v1118
  %v1120 = vpop.f32.mrb[0].mxu0
  %1121 = vmatprep.mubr.bf16.mxu0 %v999
  %1122 = vmatmul.mubr.bf16.gmra.mrb[0].mxu0 %v975
  %v1123 = vpop.f32.mrb[0].mxu0
  %v1124 = vadd.f32 %v1060, %v1123
  %v1125 = vpop.f32.mrb[0].mxu0
  %v1126 = vpop.f32.mrb[0].mxu0
  %v1127 = vpop.f32.mrb[0].mxu0
  %1128 = vdwg.mxu0
  %v1129 = vmax.f32 %v897, %v1100
  %v1130 = vmax.f32 %v898, %v1103
  %v1131 = vmax.f32 %v899, %v1108
  %v1132 = vmax.f32 %v900, %v1111
  %v1133 = vmax.f32 %v901, %v1116
  %v1134 = vmax.f32 %v902, %v1119
  %v1135 = vmax.f32 %v903, %v1124
  %v1136 = vld [vmem:[%s2] sm:$0x1]
  %v1138 = vlaneseq
  %v1139 = vshrl.u32 %v1138, 7
  %v1140 = vsub.s32 0, %v1139
  %v1141 = vrot.slane %v1136, %v1140
  %v1143 = vadd.f32 %v1129, %v1141
  %v1144 = vadd.f32 %v1130, %v1141
  %v1145 = vadd.f32 %v1131, %v1141
  %v1146 = vadd.f32 %v1132, %v1141
  %v1147 = vadd.f32 %v1133, %v1141
  %v1148 = vadd.f32 %v1134, %v1141
  %v1149 = vadd.f32 %v1135, %v1141
  %v1150 = vmax.f32 %v1143, 0.0
  %v1151 = vmax.f32 %v1144, 0.0
  %v1152 = vmax.f32 %v1145, 0.0
  %v1153 = vmax.f32 %v1146, 0.0
  %v1154 = vmax.f32 %v1147, 0.0
  %v1155 = vmax.f32 %v1148, 0.0
  %v1156 = vmax.f32 %v1149, 0.0
  %v1157 = vpack.c.bf16 %v1151, %v1150
  %v1158 = vpack.c.bf16 %v1153, %v1152
  %v1159 = vpack.c.bf16 %v1155, %v1154
  %v1160 = vpack.c.bf16 %v1156, %v1156
  %v1165 = vunpack.c.l.b16 %v1157
  %v1166 = vunpack.c.h.b16 %v1157
  %v1167 = vunpack.c.l.b16 %v1158
  %v1168 = vunpack.c.h.b16 %v1158
  %v1169 = vunpack.c.l.b16 %v1159
  %v1170 = vunpack.c.h.b16 %v1159
  %v1171 = vunpack.c.l.b16 %v1160
  %v1172 = vpack.c.b16 %v1165, %v1165
  %v1173 = vpack.c.b16 %v1166, %v1166
  %v1174 = vpack.c.b16 %v1167, %v1167
  %v1175 = vpack.c.b16 %v1168, %v1168
  %v1176 = vpack.c.b16 %v1169, %v1169
  %v1177 = vpack.c.b16 %v1170, %v1170
  %v1178 = vpack.c.b16 %v1171, %v1171
  %1186 = vst [vmem:[%s3] sm:$0xf] %v1172
  %1187 = vst [vmem:[%s3 + $0x4] sm:$0xf] %v1173
  %1188 = vst [vmem:[%s3 + $0x8] sm:$0xf] %v1174
  %1189 = vst [vmem:[%s3 + $0xc] sm:$0xf] %v1175
  %1190 = vst [vmem:[%s3 + $0x10] sm:$0xf] %v1176
  %1191 = vst [vmem:[%s3 + $0x14] sm:$0xf] %v1177
  %1192 = vst [vmem:[%s3 + $0x18] sm:$0x1] %v1178
  // Predicated region
  $region14: #{_lambda_.4} parent=0 // pred_check
    _
  $region15: #{_lambda_.4} parent=0 // pred_check_branch
    %1194 = sbr.rel (0) target = $region17
  $region16: #{_lambda_.4} parent=0 // pred_region
    _
  $region17: #{_lambda_.4} parent=0 // pred_fallthru
    _
  // Predicated region
  $region18: #{_lambda_.4} parent=0 // pred_check
    _
  $region19: #{_lambda_.4} parent=0 // pred_check_branch
    %1196 = sbr.rel (0) target = $region21
  $region20: #{_lambda_.4} parent=0 // pred_region
    _
  $region21: #{_lambda_.4} parent=0 // pred_fallthru
    _

</llo_original>
